<compile_context>
chip_gen: v5e
topology: v5e:2x2
jax: 0.10.0
libtpu: 0.0.40
codegen_flags: <defaults>
</compile_context>

<pallas_src>
import jax
import jax.numpy as jnp
from jax.experimental import pallas as pl
from jax.experimental.pallas import tpu as pltpu

_LANES = 128  # lane width / padded conv output channels


def _round_up(x, m):
    return (x + m - 1) // m * m


def _tile_m(m, cap):
    # Full-array block for small M (always legal: equals the full dim),
    # otherwise a fixed sublane-aligned tile with a masked edge block.
    return m if m <= cap else cap


# ----------------------------------------------------------------------------
# Pallas kernels
# ----------------------------------------------------------------------------
def _conv_pool_kernel(c0_ref, c1_ref, c2_ref, c3_ref, w_ref, b_ref, o_ref):
    """Fused conv+bias+ReLU+maxpool: max over the 4 pool-window offsets of
    relu(cols_k @ W + b).  cols*: (TM, Kp)  W: (Kp, 128)  b: (1, 128)."""
    w = w_ref[...]
    b = b_ref[...]

    def branch(c_ref):
        y = jnp.dot(c_ref[...], w, preferred_element_type=jnp.float32) + b
        return jnp.maximum(y, 0.0)

    o_ref[...] = jnp.maximum(
        jnp.maximum(branch(c0_ref), branch(c1_ref)),
        jnp.maximum(branch(c2_ref), branch(c3_ref)),
    ).astype(o_ref.dtype)


def _fc_stack_kernel(x_ref, w1_ref, b1_ref, w2_ref, b2_ref, w3_ref, b3_ref,
                     o_ref):
    """relu(relu(x@W1+b1)@W2+b2)@W3+b3 fully fused; weights stay in VMEM."""
    h = jnp.dot(x_ref[...], w1_ref[...], preferred_element_type=jnp.float32)
    h = jnp.maximum(h + b1_ref[...], 0.0)
    h = jnp.dot(h, w2_ref[...], preferred_element_type=jnp.float32)
    h = jnp.maximum(h + b2_ref[...], 0.0)
    o = jnp.dot(h, w3_ref[...], preferred_element_type=jnp.float32) + b3_ref[...]
    o_ref[...] = o.astype(o_ref.dtype)


# ----------------------------------------------------------------------------
# Wrappers
# ----------------------------------------------------------------------------
def _pooled_patches(x, kh, kw, k_pad):
    """NHWC x -> four stride-2 im2col matrices, one per 2x2 pool offset.

    Returns ([4 x (B*PH*PW, k_pad)], (PH, PW)); column order (kh, kw, c),
    zero-padded to k_pad columns (padding built into the concat, no extra pass).
    Total bytes equal one plain (stride-1) im2col of the conv input."""
    B, H, W, C = x.shape
    oh, ow = H - kh + 1, W - kw + 1
    ph, pw = oh // 2, ow // 2
    k = kh * kw * C
    outs = []
    for di in (0, 1):
        for dj in (0, 1):
            taps = [
                x[:, di + i:di + i + 2 * ph:2, dj + j:dj + j + 2 * pw:2, :]
                for i in range(kh)
                for j in range(kw)
            ]
            if k_pad > k:
                taps.append(jnp.zeros((B, ph, pw, k_pad - k), x.dtype))
            cols = jnp.concatenate(taps, axis=-1)        # (B, PH, PW, k_pad)
            outs.append(cols.reshape(B * ph * pw, k_pad))
    return outs, (ph, pw)


def conv_relu_pool(x_nhwc, w_mat, b_row, *, kh, kw, m_tile_cap=512):
    """Conv2d(valid, stride 1) + ReLU + MaxPool2d(2,2) fused in one kernel.

    x_nhwc: (B, H, W, C); w_mat: (Kp, 128) packed weight; b_row: (1, 128).
    Returns (B, PH, PW, 128) with the valid channels in the leading columns."""
    B = x_nhwc.shape[0]
    kp = w_mat.shape[0]
    cols, (ph, pw) = _pooled_patches(x_nhwc, kh, kw, kp)
    m = B * ph * pw
    tm = _tile_m(m, m_tile_cap)
    col_spec = pl.BlockSpec((tm, kp), lambda i: (i, 0))
    y = pl.pallas_call(
        _conv_pool_kernel,
        out_shape=jax.ShapeDtypeStruct((m, _LANES), jnp.float32),
        grid=(pl.cdiv(m, tm),),
        in_specs=[col_spec, col_spec, col_spec, col_spec,
                  pl.BlockSpec((kp, _LANES), lambda i: (0, 0)),
                  pl.BlockSpec((1, _LANES), lambda i: (0, 0))],
        out_specs=pl.BlockSpec((tm, _LANES), lambda i: (i, 0)),
        compiler_params=pltpu.CompilerParams(
            dimension_semantics=("parallel",)),
    )(*cols, w_mat, b_row)
    return y.reshape(B, ph, pw, _LANES)


def fc_stack(x, w1, b1, w2, b2, w3, b3, *, m_tile_cap=256):
    """Fused fc1 -> relu -> fc2 -> relu -> fc3 in a single pallas_call."""
    m, k = x.shape
    n = w3.shape[1]
    tm = _tile_m(m, m_tile_cap)
    return pl.pallas_call(
        _fc_stack_kernel,
        out_shape=jax.ShapeDtypeStruct((m, n), jnp.float32),
        grid=(pl.cdiv(m, tm),),
        in_specs=[
            pl.BlockSpec((tm, k), lambda i: (i, 0)),
            pl.BlockSpec(w1.shape, lambda i: (0, 0)),
            pl.BlockSpec((1, w1.shape[1]), lambda i: (0, 0)),
            pl.BlockSpec(w2.shape, lambda i: (0, 0)),
            pl.BlockSpec((1, w2.shape[1]), lambda i: (0, 0)),
            pl.BlockSpec(w3.shape, lambda i: (0, 0)),
            pl.BlockSpec((1, w3.shape[1]), lambda i: (0, 0)),
        ],
        out_specs=pl.BlockSpec((tm, n), lambda i: (i, 0)),
        compiler_params=pltpu.CompilerParams(
            dimension_semantics=("parallel",)),
    )(x, w1, b1, w2, b2, w3, b3)


# ----------------------------------------------------------------------------
# Parameters (torch-style init) + one-time repack into kernel layouts
# ----------------------------------------------------------------------------
def init_params(key):
    ks = jax.random.split(key, 10)

    def u(k, shape, fan_in):
        bound = 1.0 / float(fan_in) ** 0.5
        return jax.random.uniform(k, shape, jnp.float32, -bound, bound)

    return {
        "conv1_w": u(ks[0], (6, 3, 5, 5), 3 * 5 * 5),
        "conv1_b": u(ks[1], (6,), 3 * 5 * 5),
        "conv2_w": u(ks[2], (16, 6, 5, 5), 6 * 5 * 5),
        "conv2_b": u(ks[3], (16,), 6 * 5 * 5),
        "fc1_w": u(ks[4], (256, 16 * 5 * 5), 16 * 5 * 5),
        "fc1_b": u(ks[5], (256,), 16 * 5 * 5),
        "fc2_w": u(ks[6], (512, 256), 256),
        "fc2_b": u(ks[7], (512,), 256),
        "fc3_w": u(ks[8], (1024, 512), 512),
        "fc3_b": u(ks[9], (1024,), 512),
    }


def prepare_params(p):
    """One-time repack of torch-style params into kernel-friendly layouts."""

    def pack_conv(w, b):
        oc, ic, kh, kw = w.shape
        k = kh * kw * ic
        kp = _round_up(k, 8)  # sublane multiple for the weight tile
        # matmul weight with rows ordered (kh, kw, c), zero-padded to (kp, 128)
        wm = w.transpose(2, 3, 1, 0).reshape(k, oc)
        wm = jnp.pad(wm, ((0, kp - k), (0, _LANES - oc)))
        br = jnp.pad(b, (0, _LANES - oc)).reshape(1, _LANES)
        return wm.astype(jnp.float32), br.astype(jnp.float32)

    w1m, b1r = pack_conv(p["conv1_w"], p["conv1_b"])
    w2m, b2r = pack_conv(p["conv2_w"], p["conv2_b"])

    # fc1: permute the 400 input columns from torch's (c, h, w) flatten order
    # to the channels-last (h, w, c) order produced by the NHWC pipeline, and
    # store every FC weight pre-transposed as (in, out).
    fc1 = p["fc1_w"].reshape(256, 16, 5, 5).transpose(0, 2, 3, 1).reshape(256, 400)
    return {
        "conv1_wm": w1m, "conv1_b": b1r,
        "conv2_wm": w2m, "conv2_b": b2r,
        "fc1_w": jnp.asarray(fc1.T), "fc1_b": p["fc1_b"].reshape(1, -1),
        "fc2_w": jnp.asarray(p["fc2_w"].T), "fc2_b": p["fc2_b"].reshape(1, -1),
        "fc3_w": jnp.asarray(p["fc3_w"].T), "fc3_b": p["fc3_b"].reshape(1, -1),
    }


# ----------------------------------------------------------------------------
# Forward pass (mirrors ConvNet.forward; NCHW in, (B, 1024) out)
# ----------------------------------------------------------------------------
@jax.jit
def convnet_forward(kp, x_nchw):
    # single layout change: NCHW (torch) -> NHWC (channels-last, lane-friendly)
    x = jnp.transpose(x_nchw, (0, 2, 3, 1)).astype(jnp.float32)
    y = conv_relu_pool(x, kp["conv1_wm"], kp["conv1_b"], kh=5, kw=5)  # (B,14,14,128)
    y = y[..., :6]                                                    # valid channels
    y = conv_relu_pool(y, kp["conv2_wm"], kp["conv2_b"], kh=5, kw=5)  # (B,5,5,128)
    y = y[..., :16]
    feats = y.reshape(y.shape[0], 5 * 5 * 16)                         # (h, w, c) order
    return fc_stack(feats, kp["fc1_w"], kp["fc1_b"],
                    kp["fc2_w"], kp["fc2_b"],
                    kp["fc3_w"], kp["fc3_b"])                         # (B, 1024)


# Pure-JAX reference (torch semantics, NCHW) for correctness checking.
def reference_forward(params, x):
    def conv(x, w, b):
        y = jax.lax.conv_general_dilated(
            x, w, (1, 1), "VALID", dimension_numbers=("NCHW", "OIHW", "NCHW"))
        return y + b.reshape(1, -1, 1, 1)

    def pool(x):
        B, C, H, W = x.shape
        return x.reshape(B, C, H // 2, 2, W // 2, 2).max(axis=(3, 5))

    x = pool(jax.nn.relu(conv(x, params["conv1_w"], params["conv1_b"])))
    x = pool(jax.nn.relu(conv(x, params["conv2_w"], params["conv2_b"])))
    x = x.reshape(x.shape[0], -1)
    x = jax.nn.relu(x @ params["fc1_w"].T + params["fc1_b"])
    x = jax.nn.relu(x @ params["fc2_w"].T + params["fc2_b"])
    x = x @ params["fc3_w"].T + params["fc3_b"]
    return x


if __name__ == "__main__":
    key = jax.random.PRNGKey(0)
    pkey, xkey = jax.random.split(key)
    params = init_params(pkey)
    kparams = prepare_params(params)
    # Spatial size must be 32x32 so that flatten yields 16*5*5 = 400 features.
    x = jax.random.normal(xkey, (2, 3, 32, 32), dtype=jnp.float32)

    out = jax.block_until_ready(convnet_forward(kparams, x))
    assert out.shape == (2, 1024), out.shape

    ref = reference_forward(params, x)
    max_err = float(jnp.max(jnp.abs(out - ref)))
    assert jnp.allclose(out, ref, atol=1e-3, rtol=1e-3), max_err
    print("KERNEL_OK")
</pallas_src>

<mosaic_0001>
module attributes {stable_mosaic.version = 11 : i64} {
  func.func @_conv_pool_kernel(%arg0: i32, %arg1: memref<392x80xf32, #tpu.memory_space<vmem>>, %arg2: memref<392x80xf32, #tpu.memory_space<vmem>>, %arg3: memref<392x80xf32, #tpu.memory_space<vmem>>, %arg4: memref<392x80xf32, #tpu.memory_space<vmem>>, %arg5: memref<80x128xf32, #tpu.memory_space<vmem>>, %arg6: memref<1x128xf32, #tpu.memory_space<vmem>>, %arg7: memref<392x128xf32, #tpu.memory_space<vmem>>) attributes {dimension_semantics = [#tpu.dimension_semantics<parallel>], iteration_bounds = array<i64: 1>, scalar_prefetch = 0 : i64, scratch_operands = 0 : i64, tpu.core_type = #tpu.core_type<tc>, window_params = [{transform_indices = @transform_0, window_bounds = array<i64: 392, 80>}, {transform_indices = @transform_1, window_bounds = array<i64: 392, 80>}, {transform_indices = @transform_2, window_bounds = array<i64: 392, 80>}, {transform_indices = @transform_3, window_bounds = array<i64: 392, 80>}, {pipeline_mode = #tpu.pipeline_mode<synchronous>, transform_indices = @transform_4, window_bounds = array<i64: 80, 128>}, {pipeline_mode = #tpu.pipeline_mode<synchronous>, transform_indices = @transform_5, window_bounds = array<i64: 1, 128>}, {transform_indices = @transform_6, window_bounds = array<i64: 392, 128>}]} {
    %c0 = arith.constant 0 : index
    %c0_0 = arith.constant 0 : index
    %0 = vector.load %arg5[%c0, %c0_0] : memref<80x128xf32, #tpu.memory_space<vmem>>, vector<80x128xf32>
    %c0_1 = arith.constant 0 : index
    %c0_2 = arith.constant 0 : index
    %1 = vector.load %arg6[%c0_1, %c0_2] : memref<1x128xf32, #tpu.memory_space<vmem>>, vector<1x128xf32>
    %c0_3 = arith.constant 0 : index
    %c0_4 = arith.constant 0 : index
    %2 = vector.load %arg1[%c0_3, %c0_4] : memref<392x80xf32, #tpu.memory_space<vmem>>, vector<392x80xf32>
    %cst = arith.constant dense<0.000000e+00> : vector<392x128xf32>
    %3 = tpu.matmul %2, %0, %cst {dimension_numbers = #tpu.dot_dimension_numbers<[1], [0], [0], [1], [0, 0, 1, 1], [], []>} : vector<392x80xf32>, vector<80x128xf32>, vector<392x128xf32> -> vector<392x128xf32>
    %4 = vector.broadcast %1 : vector<1x128xf32> to vector<392x128xf32>
    %5 = arith.addf %3, %4 : vector<392x128xf32>
    %cst_5 = arith.constant 0.000000e+00 : f32
    %6 = vector.broadcast %cst_5 : f32 to vector<392x128xf32>
    %7 = arith.maximumf %5, %6 : vector<392x128xf32>
    %c0_6 = arith.constant 0 : index
    %c0_7 = arith.constant 0 : index
    %8 = vector.load %arg2[%c0_6, %c0_7] : memref<392x80xf32, #tpu.memory_space<vmem>>, vector<392x80xf32>
    %cst_8 = arith.constant dense<0.000000e+00> : vector<392x128xf32>
    %9 = tpu.matmul %8, %0, %cst_8 {dimension_numbers = #tpu.dot_dimension_numbers<[1], [0], [0], [1], [0, 0, 1, 1], [], []>} : vector<392x80xf32>, vector<80x128xf32>, vector<392x128xf32> -> vector<392x128xf32>
    %10 = vector.broadcast %1 : vector<1x128xf32> to vector<392x128xf32>
    %11 = arith.addf %9, %10 : vector<392x128xf32>
    %cst_9 = arith.constant 0.000000e+00 : f32
    %12 = vector.broadcast %cst_9 : f32 to vector<392x128xf32>
    %13 = arith.maximumf %11, %12 : vector<392x128xf32>
    %14 = arith.maximumf %7, %13 : vector<392x128xf32>
    %c0_10 = arith.constant 0 : index
    %c0_11 = arith.constant 0 : index
    %15 = vector.load %arg3[%c0_10, %c0_11] : memref<392x80xf32, #tpu.memory_space<vmem>>, vector<392x80xf32>
    %cst_12 = arith.constant dense<0.000000e+00> : vector<392x128xf32>
    %16 = tpu.matmul %15, %0, %cst_12 {dimension_numbers = #tpu.dot_dimension_numbers<[1], [0], [0], [1], [0, 0, 1, 1], [], []>} : vector<392x80xf32>, vector<80x128xf32>, vector<392x128xf32> -> vector<392x128xf32>
    %17 = vector.broadcast %1 : vector<1x128xf32> to vector<392x128xf32>
    %18 = arith.addf %16, %17 : vector<392x128xf32>
    %cst_13 = arith.constant 0.000000e+00 : f32
    %19 = vector.broadcast %cst_13 : f32 to vector<392x128xf32>
    %20 = arith.maximumf %18, %19 : vector<392x128xf32>
    %c0_14 = arith.constant 0 : index
    %c0_15 = arith.constant 0 : index
    %21 = vector.load %arg4[%c0_14, %c0_15] : memref<392x80xf32, #tpu.memory_space<vmem>>, vector<392x80xf32>
    %cst_16 = arith.constant dense<0.000000e+00> : vector<392x128xf32>
    %22 = tpu.matmul %21, %0, %cst_16 {dimension_numbers = #tpu.dot_dimension_numbers<[1], [0], [0], [1], [0, 0, 1, 1], [], []>} : vector<392x80xf32>, vector<80x128xf32>, vector<392x128xf32> -> vector<392x128xf32>
    %23 = vector.broadcast %1 : vector<1x128xf32> to vector<392x128xf32>
    %24 = arith.addf %22, %23 : vector<392x128xf32>
    %cst_17 = arith.constant 0.000000e+00 : f32
    %25 = vector.broadcast %cst_17 : f32 to vector<392x128xf32>
    %26 = arith.maximumf %24, %25 : vector<392x128xf32>
    %27 = arith.maximumf %20, %26 : vector<392x128xf32>
    %28 = arith.maximumf %14, %27 : vector<392x128xf32>
    %c0_18 = arith.constant 0 : index
    %c0_19 = arith.constant 0 : index
    %29 = vector.load %arg7[%c0_18, %c0_19] : memref<392x128xf32, #tpu.memory_space<vmem>>, vector<392x128xf32>
    tpu.vector_store %arg7[%c0_18, %c0_19], %28 {strides = array<i32>} : memref<392x128xf32, #tpu.memory_space<vmem>>, vector<392x128xf32>,
    return
  }
  func.func @transform_0(%arg0: i32) -> (i32, i32) {
    %c0_i32 = arith.constant 0 : i32
    %c0_i32_0 = arith.constant 0 : i32
    return %arg0, %c0_i32 : i32, i32
  }
  func.func @transform_1(%arg0: i32) -> (i32, i32) {
    %c0_i32 = arith.constant 0 : i32
    %c0_i32_0 = arith.constant 0 : i32
    return %arg0, %c0_i32 : i32, i32
  }
  func.func @transform_2(%arg0: i32) -> (i32, i32) {
    %c0_i32 = arith.constant 0 : i32
    %c0_i32_0 = arith.constant 0 : i32
    return %arg0, %c0_i32 : i32, i32
  }
  func.func @transform_3(%arg0: i32) -> (i32, i32) {
    %c0_i32 = arith.constant 0 : i32
    %c0_i32_0 = arith.constant 0 : i32
    return %arg0, %c0_i32 : i32, i32
  }
  func.func @transform_4(%arg0: i32) -> (i32, i32) {
    %c0_i32 = arith.constant 0 : i32
    %c0_i32_0 = arith.constant 0 : i32
    %c0_i32_1 = arith.constant 0 : i32
    return %c0_i32, %c0_i32_0 : i32, i32
  }
  func.func @transform_5(%arg0: i32) -> (i32, i32) {
    %c0_i32 = arith.constant 0 : i32
    %c0_i32_0 = arith.constant 0 : i32
    %c0_i32_1 = arith.constant 0 : i32
    return %c0_i32, %c0_i32_0 : i32, i32
  }
  func.func @transform_6(%arg0: i32) -> (i32, i32) {
    %c0_i32 = arith.constant 0 : i32
    %c0_i32_0 = arith.constant 0 : i32
    return %arg0, %c0_i32 : i32, i32
  }
}

module attributes {stable_mosaic.version = 11 : i64} {
  func.func @_conv_pool_kernel(%arg0: i32, %arg1: memref<50x152xf32, #tpu.memory_space<vmem>>, %arg2: memref<50x152xf32, #tpu.memory_space<vmem>>, %arg3: memref<50x152xf32, #tpu.memory_space<vmem>>, %arg4: memref<50x152xf32, #tpu.memory_space<vmem>>, %arg5: memref<152x128xf32, #tpu.memory_space<vmem>>, %arg6: memref<1x128xf32, #tpu.memory_space<vmem>>, %arg7: memref<50x128xf32, #tpu.memory_space<vmem>>) attributes {dimension_semantics = [#tpu.dimension_semantics<parallel>], iteration_bounds = array<i64: 1>, scalar_prefetch = 0 : i64, scratch_operands = 0 : i64, tpu.core_type = #tpu.core_type<tc>, window_params = [{transform_indices = @transform_0, window_bounds = array<i64: 50, 152>}, {transform_indices = @transform_1, window_bounds = array<i64: 50, 152>}, {transform_indices = @transform_2, window_bounds = array<i64: 50, 152>}, {transform_indices = @transform_3, window_bounds = array<i64: 50, 152>}, {pipeline_mode = #tpu.pipeline_mode<synchronous>, transform_indices = @transform_4, window_bounds = array<i64: 152, 128>}, {pipeline_mode = #tpu.pipeline_mode<synchronous>, transform_indices = @transform_5, window_bounds = array<i64: 1, 128>}, {transform_indices = @transform_6, window_bounds = array<i64: 50, 128>}]} {
    %c0 = arith.constant 0 : index
    %c0_0 = arith.constant 0 : index
    %0 = vector.load %arg5[%c0, %c0_0] : memref<152x128xf32, #tpu.memory_space<vmem>>, vector<152x128xf32>
    %c0_1 = arith.constant 0 : index
    %c0_2 = arith.constant 0 : index
    %1 = vector.load %arg6[%c0_1, %c0_2] : memref<1x128xf32, #tpu.memory_space<vmem>>, vector<1x128xf32>
    %c0_3 = arith.constant 0 : index
    %c0_4 = arith.constant 0 : index
    %2 = vector.load %arg1[%c0_3, %c0_4] : memref<50x152xf32, #tpu.memory_space<vmem>>, vector<50x152xf32>
    %cst = arith.constant dense<0.000000e+00> : vector<50x128xf32>
    %3 = tpu.matmul %2, %0, %cst {dimension_numbers = #tpu.dot_dimension_numbers<[1], [0], [0], [1], [0, 0, 1, 1], [], []>} : vector<50x152xf32>, vector<152x128xf32>, vector<50x128xf32> -> vector<50x128xf32>
    %4 = vector.broadcast %1 : vector<1x128xf32> to vector<50x128xf32>
    %5 = arith.addf %3, %4 : vector<50x128xf32>
    %cst_5 = arith.constant 0.000000e+00 : f32
    %6 = vector.broadcast %cst_5 : f32 to vector<50x128xf32>
    %7 = arith.maximumf %5, %6 : vector<50x128xf32>
    %c0_6 = arith.constant 0 : index
    %c0_7 = arith.constant 0 : index
    %8 = vector.load %arg2[%c0_6, %c0_7] : memref<50x152xf32, #tpu.memory_space<vmem>>, vector<50x152xf32>
    %cst_8 = arith.constant dense<0.000000e+00> : vector<50x128xf32>
    %9 = tpu.matmul %8, %0, %cst_8 {dimension_numbers = #tpu.dot_dimension_numbers<[1], [0], [0], [1], [0, 0, 1, 1], [], []>} : vector<50x152xf32>, vector<152x128xf32>, vector<50x128xf32> -> vector<50x128xf32>
    %10 = vector.broadcast %1 : vector<1x128xf32> to vector<50x128xf32>
    %11 = arith.addf %9, %10 : vector<50x128xf32>
    %cst_9 = arith.constant 0.000000e+00 : f32
    %12 = vector.broadcast %cst_9 : f32 to vector<50x128xf32>
    %13 = arith.maximumf %11, %12 : vector<50x128xf32>
    %14 = arith.maximumf %7, %13 : vector<50x128xf32>
    %c0_10 = arith.constant 0 : index
    %c0_11 = arith.constant 0 : index
    %15 = vector.load %arg3[%c0_10, %c0_11] : memref<50x152xf32, #tpu.memory_space<vmem>>, vector<50x152xf32>
    %cst_12 = arith.constant dense<0.000000e+00> : vector<50x128xf32>
    %16 = tpu.matmul %15, %0, %cst_12 {dimension_numbers = #tpu.dot_dimension_numbers<[1], [0], [0], [1], [0, 0, 1, 1], [], []>} : vector<50x152xf32>, vector<152x128xf32>, vector<50x128xf32> -> vector<50x128xf32>
    %17 = vector.broadcast %1 : vector<1x128xf32> to vector<50x128xf32>
    %18 = arith.addf %16, %17 : vector<50x128xf32>
    %cst_13 = arith.constant 0.000000e+00 : f32
    %19 = vector.broadcast %cst_13 : f32 to vector<50x128xf32>
    %20 = arith.maximumf %18, %19 : vector<50x128xf32>
    %c0_14 = arith.constant 0 : index
    %c0_15 = arith.constant 0 : index
    %21 = vector.load %arg4[%c0_14, %c0_15] : memref<50x152xf32, #tpu.memory_space<vmem>>, vector<50x152xf32>
    %cst_16 = arith.constant dense<0.000000e+00> : vector<50x128xf32>
    %22 = tpu.matmul %21, %0, %cst_16 {dimension_numbers = #tpu.dot_dimension_numbers<[1], [0], [0], [1], [0, 0, 1, 1], [], []>} : vector<50x152xf32>, vector<152x128xf32>, vector<50x128xf32> -> vector<50x128xf32>
    %23 = vector.broadcast %1 : vector<1x128xf32> to vector<50x128xf32>
    %24 = arith.addf %22, %23 : vector<50x128xf32>
    %cst_17 = arith.constant 0.000000e+00 : f32
    %25 = vector.broadcast %cst_17 : f32 to vector<50x128xf32>
    %26 = arith.maximumf %24, %25 : vector<50x128xf32>
    %27 = arith.maximumf %20, %26 : vector<50x128xf32>
    %28 = arith.maximumf %14, %27 : vector<50x128xf32>
    %c0_18 = arith.constant 0 : index
    %c0_19 = arith.constant 0 : index
    %29 = vector.load %arg7[%c0_18, %c0_19] : memref<50x128xf32, #tpu.memory_space<vmem>>, vector<50x128xf32>
    tpu.vector_store %arg7[%c0_18, %c0_19], %28 {strides = array<i32>} : memref<50x128xf32, #tpu.memory_space<vmem>>, vector<50x128xf32>,
    return
  }
  func.func @transform_0(%arg0: i32) -> (i32, i32) {
    %c0_i32 = arith.constant 0 : i32
    %c0_i32_0 = arith.constant 0 : i32
    return %arg0, %c0_i32 : i32, i32
  }
  func.func @transform_1(%arg0: i32) -> (i32, i32) {
    %c0_i32 = arith.constant 0 : i32
    %c0_i32_0 = arith.constant 0 : i32
    return %arg0, %c0_i32 : i32, i32
  }
  func.func @transform_2(%arg0: i32) -> (i32, i32) {
    %c0_i32 = arith.constant 0 : i32
    %c0_i32_0 = arith.constant 0 : i32
    return %arg0, %c0_i32 : i32, i32
  }
  func.func @transform_3(%arg0: i32) -> (i32, i32) {
    %c0_i32 = arith.constant 0 : i32
    %c0_i32_0 = arith.constant 0 : i32
    return %arg0, %c0_i32 : i32, i32
  }
  func.func @transform_4(%arg0: i32) -> (i32, i32) {
    %c0_i32 = arith.constant 0 : i32
    %c0_i32_0 = arith.constant 0 : i32
    %c0_i32_1 = arith.constant 0 : i32
    return %c0_i32, %c0_i32_0 : i32, i32
  }
  func.func @transform_5(%arg0: i32) -> (i32, i32) {
    %c0_i32 = arith.constant 0 : i32
    %c0_i32_0 = arith.constant 0 : i32
    %c0_i32_1 = arith.constant 0 : i32
    return %c0_i32, %c0_i32_0 : i32, i32
  }
  func.func @transform_6(%arg0: i32) -> (i32, i32) {
    %c0_i32 = arith.constant 0 : i32
    %c0_i32_0 = arith.constant 0 : i32
    return %arg0, %c0_i32 : i32, i32
  }
}

module attributes {stable_mosaic.version = 11 : i64} {
  func.func @_fc_stack_kernel(%arg0: i32, %arg1: memref<2x400xf32, #tpu.memory_space<vmem>>, %arg2: memref<400x256xf32, #tpu.memory_space<vmem>>, %arg3: memref<1x256xf32, #tpu.memory_space<vmem>>, %arg4: memref<256x512xf32, #tpu.memory_space<vmem>>, %arg5: memref<1x512xf32, #tpu.memory_space<vmem>>, %arg6: memref<512x1024xf32, #tpu.memory_space<vmem>>, %arg7: memref<1x1024xf32, #tpu.memory_space<vmem>>, %arg8: memref<2x1024xf32, #tpu.memory_space<vmem>>) attributes {dimension_semantics = [#tpu.dimension_semantics<parallel>], iteration_bounds = array<i64: 1>, scalar_prefetch = 0 : i64, scratch_operands = 0 : i64, tpu.core_type = #tpu.core_type<tc>, window_params = [{transform_indices = @transform_0, window_bounds = array<i64: 2, 400>}, {pipeline_mode = #tpu.pipeline_mode<synchronous>, transform_indices = @transform_1, window_bounds = array<i64: 400, 256>}, {pipeline_mode = #tpu.pipeline_mode<synchronous>, transform_indices = @transform_2, window_bounds = array<i64: 1, 256>}, {pipeline_mode = #tpu.pipeline_mode<synchronous>, transform_indices = @transform_3, window_bounds = array<i64: 256, 512>}, {pipeline_mode = #tpu.pipeline_mode<synchronous>, transform_indices = @transform_4, window_bounds = array<i64: 1, 512>}, {pipeline_mode = #tpu.pipeline_mode<synchronous>, transform_indices = @transform_5, window_bounds = array<i64: 512, 1024>}, {pipeline_mode = #tpu.pipeline_mode<synchronous>, transform_indices = @transform_6, window_bounds = array<i64: 1, 1024>}, {transform_indices = @transform_7, window_bounds = array<i64: 2, 1024>}]} {
    %c0 = arith.constant 0 : index
    %c0_0 = arith.constant 0 : index
    %0 = vector.load %arg1[%c0, %c0_0] : memref<2x400xf32, #tpu.memory_space<vmem>>, vector<2x400xf32>
    %c0_1 = arith.constant 0 : index
    %c0_2 = arith.constant 0 : index
    %1 = vector.load %arg2[%c0_1, %c0_2] : memref<400x256xf32, #tpu.memory_space<vmem>>, vector<400x256xf32>
    %cst = arith.constant dense<0.000000e+00> : vector<2x256xf32>
    %2 = tpu.matmul %0, %1, %cst {dimension_numbers = #tpu.dot_dimension_numbers<[1], [0], [0], [1], [0, 0, 1, 1], [], []>} : vector<2x400xf32>, vector<400x256xf32>, vector<2x256xf32> -> vector<2x256xf32>
    %c0_3 = arith.constant 0 : index
    %c0_4 = arith.constant 0 : index
    %3 = vector.load %arg3[%c0_3, %c0_4] : memref<1x256xf32, #tpu.memory_space<vmem>>, vector<1x256xf32>
    %4 = vector.broadcast %3 : vector<1x256xf32> to vector<2x256xf32>
    %5 = arith.addf %2, %4 : vector<2x256xf32>
    %cst_5 = arith.constant 0.000000e+00 : f32
    %6 = vector.broadcast %cst_5 : f32 to vector<2x256xf32>
    %7 = arith.maximumf %5, %6 : vector<2x256xf32>
    %c0_6 = arith.constant 0 : index
    %c0_7 = arith.constant 0 : index
    %8 = vector.load %arg4[%c0_6, %c0_7] : memref<256x512xf32, #tpu.memory_space<vmem>>, vector<256x512xf32>
    %cst_8 = arith.constant dense<0.000000e+00> : vector<2x512xf32>
    %9 = tpu.matmul %7, %8, %cst_8 {dimension_numbers = #tpu.dot_dimension_numbers<[1], [0], [0], [1], [0, 0, 1, 1], [], []>} : vector<2x256xf32>, vector<256x512xf32>, vector<2x512xf32> -> vector<2x512xf32>
    %c0_9 = arith.constant 0 : index
    %c0_10 = arith.constant 0 : index
    %10 = vector.load %arg5[%c0_9, %c0_10] : memref<1x512xf32, #tpu.memory_space<vmem>>, vector<1x512xf32>
    %11 = vector.broadcast %10 : vector<1x512xf32> to vector<2x512xf32>
    %12 = arith.addf %9, %11 : vector<2x512xf32>
    %cst_11 = arith.constant 0.000000e+00 : f32
    %13 = vector.broadcast %cst_11 : f32 to vector<2x512xf32>
    %14 = arith.maximumf %12, %13 : vector<2x512xf32>
    %c0_12 = arith.constant 0 : index
    %c0_13 = arith.constant 0 : index
    %15 = vector.load %arg6[%c0_12, %c0_13] : memref<512x1024xf32, #tpu.memory_space<vmem>>, vector<512x1024xf32>
    %cst_14 = arith.constant dense<0.000000e+00> : vector<2x1024xf32>
    %16 = tpu.matmul %14, %15, %cst_14 {dimension_numbers = #tpu.dot_dimension_numbers<[1], [0], [0], [1], [0, 0, 1, 1], [], []>} : vector<2x512xf32>, vector<512x1024xf32>, vector<2x1024xf32> -> vector<2x1024xf32>
    %c0_15 = arith.constant 0 : index
    %c0_16 = arith.constant 0 : index
    %17 = vector.load %arg7[%c0_15, %c0_16] : memref<1x1024xf32, #tpu.memory_space<vmem>>, vector<1x1024xf32>
    %18 = vector.broadcast %17 : vector<1x1024xf32> to vector<2x1024xf32>
    %19 = arith.addf %16, %18 : vector<2x1024xf32>
    %c0_17 = arith.constant 0 : index
    %c0_18 = arith.constant 0 : index
    %20 = vector.load %arg8[%c0_17, %c0_18] : memref<2x1024xf32, #tpu.memory_space<vmem>>, vector<2x1024xf32>
    tpu.vector_store %arg8[%c0_17, %c0_18], %19 {strides = array<i32>} : memref<2x1024xf32, #tpu.memory_space<vmem>>, vector<2x1024xf32>,
    return
  }
  func.func @transform_0(%arg0: i32) -> (i32, i32) {
    %c0_i32 = arith.constant 0 : i32
    %c0_i32_0 = arith.constant 0 : i32
    return %arg0, %c0_i32 : i32, i32
  }
  func.func @transform_1(%arg0: i32) -> (i32, i32) {
    %c0_i32 = arith.constant 0 : i32
    %c0_i32_0 = arith.constant 0 : i32
    %c0_i32_1 = arith.constant 0 : i32
    return %c0_i32, %c0_i32_0 : i32, i32
  }
  func.func @transform_2(%arg0: i32) -> (i32, i32) {
    %c0_i32 = arith.constant 0 : i32
    %c0_i32_0 = arith.constant 0 : i32
    %c0_i32_1 = arith.constant 0 : i32
    return %c0_i32, %c0_i32_0 : i32, i32
  }
  func.func @transform_3(%arg0: i32) -> (i32, i32) {
    %c0_i32 = arith.constant 0 : i32
    %c0_i32_0 = arith.constant 0 : i32
    %c0_i32_1 = arith.constant 0 : i32
    return %c0_i32, %c0_i32_0 : i32, i32
  }
  func.func @transform_4(%arg0: i32) -> (i32, i32) {
    %c0_i32 = arith.constant 0 : i32
    %c0_i32_0 = arith.constant 0 : i32
    %c0_i32_1 = arith.constant 0 : i32
    return %c0_i32, %c0_i32_0 : i32, i32
  }
  func.func @transform_5(%arg0: i32) -> (i32, i32) {
    %c0_i32 = arith.constant 0 : i32
    %c0_i32_0 = arith.constant 0 : i32
    %c0_i32_1 = arith.constant 0 : i32
    return %c0_i32, %c0_i32_0 : i32, i32
  }
  func.func @transform_6(%arg0: i32) -> (i32, i32) {
    %c0_i32 = arith.constant 0 : i32
    %c0_i32_0 = arith.constant 0 : i32
    %c0_i32_1 = arith.constant 0 : i32
    return %c0_i32, %c0_i32_0 : i32, i32
  }
  func.func @transform_7(%arg0: i32) -> (i32, i32) {
    %c0_i32 = arith.constant 0 : i32
    %c0_i32_0 = arith.constant 0 : i32
    return %arg0, %c0_i32 : i32, i32
  }
}

</mosaic_0001>

<llo_original>
// kernel: convnet_forward.3
$region0: #{convnet_forward.3}
  #allocation0 [shape = 'u32[]', space=smem, size = 0x4, offset = 0x4, fixed_abs, tag = 'smem constant byte address 0x4 - core index']
  #allocation1 [shape = 'u32[72,128]{1,0:T(1,128)}', space=vmem, size = 0x9000, scoped, tag = 'internal scratch']
  %s0 = inlined_call_operand.vmem [shape: f32[392,80], index: 0, kind: input, shape index: {}]
  %s1 = inlined_call_operand.vmem [shape: f32[392,80], index: 1, kind: input, shape index: {}]
  %s2 = inlined_call_operand.vmem [shape: f32[392,80], index: 2, kind: input, shape index: {}]
  %s3 = inlined_call_operand.vmem [shape: f32[392,80], index: 3, kind: input, shape index: {}]
  %s4 = inlined_call_operand.vmem [shape: f32[80,128], index: 4, kind: input, shape index: {}]
  %s5 = inlined_call_operand.vmem [shape: f32[1,128], index: 5, kind: input, shape index: {}]
  %s6 = inlined_call_operand.vmem [shape: f32[392,128], index: 6, kind: output, shape index: {}]
  %s7 = sld [smem:[#allocation0]]
  $region34: #{convnet_forward.3} parent=0
    _
  %s9 = ssub.s32 1, %s7
  %s10 = scalar_select 0, %s9, %s7
  // Predicated region
  $region2: #{convnet_forward.3} parent=0 // pred_check
    _
  $region3: #{convnet_forward.3} parent=0 // pred_check_branch
    %12 = sbr.rel (0) target = $region5
  $region4: #{convnet_forward.3} parent=0 // pred_region
    _
  $region5: #{convnet_forward.3} parent=0 // pred_fallthru
    _
  // Predicated region
  $region6: #{convnet_forward.3} parent=0 // pred_check
    _
  $region7: #{convnet_forward.3} parent=0 // pred_check_branch
    %14 = sbr.rel (0) target = $region9
  $region8: #{convnet_forward.3} parent=0 // pred_region
    _
  $region9: #{convnet_forward.3} parent=0 // pred_fallthru
    _
  // Predicated region
  $region10: #{convnet_forward.3} parent=0 // pred_check
    _
  $region11: #{convnet_forward.3} parent=0 // pred_check_branch
    %16 = sbr.rel (0) target = $region13
  $region12: #{convnet_forward.3} parent=0 // pred_region
    _
  $region13: #{convnet_forward.3} parent=0 // pred_fallthru
    _
  // Predicated region
  $region14: #{convnet_forward.3} parent=0 // pred_check
    _
  $region15: #{convnet_forward.3} parent=0 // pred_check_branch
    %18 = sbr.rel (0) target = $region17
  $region16: #{convnet_forward.3} parent=0 // pred_region
    _
  $region17: #{convnet_forward.3} parent=0 // pred_fallthru
    _
  // Predicated region
  $region18: #{convnet_forward.3} parent=0 // pred_check
    _
  $region19: #{convnet_forward.3} parent=0 // pred_check_branch
    %20 = sbr.rel (0) target = $region21
  $region20: #{convnet_forward.3} parent=0 // pred_region
    _
  $region21: #{convnet_forward.3} parent=0 // pred_fallthru
    _
  // Predicated region
  $region22: #{convnet_forward.3} parent=0 // pred_check
    _
  $region23: #{convnet_forward.3} parent=0 // pred_check_branch
    %22 = sbr.rel (0) target = $region25
  $region24: #{convnet_forward.3} parent=0 // pred_region
    _
  $region25: #{convnet_forward.3} parent=0 // pred_fallthru
    _
  %v23 = vld [vmem:[%s4] sm:$0xff]
  %v24 = vld [vmem:[%s4 + $0x8] sm:$0xff]
  %v25 = vld [vmem:[%s4 + $0x10] sm:$0xff]
  %v26 = vld [vmem:[%s4 + $0x18] sm:$0xff]
  %v27 = vld [vmem:[%s4 + $0x20] sm:$0xff]
  %v28 = vld [vmem:[%s4 + $0x28] sm:$0xff]
  %v29 = vld [vmem:[%s4 + $0x30] sm:$0xff]
  %v30 = vld [vmem:[%s4 + $0x38] sm:$0xff]
  %v31 = vld [vmem:[%s4 + $0x40] sm:$0xff]
  %v32 = vld [vmem:[%s4 + $0x48] sm:$0xff]
  %v33 = vld [vmem:[%s5] sm:$0x1]
  %v34 = vld [vmem:[%s0] sm:$0xff]
  %v35 = vld [vmem:[%s0 + $0x8] sm:$0xff]
  %v36 = vld [vmem:[%s0 + $0x10] sm:$0xff]
  %v37 = vld [vmem:[%s0 + $0x18] sm:$0xff]
  %v38 = vld [vmem:[%s0 + $0x20] sm:$0xff]
  %v39 = vld [vmem:[%s0 + $0x28] sm:$0xff]
  %v40 = vld [vmem:[%s0 + $0x30] sm:$0xff]
  %v41 = vld [vmem:[%s0 + $0x38] sm:$0xff]
  %v42 = vld [vmem:[%s0 + $0x40] sm:$0xff]
  %v43 = vld [vmem:[%s0 + $0x48] sm:$0xff]
  %v44 = vld [vmem:[%s0 + $0x50] sm:$0xff]
  %v45 = vld [vmem:[%s0 + $0x58] sm:$0xff]
  %v46 = vld [vmem:[%s0 + $0x60] sm:$0xff]
  %v47 = vld [vmem:[%s0 + $0x68] sm:$0xff]
  %v48 = vld [vmem:[%s0 + $0x70] sm:$0xff]
  %v49 = vld [vmem:[%s0 + $0x78] sm:$0xff]
  %v50 = vld [vmem:[%s0 + $0x80] sm:$0xff]
  %v51 = vld [vmem:[%s0 + $0x88] sm:$0xff]
  %v52 = vld [vmem:[%s0 + $0x90] sm:$0xff]
  %v53 = vld [vmem:[%s0 + $0x98] sm:$0xff]
  %v54 = vld [vmem:[%s0 + $0xa0] sm:$0xff]
  %v55 = vld [vmem:[%s0 + $0xa8] sm:$0xff]
  %v56 = vld [vmem:[%s0 + $0xb0] sm:$0xff]
  %v57 = vld [vmem:[%s0 + $0xb8] sm:$0xff]
  %v58 = vld [vmem:[%s0 + $0xc0] sm:$0xff]
  %v59 = vld [vmem:[%s0 + $0xc8] sm:$0xff]
  %v60 = vld [vmem:[%s0 + $0xd0] sm:$0xff]
  %v61 = vld [vmem:[%s0 + $0xd8] sm:$0xff]
  %v62 = vld [vmem:[%s0 + $0xe0] sm:$0xff]
  %v63 = vld [vmem:[%s0 + $0xe8] sm:$0xff]
  %v64 = vld [vmem:[%s0 + $0xf0] sm:$0xff]
  %v65 = vld [vmem:[%s0 + $0xf8] sm:$0xff]
  %v66 = vld [vmem:[%s0 + $0x100] sm:$0xff]
  %v67 = vld [vmem:[%s0 + $0x108] sm:$0xff]
  %v68 = vld [vmem:[%s0 + $0x110] sm:$0xff]
  %v69 = vld [vmem:[%s0 + $0x118] sm:$0xff]
  %v70 = vld [vmem:[%s0 + $0x120] sm:$0xff]
  %v71 = vld [vmem:[%s0 + $0x128] sm:$0xff]
  %v72 = vld [vmem:[%s0 + $0x130] sm:$0xff]
  %v73 = vld [vmem:[%s0 + $0x138] sm:$0xff]
  %v74 = vld [vmem:[%s0 + $0x140] sm:$0xff]
  %v75 = vld [vmem:[%s0 + $0x148] sm:$0xff]
  %v76 = vld [vmem:[%s0 + $0x150] sm:$0xff]
  %v77 = vld [vmem:[%s0 + $0x158] sm:$0xff]
  %v78 = vld [vmem:[%s0 + $0x160] sm:$0xff]
  %v79 = vld [vmem:[%s0 + $0x168] sm:$0xff]
  %v80 = vld [vmem:[%s0 + $0x170] sm:$0xff]
  %v81 = vld [vmem:[%s0 + $0x178] sm:$0xff]
  %v82 = vld [vmem:[%s0 + $0x180] sm:$0xff]
  %v84 = vperm.slane %v33, 0
  %vm86 = vcmask 654336
  %v88 = vsel %vm86, %v34, 0
  %v91 = vsel %vm86, %v35, 0
  %v94 = vsel %vm86, %v36, 0
  %v97 = vsel %vm86, %v37, 0
  %v100 = vsel %vm86, %v38, 0
  %v103 = vsel %vm86, %v39, 0
  %v106 = vsel %vm86, %v40, 0
  %v109 = vsel %vm86, %v41, 0
  %v112 = vsel %vm86, %v42, 0
  %v115 = vsel %vm86, %v43, 0
  %v118 = vsel %vm86, %v44, 0
  %v121 = vsel %vm86, %v45, 0
  %v124 = vsel %vm86, %v46, 0
  %v127 = vsel %vm86, %v47, 0
  %v130 = vsel %vm86, %v48, 0
  %v133 = vsel %vm86, %v49, 0
  %v136 = vsel %vm86, %v50, 0
  %v139 = vsel %vm86, %v51, 0
  %v142 = vsel %vm86, %v52, 0
  %v145 = vsel %vm86, %v53, 0
  %v148 = vsel %vm86, %v54, 0
  %v151 = vsel %vm86, %v55, 0
  %v154 = vsel %vm86, %v56, 0
  %v157 = vsel %vm86, %v57, 0
  %v160 = vsel %vm86, %v58, 0
  %v163 = vsel %vm86, %v59, 0
  %v166 = vsel %vm86, %v60, 0
  %v169 = vsel %vm86, %v61, 0
  %v172 = vsel %vm86, %v62, 0
  %v175 = vsel %vm86, %v63, 0
  %v178 = vsel %vm86, %v64, 0
  %v181 = vsel %vm86, %v65, 0
  %v184 = vsel %vm86, %v66, 0
  %v187 = vsel %vm86, %v67, 0
  %v190 = vsel %vm86, %v68, 0
  %v193 = vsel %vm86, %v69, 0
  %v196 = vsel %vm86, %v70, 0
  %v199 = vsel %vm86, %v71, 0
  %v202 = vsel %vm86, %v72, 0
  %v205 = vsel %vm86, %v73, 0
  %v208 = vsel %vm86, %v74, 0
  %v211 = vsel %vm86, %v75, 0
  %v214 = vsel %vm86, %v76, 0
  %v217 = vsel %vm86, %v77, 0
  %v220 = vsel %vm86, %v78, 0
  %v223 = vsel %vm86, %v79, 0
  %v226 = vsel %vm86, %v80, 0
  %v229 = vsel %vm86, %v81, 0
  %v232 = vsel %vm86, %v82, 0
  %234 = vmatpush.msra.mxu0 0.0
  %235 = vmatpush.msra.mxu0 0.0
  %236 = vmatpush.msra.mxu0 0.0
  %237 = vmatpush.msra.mxu0 0.0
  %238 = vmatpush.msra.mxu0 0.0
  %239 = vmatpush.msra.mxu0 0.0
  %240 = vmatpush.msra.mxu0 %v32
  %241 = vmatpush.msra.mxu0 %v31
  %242 = vmatpush.msra.mxu0 %v30
  %243 = vmatpush.msra.mxu0 %v29
  %244 = vmatpush.msra.mxu0 %v28
  %245 = vmatpush.msra.mxu0 %v27
  %246 = vmatpush.msra.mxu0 %v26
  %247 = vmatpush.msra.mxu0 %v25
  %248 = vmatpush.msra.mxu0 %v24
  %249 = vmatpush.msra.mxu0 %v23
  %250 = vmatmul.f32.gmra.mxu0 %v88
  %v251 = vpop.f32.mrf.mxu0
  %v252 = vadd.f32 %v84, %v251
  %253 = vmatmul.f32.gmra.mxu0 %v91
  %v254 = vpop.f32.mrf.mxu0
  %v255 = vadd.f32 %v84, %v254
  %256 = vmatmul.f32.gmra.mxu0 %v94
  %v257 = vpop.f32.mrf.mxu0
  %v258 = vadd.f32 %v84, %v257
  %259 = vmatmul.f32.gmra.mxu0 %v97
  %v260 = vpop.f32.mrf.mxu0
  %v261 = vadd.f32 %v84, %v260
  %262 = vmatmul.f32.gmra.mxu0 %v100
  %v263 = vpop.f32.mrf.mxu0
  %v264 = vadd.f32 %v84, %v263
  %265 = vmatmul.f32.gmra.mxu0 %v103
  %v266 = vpop.f32.mrf.mxu0
  %v267 = vadd.f32 %v84, %v266
  %268 = vmatmul.f32.gmra.mxu0 %v106
  %v269 = vpop.f32.mrf.mxu0
  %v270 = vadd.f32 %v84, %v269
  %271 = vmatmul.f32.gmra.mxu0 %v109
  %v272 = vpop.f32.mrf.mxu0
  %v273 = vadd.f32 %v84, %v272
  %274 = vmatmul.f32.gmra.mxu0 %v112
  %v275 = vpop.f32.mrf.mxu0
  %v276 = vadd.f32 %v84, %v275
  %277 = vmatmul.f32.gmra.mxu0 %v115
  %v278 = vpop.f32.mrf.mxu0
  %v279 = vadd.f32 %v84, %v278
  %280 = vmatmul.f32.gmra.mxu0 %v118
  %v281 = vpop.f32.mrf.mxu0
  %v282 = vadd.f32 %v84, %v281
  %283 = vmatmul.f32.gmra.mxu0 %v121
  %v284 = vpop.f32.mrf.mxu0
  %v285 = vadd.f32 %v84, %v284
  %286 = vmatmul.f32.gmra.mxu0 %v124
  %v287 = vpop.f32.mrf.mxu0
  %v288 = vadd.f32 %v84, %v287
  %289 = vmatmul.f32.gmra.mxu0 %v127
  %v290 = vpop.f32.mrf.mxu0
  %v291 = vadd.f32 %v84, %v290
  %292 = vmatmul.f32.gmra.mxu0 %v130
  %v293 = vpop.f32.mrf.mxu0
  %v294 = vadd.f32 %v84, %v293
  %295 = vmatmul.f32.gmra.mxu0 %v133
  %v296 = vpop.f32.mrf.mxu0
  %v297 = vadd.f32 %v84, %v296
  %298 = vmatmul.f32.gmra.mxu0 %v136
  %v299 = vpop.f32.mrf.mxu0
  %v300 = vadd.f32 %v84, %v299
  %301 = vmatmul.f32.gmra.mxu0 %v139
  %v302 = vpop.f32.mrf.mxu0
  %v303 = vadd.f32 %v84, %v302
  %304 = vmatmul.f32.gmra.mxu0 %v142
  %v305 = vpop.f32.mrf.mxu0
  %v306 = vadd.f32 %v84, %v305
  %307 = vmatmul.f32.gmra.mxu0 %v145
  %v308 = vpop.f32.mrf.mxu0
  %v309 = vadd.f32 %v84, %v308
  %310 = vmatmul.f32.gmra.mxu0 %v148
  %v311 = vpop.f32.mrf.mxu0
  %v312 = vadd.f32 %v84, %v311
  %313 = vmatmul.f32.gmra.mxu0 %v151
  %v314 = vpop.f32.mrf.mxu0
  %v315 = vadd.f32 %v84, %v314
  %316 = vmatmul.f32.gmra.mxu0 %v154
  %v317 = vpop.f32.mrf.mxu0
  %v318 = vadd.f32 %v84, %v317
  %319 = vmatmul.f32.gmra.mxu0 %v157
  %v320 = vpop.f32.mrf.mxu0
  %v321 = vadd.f32 %v84, %v320
  %322 = vmatmul.f32.gmra.mxu0 %v160
  %v323 = vpop.f32.mrf.mxu0
  %v324 = vadd.f32 %v84, %v323
  %325 = vmatmul.f32.gmra.mxu0 %v163
  %v326 = vpop.f32.mrf.mxu0
  %v327 = vadd.f32 %v84, %v326
  %328 = vmatmul.f32.gmra.mxu0 %v166
  %v329 = vpop.f32.mrf.mxu0
  %v330 = vadd.f32 %v84, %v329
  %331 = vmatmul.f32.gmra.mxu0 %v169
  %v332 = vpop.f32.mrf.mxu0
  %v333 = vadd.f32 %v84, %v332
  %334 = vmatmul.f32.gmra.mxu0 %v172
  %v335 = vpop.f32.mrf.mxu0
  %v336 = vadd.f32 %v84, %v335
  %337 = vmatmul.f32.gmra.mxu0 %v175
  %v338 = vpop.f32.mrf.mxu0
  %v339 = vadd.f32 %v84, %v338
  %340 = vmatmul.f32.gmra.mxu0 %v178
  %v341 = vpop.f32.mrf.mxu0
  %v342 = vadd.f32 %v84, %v341
  %343 = vmatmul.f32.gmra.mxu0 %v181
  %v344 = vpop.f32.mrf.mxu0
  %v345 = vadd.f32 %v84, %v344
  %346 = vmatmul.f32.gmra.mxu0 %v184
  %v347 = vpop.f32.mrf.mxu0
  %v348 = vadd.f32 %v84, %v347
  %349 = vmatmul.f32.gmra.mxu0 %v187
  %v350 = vpop.f32.mrf.mxu0
  %v351 = vadd.f32 %v84, %v350
  %352 = vmatmul.f32.gmra.mxu0 %v190
  %v353 = vpop.f32.mrf.mxu0
  %v354 = vadd.f32 %v84, %v353
  %355 = vmatmul.f32.gmra.mxu0 %v193
  %v356 = vpop.f32.mrf.mxu0
  %v357 = vadd.f32 %v84, %v356
  %358 = vmatmul.f32.gmra.mxu0 %v196
  %v359 = vpop.f32.mrf.mxu0
  %v360 = vadd.f32 %v84, %v359
  %361 = vmatmul.f32.gmra.mxu0 %v199
  %v362 = vpop.f32.mrf.mxu0
  %v363 = vadd.f32 %v84, %v362
  %364 = vmatmul.f32.gmra.mxu0 %v202
  %v365 = vpop.f32.mrf.mxu0
  %v366 = vadd.f32 %v84, %v365
  %367 = vmatmul.f32.gmra.mxu0 %v205
  %v368 = vpop.f32.mrf.mxu0
  %v369 = vadd.f32 %v84, %v368
  %370 = vmatmul.f32.gmra.mxu0 %v208
  %v371 = vpop.f32.mrf.mxu0
  %v372 = vadd.f32 %v84, %v371
  %373 = vmatmul.f32.gmra.mxu0 %v211
  %v374 = vpop.f32.mrf.mxu0
  %v375 = vadd.f32 %v84, %v374
  %376 = vmatmul.f32.gmra.mxu0 %v214
  %v377 = vpop.f32.mrf.mxu0
  %v378 = vadd.f32 %v84, %v377
  %379 = vmatmul.f32.gmra.mxu0 %v217
  %v380 = vpop.f32.mrf.mxu0
  %v381 = vadd.f32 %v84, %v380
  %382 = vmatmul.f32.gmra.mxu0 %v220
  %v383 = vpop.f32.mrf.mxu0
  %v384 = vadd.f32 %v84, %v383
  %385 = vmatmul.f32.gmra.mxu0 %v223
  %v386 = vpop.f32.mrf.mxu0
  %v387 = vadd.f32 %v84, %v386
  %388 = vmatmul.f32.gmra.mxu0 %v226
  %v389 = vpop.f32.mrf.mxu0
  %v390 = vadd.f32 %v84, %v389
  %391 = vmatmul.f32.gmra.mxu0 %v229
  %v392 = vpop.f32.mrf.mxu0
  %v393 = vadd.f32 %v84, %v392
  %394 = vmatmul.f32.gmra.mxu0 %v232
  %v395 = vpop.f32.mrf.mxu0
  %v396 = vadd.f32 %v84, %v395
  %397 = vdwg.mxu0
  %v398 = vmax.f32 %v252, 0.0
  %v399 = vmax.f32 %v255, 0.0
  %v400 = vmax.f32 %v258, 0.0
  %v401 = vmax.f32 %v261, 0.0
  %v402 = vmax.f32 %v264, 0.0
  %v403 = vmax.f32 %v267, 0.0
  %v404 = vmax.f32 %v270, 0.0
  %v405 = vmax.f32 %v273, 0.0
  %v406 = vmax.f32 %v276, 0.0
  %v407 = vmax.f32 %v279, 0.0
  %v408 = vmax.f32 %v282, 0.0
  %v409 = vmax.f32 %v285, 0.0
  %v410 = vmax.f32 %v288, 0.0
  %v411 = vmax.f32 %v291, 0.0
  %v412 = vmax.f32 %v294, 0.0
  %v413 = vmax.f32 %v297, 0.0
  %v414 = vmax.f32 %v300, 0.0
  %v415 = vmax.f32 %v303, 0.0
  %v416 = vmax.f32 %v306, 0.0
  %v417 = vmax.f32 %v309, 0.0
  %v418 = vmax.f32 %v312, 0.0
  %v419 = vmax.f32 %v315, 0.0
  %v420 = vmax.f32 %v318, 0.0
  %v421 = vmax.f32 %v321, 0.0
  %v422 = vmax.f32 %v324, 0.0
  %v423 = vmax.f32 %v327, 0.0
  %v424 = vmax.f32 %v330, 0.0
  %v425 = vmax.f32 %v333, 0.0
  %v426 = vmax.f32 %v336, 0.0
  %v427 = vmax.f32 %v339, 0.0
  %v428 = vmax.f32 %v342, 0.0
  %v429 = vmax.f32 %v345, 0.0
  %v430 = vmax.f32 %v348, 0.0
  %v431 = vmax.f32 %v351, 0.0
  %v432 = vmax.f32 %v354, 0.0
  %v433 = vmax.f32 %v357, 0.0
  %v434 = vmax.f32 %v360, 0.0
  %v435 = vmax.f32 %v363, 0.0
  %v436 = vmax.f32 %v366, 0.0
  %v437 = vmax.f32 %v369, 0.0
  %v438 = vmax.f32 %v372, 0.0
  %v439 = vmax.f32 %v375, 0.0
  %v440 = vmax.f32 %v378, 0.0
  %v441 = vmax.f32 %v381, 0.0
  %v442 = vmax.f32 %v384, 0.0
  %v443 = vmax.f32 %v387, 0.0
  %v444 = vmax.f32 %v390, 0.0
  %v445 = vmax.f32 %v393, 0.0
  %v446 = vmax.f32 %v396, 0.0
  %v447 = vld [vmem:[%s1] sm:$0xff]
  %v448 = vld [vmem:[%s1 + $0x8] sm:$0xff]
  %v449 = vld [vmem:[%s1 + $0x10] sm:$0xff]
  %v450 = vld [vmem:[%s1 + $0x18] sm:$0xff]
  %v451 = vld [vmem:[%s1 + $0x20] sm:$0xff]
  %v452 = vld [vmem:[%s1 + $0x28] sm:$0xff]
  %v453 = vld [vmem:[%s1 + $0x30] sm:$0xff]
  %v454 = vld [vmem:[%s1 + $0x38] sm:$0xff]
  %v455 = vld [vmem:[%s1 + $0x40] sm:$0xff]
  %v456 = vld [vmem:[%s1 + $0x48] sm:$0xff]
  %v457 = vld [vmem:[%s1 + $0x50] sm:$0xff]
  %v458 = vld [vmem:[%s1 + $0x58] sm:$0xff]
  %v459 = vld [vmem:[%s1 + $0x60] sm:$0xff]
  %v460 = vld [vmem:[%s1 + $0x68] sm:$0xff]
  %v461 = vld [vmem:[%s1 + $0x70] sm:$0xff]
  %v462 = vld [vmem:[%s1 + $0x78] sm:$0xff]
  %v463 = vld [vmem:[%s1 + $0x80] sm:$0xff]
  %v464 = vld [vmem:[%s1 + $0x88] sm:$0xff]
  %v465 = vld [vmem:[%s1 + $0x90] sm:$0xff]
  %v466 = vld [vmem:[%s1 + $0x98] sm:$0xff]
  %v467 = vld [vmem:[%s1 + $0xa0] sm:$0xff]
  %v468 = vld [vmem:[%s1 + $0xa8] sm:$0xff]
  %v469 = vld [vmem:[%s1 + $0xb0] sm:$0xff]
  %v470 = vld [vmem:[%s1 + $0xb8] sm:$0xff]
  %v471 = vld [vmem:[%s1 + $0xc0] sm:$0xff]
  %v472 = vld [vmem:[%s1 + $0xc8] sm:$0xff]
  %v473 = vld [vmem:[%s1 + $0xd0] sm:$0xff]
  %v474 = vld [vmem:[%s1 + $0xd8] sm:$0xff]
  %v475 = vld [vmem:[%s1 + $0xe0] sm:$0xff]
  %v476 = vld [vmem:[%s1 + $0xe8] sm:$0xff]
  %v477 = vld [vmem:[%s1 + $0xf0] sm:$0xff]
  %v478 = vld [vmem:[%s1 + $0xf8] sm:$0xff]
  %v479 = vld [vmem:[%s1 + $0x100] sm:$0xff]
  %v480 = vld [vmem:[%s1 + $0x108] sm:$0xff]
  %v481 = vld [vmem:[%s1 + $0x110] sm:$0xff]
  %v482 = vld [vmem:[%s1 + $0x118] sm:$0xff]
  %v483 = vld [vmem:[%s1 + $0x120] sm:$0xff]
  %v484 = vld [vmem:[%s1 + $0x128] sm:$0xff]
  %v485 = vld [vmem:[%s1 + $0x130] sm:$0xff]
  %v486 = vld [vmem:[%s1 + $0x138] sm:$0xff]
  %v487 = vld [vmem:[%s1 + $0x140] sm:$0xff]
  %v488 = vld [vmem:[%s1 + $0x148] sm:$0xff]
  %v489 = vld [vmem:[%s1 + $0x150] sm:$0xff]
  %v490 = vld [vmem:[%s1 + $0x158] sm:$0xff]
  %v491 = vld [vmem:[%s1 + $0x160] sm:$0xff]
  %v492 = vld [vmem:[%s1 + $0x168] sm:$0xff]
  %v493 = vld [vmem:[%s1 + $0x170] sm:$0xff]
  %v494 = vld [vmem:[%s1 + $0x178] sm:$0xff]
  %v495 = vld [vmem:[%s1 + $0x180] sm:$0xff]
  %v497 = vsel %vm86, %v447, 0
  %v500 = vsel %vm86, %v448, 0
  %v503 = vsel %vm86, %v449, 0
  %v506 = vsel %vm86, %v450, 0
  %v509 = vsel %vm86, %v451, 0
  %v512 = vsel %vm86, %v452, 0
  %v515 = vsel %vm86, %v453, 0
  %v518 = vsel %vm86, %v454, 0
  %v521 = vsel %vm86, %v455, 0
  %v524 = vsel %vm86, %v456, 0
  %v527 = vsel %vm86, %v457, 0
  %v530 = vsel %vm86, %v458, 0
  %v533 = vsel %vm86, %v459, 0
  %v536 = vsel %vm86, %v460, 0
  %v539 = vsel %vm86, %v461, 0
  %v542 = vsel %vm86, %v462, 0
  %v545 = vsel %vm86, %v463, 0
  %v548 = vsel %vm86, %v464, 0
  %v551 = vsel %vm86, %v465, 0
  %v554 = vsel %vm86, %v466, 0
  %v557 = vsel %vm86, %v467, 0
  %v560 = vsel %vm86, %v468, 0
  %v563 = vsel %vm86, %v469, 0
  %v566 = vsel %vm86, %v470, 0
  %v569 = vsel %vm86, %v471, 0
  %v572 = vsel %vm86, %v472, 0
  %v575 = vsel %vm86, %v473, 0
  %v578 = vsel %vm86, %v474, 0
  %v581 = vsel %vm86, %v475, 0
  %v584 = vsel %vm86, %v476, 0
  %v587 = vsel %vm86, %v477, 0
  %v590 = vsel %vm86, %v478, 0
  %v593 = vsel %vm86, %v479, 0
  %v596 = vsel %vm86, %v480, 0
  %v599 = vsel %vm86, %v481, 0
  %v602 = vsel %vm86, %v482, 0
  %v605 = vsel %vm86, %v483, 0
  %v608 = vsel %vm86, %v484, 0
  %v611 = vsel %vm86, %v485, 0
  %v614 = vsel %vm86, %v486, 0
  %v617 = vsel %vm86, %v487, 0
  %v620 = vsel %vm86, %v488, 0
  %v623 = vsel %vm86, %v489, 0
  %v626 = vsel %vm86, %v490, 0
  %v629 = vsel %vm86, %v491, 0
  %v632 = vsel %vm86, %v492, 0
  %v635 = vsel %vm86, %v493, 0
  %v638 = vsel %vm86, %v494, 0
  %v641 = vsel %vm86, %v495, 0
  %643 = vmatpush.msra.mxu0 0.0
  %644 = vmatpush.msra.mxu0 0.0
  %645 = vmatpush.msra.mxu0 0.0
  %646 = vmatpush.msra.mxu0 0.0
  %647 = vmatpush.msra.mxu0 0.0
  %648 = vmatpush.msra.mxu0 0.0
  %649 = vmatpush.msra.mxu0 %v32
  %650 = vmatpush.msra.mxu0 %v31
  %651 = vmatpush.msra.mxu0 %v30
  %652 = vmatpush.msra.mxu0 %v29
  %653 = vmatpush.msra.mxu0 %v28
  %654 = vmatpush.msra.mxu0 %v27
  %655 = vmatpush.msra.mxu0 %v26
  %656 = vmatpush.msra.mxu0 %v25
  %657 = vmatpush.msra.mxu0 %v24
  %658 = vmatpush.msra.mxu0 %v23
  %659 = vmatmul.f32.gmra.mxu0 %v497
  %v660 = vpop.f32.mrf.mxu0
  %v661 = vadd.f32 %v84, %v660
  %662 = vmatmul.f32.gmra.mxu0 %v500
  %v663 = vpop.f32.mrf.mxu0
  %v664 = vadd.f32 %v84, %v663
  %665 = vmatmul.f32.gmra.mxu0 %v503
  %v666 = vpop.f32.mrf.mxu0
  %v667 = vadd.f32 %v84, %v666
  %668 = vmatmul.f32.gmra.mxu0 %v506
  %v669 = vpop.f32.mrf.mxu0
  %v670 = vadd.f32 %v84, %v669
  %671 = vmatmul.f32.gmra.mxu0 %v509
  %v672 = vpop.f32.mrf.mxu0
  %v673 = vadd.f32 %v84, %v672
  %674 = vmatmul.f32.gmra.mxu0 %v512
  %v675 = vpop.f32.mrf.mxu0
  %v676 = vadd.f32 %v84, %v675
  %677 = vmatmul.f32.gmra.mxu0 %v515
  %v678 = vpop.f32.mrf.mxu0
  %v679 = vadd.f32 %v84, %v678
  %680 = vmatmul.f32.gmra.mxu0 %v518
  %v681 = vpop.f32.mrf.mxu0
  %v682 = vadd.f32 %v84, %v681
  %683 = vmatmul.f32.gmra.mxu0 %v521
  %v684 = vpop.f32.mrf.mxu0
  %v685 = vadd.f32 %v84, %v684
  %686 = vmatmul.f32.gmra.mxu0 %v524
  %v687 = vpop.f32.mrf.mxu0
  %v688 = vadd.f32 %v84, %v687
  %689 = vmatmul.f32.gmra.mxu0 %v527
  %v690 = vpop.f32.mrf.mxu0
  %v691 = vadd.f32 %v84, %v690
  %692 = vmatmul.f32.gmra.mxu0 %v530
  %v693 = vpop.f32.mrf.mxu0
  %v694 = vadd.f32 %v84, %v693
  %695 = vmatmul.f32.gmra.mxu0 %v533
  %v696 = vpop.f32.mrf.mxu0
  %v697 = vadd.f32 %v84, %v696
  %698 = vmatmul.f32.gmra.mxu0 %v536
  %v699 = vpop.f32.mrf.mxu0
  %v700 = vadd.f32 %v84, %v699
  %701 = vmatmul.f32.gmra.mxu0 %v539
  %v702 = vpop.f32.mrf.mxu0
  %v703 = vadd.f32 %v84, %v702
  %704 = vmatmul.f32.gmra.mxu0 %v542
  %v705 = vpop.f32.mrf.mxu0
  %v706 = vadd.f32 %v84, %v705
  %707 = vmatmul.f32.gmra.mxu0 %v545
  %v708 = vpop.f32.mrf.mxu0
  %v709 = vadd.f32 %v84, %v708
  %710 = vmatmul.f32.gmra.mxu0 %v548
  %v711 = vpop.f32.mrf.mxu0
  %v712 = vadd.f32 %v84, %v711
  %713 = vmatmul.f32.gmra.mxu0 %v551
  %v714 = vpop.f32.mrf.mxu0
  %v715 = vadd.f32 %v84, %v714
  %716 = vmatmul.f32.gmra.mxu0 %v554
  %v717 = vpop.f32.mrf.mxu0
  %v718 = vadd.f32 %v84, %v717
  %719 = vmatmul.f32.gmra.mxu0 %v557
  %v720 = vpop.f32.mrf.mxu0
  %v721 = vadd.f32 %v84, %v720
  %722 = vmatmul.f32.gmra.mxu0 %v560
  %v723 = vpop.f32.mrf.mxu0
  %v724 = vadd.f32 %v84, %v723
  %725 = vmatmul.f32.gmra.mxu0 %v563
  %v726 = vpop.f32.mrf.mxu0
  %v727 = vadd.f32 %v84, %v726
  %728 = vmatmul.f32.gmra.mxu0 %v566
  %v729 = vpop.f32.mrf.mxu0
  %v730 = vadd.f32 %v84, %v729
  %731 = vmatmul.f32.gmra.mxu0 %v569
  %v732 = vpop.f32.mrf.mxu0
  %v733 = vadd.f32 %v84, %v732
  %734 = vmatmul.f32.gmra.mxu0 %v572
  %v735 = vpop.f32.mrf.mxu0
  %v736 = vadd.f32 %v84, %v735
  %737 = vmatmul.f32.gmra.mxu0 %v575
  %v738 = vpop.f32.mrf.mxu0
  %v739 = vadd.f32 %v84, %v738
  %740 = vmatmul.f32.gmra.mxu0 %v578
  %v741 = vpop.f32.mrf.mxu0
  %v742 = vadd.f32 %v84, %v741
  %743 = vmatmul.f32.gmra.mxu0 %v581
  %v744 = vpop.f32.mrf.mxu0
  %v745 = vadd.f32 %v84, %v744
  %746 = vmatmul.f32.gmra.mxu0 %v584
  %v747 = vpop.f32.mrf.mxu0
  %v748 = vadd.f32 %v84, %v747
  %749 = vmatmul.f32.gmra.mxu0 %v587
  %v750 = vpop.f32.mrf.mxu0
  %v751 = vadd.f32 %v84, %v750
  %752 = vmatmul.f32.gmra.mxu0 %v590
  %v753 = vpop.f32.mrf.mxu0
  %v754 = vadd.f32 %v84, %v753
  %755 = vmatmul.f32.gmra.mxu0 %v593
  %v756 = vpop.f32.mrf.mxu0
  %v757 = vadd.f32 %v84, %v756
  %758 = vmatmul.f32.gmra.mxu0 %v596
  %v759 = vpop.f32.mrf.mxu0
  %v760 = vadd.f32 %v84, %v759
  %761 = vmatmul.f32.gmra.mxu0 %v599
  %v762 = vpop.f32.mrf.mxu0
  %v763 = vadd.f32 %v84, %v762
  %764 = vmatmul.f32.gmra.mxu0 %v602
  %v765 = vpop.f32.mrf.mxu0
  %v766 = vadd.f32 %v84, %v765
  %767 = vmatmul.f32.gmra.mxu0 %v605
  %v768 = vpop.f32.mrf.mxu0
  %v769 = vadd.f32 %v84, %v768
  %770 = vmatmul.f32.gmra.mxu0 %v608
  %v771 = vpop.f32.mrf.mxu0
  %v772 = vadd.f32 %v84, %v771
  %773 = vmatmul.f32.gmra.mxu0 %v611
  %v774 = vpop.f32.mrf.mxu0
  %v775 = vadd.f32 %v84, %v774
  %776 = vmatmul.f32.gmra.mxu0 %v614
  %v777 = vpop.f32.mrf.mxu0
  %v778 = vadd.f32 %v84, %v777
  %779 = vmatmul.f32.gmra.mxu0 %v617
  %v780 = vpop.f32.mrf.mxu0
  %v781 = vadd.f32 %v84, %v780
  %782 = vmatmul.f32.gmra.mxu0 %v620
  %v783 = vpop.f32.mrf.mxu0
  %v784 = vadd.f32 %v84, %v783
  %785 = vmatmul.f32.gmra.mxu0 %v623
  %v786 = vpop.f32.mrf.mxu0
  %v787 = vadd.f32 %v84, %v786
  %788 = vmatmul.f32.gmra.mxu0 %v626
  %v789 = vpop.f32.mrf.mxu0
  %v790 = vadd.f32 %v84, %v789
  %791 = vmatmul.f32.gmra.mxu0 %v629
  %v792 = vpop.f32.mrf.mxu0
  %v793 = vadd.f32 %v84, %v792
  %794 = vmatmul.f32.gmra.mxu0 %v632
  %v795 = vpop.f32.mrf.mxu0
  %v796 = vadd.f32 %v84, %v795
  %797 = vmatmul.f32.gmra.mxu0 %v635
  %v798 = vpop.f32.mrf.mxu0
  %v799 = vadd.f32 %v84, %v798
  %800 = vmatmul.f32.gmra.mxu0 %v638
  %v801 = vpop.f32.mrf.mxu0
  %v802 = vadd.f32 %v84, %v801
  %803 = vmatmul.f32.gmra.mxu0 %v641
  %v804 = vpop.f32.mrf.mxu0
  %v805 = vadd.f32 %v84, %v804
  %806 = vdwg.mxu0
  %v807 = vmax.f32 %v661, 0.0
  %v808 = vmax.f32 %v664, 0.0
  %v809 = vmax.f32 %v667, 0.0
  %v810 = vmax.f32 %v670, 0.0
  %v811 = vmax.f32 %v673, 0.0
  %v812 = vmax.f32 %v676, 0.0
  %v813 = vmax.f32 %v679, 0.0
  %v814 = vmax.f32 %v682, 0.0
  %v815 = vmax.f32 %v685, 0.0
  %v816 = vmax.f32 %v688, 0.0
  %v817 = vmax.f32 %v691, 0.0
  %v818 = vmax.f32 %v694, 0.0
  %v819 = vmax.f32 %v697, 0.0
  %v820 = vmax.f32 %v700, 0.0
  %v821 = vmax.f32 %v703, 0.0
  %v822 = vmax.f32 %v706, 0.0
  %v823 = vmax.f32 %v709, 0.0
  %v824 = vmax.f32 %v712, 0.0
  %v825 = vmax.f32 %v715, 0.0
  %v826 = vmax.f32 %v718, 0.0
  %v827 = vmax.f32 %v721, 0.0
  %v828 = vmax.f32 %v724, 0.0
  %v829 = vmax.f32 %v727, 0.0
  %v830 = vmax.f32 %v730, 0.0
  %v831 = vmax.f32 %v733, 0.0
  %v832 = vmax.f32 %v736, 0.0
  %v833 = vmax.f32 %v739, 0.0
  %v834 = vmax.f32 %v742, 0.0
  %v835 = vmax.f32 %v745, 0.0
  %v836 = vmax.f32 %v748, 0.0
  %v837 = vmax.f32 %v751, 0.0
  %v838 = vmax.f32 %v754, 0.0
  %v839 = vmax.f32 %v757, 0.0
  %v840 = vmax.f32 %v760, 0.0
  %v841 = vmax.f32 %v763, 0.0
  %v842 = vmax.f32 %v766, 0.0
  %v843 = vmax.f32 %v769, 0.0
  %v844 = vmax.f32 %v772, 0.0
  %v845 = vmax.f32 %v775, 0.0
  %v846 = vmax.f32 %v778, 0.0
  %v847 = vmax.f32 %v781, 0.0
  %v848 = vmax.f32 %v784, 0.0
  %v849 = vmax.f32 %v787, 0.0
  %v850 = vmax.f32 %v790, 0.0
  %v851 = vmax.f32 %v793, 0.0
  %v852 = vmax.f32 %v796, 0.0
  %v853 = vmax.f32 %v799, 0.0
  %v854 = vmax.f32 %v802, 0.0
  %v855 = vmax.f32 %v805, 0.0
  %v856 = vmax.f32 %v398, %v807
  %v857 = vmax.f32 %v399, %v808
  %v858 = vmax.f32 %v400, %v809
  %v859 = vmax.f32 %v401, %v810
  %v860 = vmax.f32 %v402, %v811
  %v861 = vmax.f32 %v403, %v812
  %v862 = vmax.f32 %v404, %v813
  %v863 = vmax.f32 %v405, %v814
  %v864 = vmax.f32 %v406, %v815
  %v865 = vmax.f32 %v407, %v816
  %v866 = vmax.f32 %v408, %v817
  %v867 = vmax.f32 %v409, %v818
  %v868 = vmax.f32 %v410, %v819
  %v869 = vmax.f32 %v411, %v820
  %v870 = vmax.f32 %v412, %v821
  %v871 = vmax.f32 %v413, %v822
  %v872 = vmax.f32 %v414, %v823
  %v873 = vmax.f32 %v415, %v824
  %v874 = vmax.f32 %v416, %v825
  %v875 = vmax.f32 %v417, %v826
  %v876 = vmax.f32 %v418, %v827
  %v877 = vmax.f32 %v419, %v828
  %v878 = vmax.f32 %v420, %v829
  %v879 = vmax.f32 %v421, %v830
  %v880 = vmax.f32 %v422, %v831
  %v881 = vmax.f32 %v423, %v832
  %v882 = vmax.f32 %v424, %v833
  %v883 = vmax.f32 %v425, %v834
  %v884 = vmax.f32 %v426, %v835
  %v885 = vmax.f32 %v427, %v836
  %v886 = vmax.f32 %v428, %v837
  %v887 = vmax.f32 %v429, %v838
  %v888 = vmax.f32 %v430, %v839
  %v889 = vmax.f32 %v431, %v840
  %v890 = vmax.f32 %v432, %v841
  %v891 = vmax.f32 %v433, %v842
  %v892 = vmax.f32 %v434, %v843
  %v893 = vmax.f32 %v435, %v844
  %v894 = vmax.f32 %v436, %v845
  %v895 = vmax.f32 %v437, %v846
  %v896 = vmax.f32 %v438, %v847
  %v897 = vmax.f32 %v439, %v848
  %v898 = vmax.f32 %v440, %v849
  %v899 = vmax.f32 %v441, %v850
  %v900 = vmax.f32 %v442, %v851
  %v901 = vmax.f32 %v443, %v852
  %v902 = vmax.f32 %v444, %v853
  %v903 = vmax.f32 %v445, %v854
  %v904 = vmax.f32 %v446, %v855
  %v905 = vld [vmem:[%s2] sm:$0xff]
  %v906 = vld [vmem:[%s2 + $0x8] sm:$0xff]
  %v907 = vld [vmem:[%s2 + $0x10] sm:$0xff]
  %v908 = vld [vmem:[%s2 + $0x18] sm:$0xff]
  %v909 = vld [vmem:[%s2 + $0x20] sm:$0xff]
  %v910 = vld [vmem:[%s2 + $0x28] sm:$0xff]
  %v911 = vld [vmem:[%s2 + $0x30] sm:$0xff]
  %v912 = vld [vmem:[%s2 + $0x38] sm:$0xff]
  %v913 = vld [vmem:[%s2 + $0x40] sm:$0xff]
  %v914 = vld [vmem:[%s2 + $0x48] sm:$0xff]
  %v915 = vld [vmem:[%s2 + $0x50] sm:$0xff]
  %v916 = vld [vmem:[%s2 + $0x58] sm:$0xff]
  %v917 = vld [vmem:[%s2 + $0x60] sm:$0xff]
  %v918 = vld [vmem:[%s2 + $0x68] sm:$0xff]
  %v919 = vld [vmem:[%s2 + $0x70] sm:$0xff]
  %v920 = vld [vmem:[%s2 + $0x78] sm:$0xff]
  %v921 = vld [vmem:[%s2 + $0x80] sm:$0xff]
  %v922 = vld [vmem:[%s2 + $0x88] sm:$0xff]
  %v923 = vld [vmem:[%s2 + $0x90] sm:$0xff]
  %v924 = vld [vmem:[%s2 + $0x98] sm:$0xff]
  %v925 = vld [vmem:[%s2 + $0xa0] sm:$0xff]
  %v926 = vld [vmem:[%s2 + $0xa8] sm:$0xff]
  %v927 = vld [vmem:[%s2 + $0xb0] sm:$0xff]
  %v928 = vld [vmem:[%s2 + $0xb8] sm:$0xff]
  %v929 = vld [vmem:[%s2 + $0xc0] sm:$0xff]
  %v930 = vld [vmem:[%s2 + $0xc8] sm:$0xff]
  %v931 = vld [vmem:[%s2 + $0xd0] sm:$0xff]
  %v932 = vld [vmem:[%s2 + $0xd8] sm:$0xff]
  %v933 = vld [vmem:[%s2 + $0xe0] sm:$0xff]
  %v934 = vld [vmem:[%s2 + $0xe8] sm:$0xff]
  %v935 = vld [vmem:[%s2 + $0xf0] sm:$0xff]
  %v936 = vld [vmem:[%s2 + $0xf8] sm:$0xff]
  %v937 = vld [vmem:[%s2 + $0x100] sm:$0xff]
  %v938 = vld [vmem:[%s2 + $0x108] sm:$0xff]
  %v939 = vld [vmem:[%s2 + $0x110] sm:$0xff]
  %v940 = vld [vmem:[%s2 + $0x118] sm:$0xff]
  %v941 = vld [vmem:[%s2 + $0x120] sm:$0xff]
  %v942 = vld [vmem:[%s2 + $0x128] sm:$0xff]
  %v943 = vld [vmem:[%s2 + $0x130] sm:$0xff]
  %v944 = vld [vmem:[%s2 + $0x138] sm:$0xff]
  %v945 = vld [vmem:[%s2 + $0x140] sm:$0xff]
  %v946 = vld [vmem:[%s2 + $0x148] sm:$0xff]
  %v947 = vld [vmem:[%s2 + $0x150] sm:$0xff]
  %v948 = vld [vmem:[%s2 + $0x158] sm:$0xff]
  %v949 = vld [vmem:[%s2 + $0x160] sm:$0xff]
  %v950 = vld [vmem:[%s2 + $0x168] sm:$0xff]
  %v951 = vld [vmem:[%s2 + $0x170] sm:$0xff]
  %v952 = vld [vmem:[%s2 + $0x178] sm:$0xff]
  %v953 = vld [vmem:[%s2 + $0x180] sm:$0xff]
  %v955 = vsel %vm86, %v905, 0
  %v958 = vsel %vm86, %v906, 0
  %v961 = vsel %vm86, %v907, 0
  %v964 = vsel %vm86, %v908, 0
  %v967 = vsel %vm86, %v909, 0
  %v970 = vsel %vm86, %v910, 0
  %v973 = vsel %vm86, %v911, 0
  %v976 = vsel %vm86, %v912, 0
  %v979 = vsel %vm86, %v913, 0
  %v982 = vsel %vm86, %v914, 0
  %v985 = vsel %vm86, %v915, 0
  %v988 = vsel %vm86, %v916, 0
  %v991 = vsel %vm86, %v917, 0
  %v994 = vsel %vm86, %v918, 0
  %v997 = vsel %vm86, %v919, 0
  %v1000 = vsel %vm86, %v920, 0
  %v1003 = vsel %vm86, %v921, 0
  %v1006 = vsel %vm86, %v922, 0
  %v1009 = vsel %vm86, %v923, 0
  %v1012 = vsel %vm86, %v924, 0
  %v1015 = vsel %vm86, %v925, 0
  %v1018 = vsel %vm86, %v926, 0
  %v1021 = vsel %vm86, %v927, 0
  %v1024 = vsel %vm86, %v928, 0
  %v1027 = vsel %vm86, %v929, 0
  %v1030 = vsel %vm86, %v930, 0
  %v1033 = vsel %vm86, %v931, 0
  %v1036 = vsel %vm86, %v932, 0
  %v1039 = vsel %vm86, %v933, 0
  %v1042 = vsel %vm86, %v934, 0
  %v1045 = vsel %vm86, %v935, 0
  %v1048 = vsel %vm86, %v936, 0
  %v1051 = vsel %vm86, %v937, 0
  %v1054 = vsel %vm86, %v938, 0
  %v1057 = vsel %vm86, %v939, 0
  %v1060 = vsel %vm86, %v940, 0
  %v1063 = vsel %vm86, %v941, 0
  %v1066 = vsel %vm86, %v942, 0
  %v1069 = vsel %vm86, %v943, 0
  %v1072 = vsel %vm86, %v944, 0
  %v1075 = vsel %vm86, %v945, 0
  %v1078 = vsel %vm86, %v946, 0
  %v1081 = vsel %vm86, %v947, 0
  %v1084 = vsel %vm86, %v948, 0
  %v1087 = vsel %vm86, %v949, 0
  %v1090 = vsel %vm86, %v950, 0
  %v1093 = vsel %vm86, %v951, 0
  %v1096 = vsel %vm86, %v952, 0
  %v1099 = vsel %vm86, %v953, 0
  %1101 = vmatpush.msra.mxu0 0.0
  %1102 = vmatpush.msra.mxu0 0.0
  %1103 = vmatpush.msra.mxu0 0.0
  %1104 = vmatpush.msra.mxu0 0.0
  %1105 = vmatpush.msra.mxu0 0.0
  %1106 = vmatpush.msra.mxu0 0.0
  %1107 = vmatpush.msra.mxu0 %v32
  %1108 = vmatpush.msra.mxu0 %v31
  %1109 = vmatpush.msra.mxu0 %v30
  %1110 = vmatpush.msra.mxu0 %v29
  %1111 = vmatpush.msra.mxu0 %v28
  %1112 = vmatpush.msra.mxu0 %v27
  %1113 = vmatpush.msra.mxu0 %v26
  %1114 = vmatpush.msra.mxu0 %v25
  %1115 = vmatpush.msra.mxu0 %v24
  %1116 = vmatpush.msra.mxu0 %v23
  %1117 = vmatmul.f32.gmra.mxu0 %v955
  %v1118 = vpop.f32.mrf.mxu0
  %v1119 = vadd.f32 %v84, %v1118
  %1120 = vmatmul.f32.gmra.mxu0 %v958
  %v1121 = vpop.f32.mrf.mxu0
  %v1122 = vadd.f32 %v84, %v1121
  %1123 = vmatmul.f32.gmra.mxu0 %v961
  %v1124 = vpop.f32.mrf.mxu0
  %v1125 = vadd.f32 %v84, %v1124
  %1126 = vmatmul.f32.gmra.mxu0 %v964
  %v1127 = vpop.f32.mrf.mxu0
  %v1128 = vadd.f32 %v84, %v1127
  %1129 = vmatmul.f32.gmra.mxu0 %v967
  %v1130 = vpop.f32.mrf.mxu0
  %v1131 = vadd.f32 %v84, %v1130
  %1132 = vmatmul.f32.gmra.mxu0 %v970
  %v1133 = vpop.f32.mrf.mxu0
  %v1134 = vadd.f32 %v84, %v1133
  %1135 = vmatmul.f32.gmra.mxu0 %v973
  %v1136 = vpop.f32.mrf.mxu0
  %v1137 = vadd.f32 %v84, %v1136
  %1138 = vmatmul.f32.gmra.mxu0 %v976
  %v1139 = vpop.f32.mrf.mxu0
  %v1140 = vadd.f32 %v84, %v1139
  %1141 = vmatmul.f32.gmra.mxu0 %v979
  %v1142 = vpop.f32.mrf.mxu0
  %v1143 = vadd.f32 %v84, %v1142
  %1144 = vmatmul.f32.gmra.mxu0 %v982
  %v1145 = vpop.f32.mrf.mxu0
  %v1146 = vadd.f32 %v84, %v1145
  %1147 = vmatmul.f32.gmra.mxu0 %v985
  %v1148 = vpop.f32.mrf.mxu0
  %v1149 = vadd.f32 %v84, %v1148
  %1150 = vmatmul.f32.gmra.mxu0 %v988
  %v1151 = vpop.f32.mrf.mxu0
  %v1152 = vadd.f32 %v84, %v1151
  %1153 = vmatmul.f32.gmra.mxu0 %v991
  %v1154 = vpop.f32.mrf.mxu0
  %v1155 = vadd.f32 %v84, %v1154
  %1156 = vmatmul.f32.gmra.mxu0 %v994
  %v1157 = vpop.f32.mrf.mxu0
  %v1158 = vadd.f32 %v84, %v1157
  %1159 = vmatmul.f32.gmra.mxu0 %v997
  %v1160 = vpop.f32.mrf.mxu0
  %v1161 = vadd.f32 %v84, %v1160
  %1162 = vmatmul.f32.gmra.mxu0 %v1000
  %v1163 = vpop.f32.mrf.mxu0
  %v1164 = vadd.f32 %v84, %v1163
  %1165 = vmatmul.f32.gmra.mxu0 %v1003
  %v1166 = vpop.f32.mrf.mxu0
  %v1167 = vadd.f32 %v84, %v1166
  %1168 = vmatmul.f32.gmra.mxu0 %v1006
  %v1169 = vpop.f32.mrf.mxu0
  %v1170 = vadd.f32 %v84, %v1169
  %1171 = vmatmul.f32.gmra.mxu0 %v1009
  %v1172 = vpop.f32.mrf.mxu0
  %v1173 = vadd.f32 %v84, %v1172
  %1174 = vmatmul.f32.gmra.mxu0 %v1012
  %v1175 = vpop.f32.mrf.mxu0
  %v1176 = vadd.f32 %v84, %v1175
  %1177 = vmatmul.f32.gmra.mxu0 %v1015
  %v1178 = vpop.f32.mrf.mxu0
  %v1179 = vadd.f32 %v84, %v1178
  %1180 = vmatmul.f32.gmra.mxu0 %v1018
  %v1181 = vpop.f32.mrf.mxu0
  %v1182 = vadd.f32 %v84, %v1181
  %1183 = vmatmul.f32.gmra.mxu0 %v1021
  %v1184 = vpop.f32.mrf.mxu0
  %v1185 = vadd.f32 %v84, %v1184
  %1186 = vmatmul.f32.gmra.mxu0 %v1024
  %v1187 = vpop.f32.mrf.mxu0
  %v1188 = vadd.f32 %v84, %v1187
  %1189 = vmatmul.f32.gmra.mxu0 %v1027
  %v1190 = vpop.f32.mrf.mxu0
  %v1191 = vadd.f32 %v84, %v1190
  %1192 = vmatmul.f32.gmra.mxu0 %v1030
  %v1193 = vpop.f32.mrf.mxu0
  %v1194 = vadd.f32 %v84, %v1193
  %1195 = vmatmul.f32.gmra.mxu0 %v1033
  %v1196 = vpop.f32.mrf.mxu0
  %v1197 = vadd.f32 %v84, %v1196
  %1198 = vmatmul.f32.gmra.mxu0 %v1036
  %v1199 = vpop.f32.mrf.mxu0
  %v1200 = vadd.f32 %v84, %v1199
  %1201 = vmatmul.f32.gmra.mxu0 %v1039
  %v1202 = vpop.f32.mrf.mxu0
  %v1203 = vadd.f32 %v84, %v1202
  %1204 = vmatmul.f32.gmra.mxu0 %v1042
  %v1205 = vpop.f32.mrf.mxu0
  %v1206 = vadd.f32 %v84, %v1205
  %1207 = vmatmul.f32.gmra.mxu0 %v1045
  %v1208 = vpop.f32.mrf.mxu0
  %v1209 = vadd.f32 %v84, %v1208
  %1210 = vmatmul.f32.gmra.mxu0 %v1048
  %v1211 = vpop.f32.mrf.mxu0
  %v1212 = vadd.f32 %v84, %v1211
  %1213 = vmatmul.f32.gmra.mxu0 %v1051
  %v1214 = vpop.f32.mrf.mxu0
  %v1215 = vadd.f32 %v84, %v1214
  %1216 = vmatmul.f32.gmra.mxu0 %v1054
  %v1217 = vpop.f32.mrf.mxu0
  %v1218 = vadd.f32 %v84, %v1217
  %1219 = vmatmul.f32.gmra.mxu0 %v1057
  %v1220 = vpop.f32.mrf.mxu0
  %v1221 = vadd.f32 %v84, %v1220
  %1222 = vmatmul.f32.gmra.mxu0 %v1060
  %v1223 = vpop.f32.mrf.mxu0
  %v1224 = vadd.f32 %v84, %v1223
  %1225 = vmatmul.f32.gmra.mxu0 %v1063
  %v1226 = vpop.f32.mrf.mxu0
  %v1227 = vadd.f32 %v84, %v1226
  %1228 = vmatmul.f32.gmra.mxu0 %v1066
  %v1229 = vpop.f32.mrf.mxu0
  %v1230 = vadd.f32 %v84, %v1229
  %1231 = vmatmul.f32.gmra.mxu0 %v1069
  %v1232 = vpop.f32.mrf.mxu0
  %v1233 = vadd.f32 %v84, %v1232
  %1234 = vmatmul.f32.gmra.mxu0 %v1072
  %v1235 = vpop.f32.mrf.mxu0
  %v1236 = vadd.f32 %v84, %v1235
  %1237 = vmatmul.f32.gmra.mxu0 %v1075
  %v1238 = vpop.f32.mrf.mxu0
  %v1239 = vadd.f32 %v84, %v1238
  %1240 = vmatmul.f32.gmra.mxu0 %v1078
  %v1241 = vpop.f32.mrf.mxu0
  %v1242 = vadd.f32 %v84, %v1241
  %1243 = vmatmul.f32.gmra.mxu0 %v1081
  %v1244 = vpop.f32.mrf.mxu0
  %v1245 = vadd.f32 %v84, %v1244
  %1246 = vmatmul.f32.gmra.mxu0 %v1084
  %v1247 = vpop.f32.mrf.mxu0
  %v1248 = vadd.f32 %v84, %v1247
  %1249 = vmatmul.f32.gmra.mxu0 %v1087
  %v1250 = vpop.f32.mrf.mxu0
  %v1251 = vadd.f32 %v84, %v1250
  %1252 = vmatmul.f32.gmra.mxu0 %v1090
  %v1253 = vpop.f32.mrf.mxu0
  %v1254 = vadd.f32 %v84, %v1253
  %1255 = vmatmul.f32.gmra.mxu0 %v1093
  %v1256 = vpop.f32.mrf.mxu0
  %v1257 = vadd.f32 %v84, %v1256
  %1258 = vmatmul.f32.gmra.mxu0 %v1096
  %v1259 = vpop.f32.mrf.mxu0
  %v1260 = vadd.f32 %v84, %v1259
  %1261 = vmatmul.f32.gmra.mxu0 %v1099
  %v1262 = vpop.f32.mrf.mxu0
  %v1263 = vadd.f32 %v84, %v1262
  %1264 = vdwg.mxu0
  %v1265 = vmax.f32 %v1119, 0.0
  %v1266 = vmax.f32 %v1122, 0.0
  %v1267 = vmax.f32 %v1125, 0.0
  %v1268 = vmax.f32 %v1128, 0.0
  %v1269 = vmax.f32 %v1131, 0.0
  %v1270 = vmax.f32 %v1134, 0.0
  %v1271 = vmax.f32 %v1137, 0.0
  %v1272 = vmax.f32 %v1140, 0.0
  %v1273 = vmax.f32 %v1143, 0.0
  %v1274 = vmax.f32 %v1146, 0.0
  %v1275 = vmax.f32 %v1149, 0.0
  %v1276 = vmax.f32 %v1152, 0.0
  %v1277 = vmax.f32 %v1155, 0.0
  %v1278 = vmax.f32 %v1158, 0.0
  %v1279 = vmax.f32 %v1161, 0.0
  %v1280 = vmax.f32 %v1164, 0.0
  %v1281 = vmax.f32 %v1167, 0.0
  %v1282 = vmax.f32 %v1170, 0.0
  %v1283 = vmax.f32 %v1173, 0.0
  %v1284 = vmax.f32 %v1176, 0.0
  %v1285 = vmax.f32 %v1179, 0.0
  %v1286 = vmax.f32 %v1182, 0.0
  %v1287 = vmax.f32 %v1185, 0.0
  %v1288 = vmax.f32 %v1188, 0.0
  %v1289 = vmax.f32 %v1191, 0.0
  %v1290 = vmax.f32 %v1194, 0.0
  %v1291 = vmax.f32 %v1197, 0.0
  %v1292 = vmax.f32 %v1200, 0.0
  %v1293 = vmax.f32 %v1203, 0.0
  %v1294 = vmax.f32 %v1206, 0.0
  %v1295 = vmax.f32 %v1209, 0.0
  %v1296 = vmax.f32 %v1212, 0.0
  %v1297 = vmax.f32 %v1215, 0.0
  %v1298 = vmax.f32 %v1218, 0.0
  %v1299 = vmax.f32 %v1221, 0.0
  %v1300 = vmax.f32 %v1224, 0.0
  %v1301 = vmax.f32 %v1227, 0.0
  %v1302 = vmax.f32 %v1230, 0.0
  %v1303 = vmax.f32 %v1233, 0.0
  %v1304 = vmax.f32 %v1236, 0.0
  %v1305 = vmax.f32 %v1239, 0.0
  %v1306 = vmax.f32 %v1242, 0.0
  %v1307 = vmax.f32 %v1245, 0.0
  %v1308 = vmax.f32 %v1248, 0.0
  %v1309 = vmax.f32 %v1251, 0.0
  %v1310 = vmax.f32 %v1254, 0.0
  %v1311 = vmax.f32 %v1257, 0.0
  %v1312 = vmax.f32 %v1260, 0.0
  %v1313 = vmax.f32 %v1263, 0.0
  %v1314 = vld [vmem:[%s3] sm:$0xff]
  %v1315 = vld [vmem:[%s3 + $0x8] sm:$0xff]
  %v1316 = vld [vmem:[%s3 + $0x10] sm:$0xff]
  %v1317 = vld [vmem:[%s3 + $0x18] sm:$0xff]
  %v1318 = vld [vmem:[%s3 + $0x20] sm:$0xff]
  %v1319 = vld [vmem:[%s3 + $0x28] sm:$0xff]
  %v1320 = vld [vmem:[%s3 + $0x30] sm:$0xff]
  %v1321 = vld [vmem:[%s3 + $0x38] sm:$0xff]
  %v1322 = vld [vmem:[%s3 + $0x40] sm:$0xff]
  %v1323 = vld [vmem:[%s3 + $0x48] sm:$0xff]
  %v1324 = vld [vmem:[%s3 + $0x50] sm:$0xff]
  %v1325 = vld [vmem:[%s3 + $0x58] sm:$0xff]
  %v1326 = vld [vmem:[%s3 + $0x60] sm:$0xff]
  %v1327 = vld [vmem:[%s3 + $0x68] sm:$0xff]
  %v1328 = vld [vmem:[%s3 + $0x70] sm:$0xff]
  %v1329 = vld [vmem:[%s3 + $0x78] sm:$0xff]
  %v1330 = vld [vmem:[%s3 + $0x80] sm:$0xff]
  %v1331 = vld [vmem:[%s3 + $0x88] sm:$0xff]
  %v1332 = vld [vmem:[%s3 + $0x90] sm:$0xff]
  %v1333 = vld [vmem:[%s3 + $0x98] sm:$0xff]
  %v1334 = vld [vmem:[%s3 + $0xa0] sm:$0xff]
  %v1335 = vld [vmem:[%s3 + $0xa8] sm:$0xff]
  %v1336 = vld [vmem:[%s3 + $0xb0] sm:$0xff]
  %v1337 = vld [vmem:[%s3 + $0xb8] sm:$0xff]
  %v1338 = vld [vmem:[%s3 + $0xc0] sm:$0xff]
  %v1339 = vld [vmem:[%s3 + $0xc8] sm:$0xff]
  %v1340 = vld [vmem:[%s3 + $0xd0] sm:$0xff]
  %v1341 = vld [vmem:[%s3 + $0xd8] sm:$0xff]
  %v1342 = vld [vmem:[%s3 + $0xe0] sm:$0xff]
  %v1343 = vld [vmem:[%s3 + $0xe8] sm:$0xff]
  %v1344 = vld [vmem:[%s3 + $0xf0] sm:$0xff]
  %v1345 = vld [vmem:[%s3 + $0xf8] sm:$0xff]
  %v1346 = vld [vmem:[%s3 + $0x100] sm:$0xff]
  %v1347 = vld [vmem:[%s3 + $0x108] sm:$0xff]
  %v1348 = vld [vmem:[%s3 + $0x110] sm:$0xff]
  %v1349 = vld [vmem:[%s3 + $0x118] sm:$0xff]
  %v1350 = vld [vmem:[%s3 + $0x120] sm:$0xff]
  %v1351 = vld [vmem:[%s3 + $0x128] sm:$0xff]
  %v1352 = vld [vmem:[%s3 + $0x130] sm:$0xff]
  %v1353 = vld [vmem:[%s3 + $0x138] sm:$0xff]
  %v1354 = vld [vmem:[%s3 + $0x140] sm:$0xff]
  %v1355 = vld [vmem:[%s3 + $0x148] sm:$0xff]
  %v1356 = vld [vmem:[%s3 + $0x150] sm:$0xff]
  %v1357 = vld [vmem:[%s3 + $0x158] sm:$0xff]
  %v1358 = vld [vmem:[%s3 + $0x160] sm:$0xff]
  %v1359 = vld [vmem:[%s3 + $0x168] sm:$0xff]
  %v1360 = vld [vmem:[%s3 + $0x170] sm:$0xff]
  %v1361 = vld [vmem:[%s3 + $0x178] sm:$0xff]
  %v1362 = vld [vmem:[%s3 + $0x180] sm:$0xff]
  %v1364 = vsel %vm86, %v1314, 0
  %v1367 = vsel %vm86, %v1315, 0
  %v1370 = vsel %vm86, %v1316, 0
  %v1373 = vsel %vm86, %v1317, 0
  %v1376 = vsel %vm86, %v1318, 0
  %v1379 = vsel %vm86, %v1319, 0
  %v1382 = vsel %vm86, %v1320, 0
  %v1385 = vsel %vm86, %v1321, 0
  %v1388 = vsel %vm86, %v1322, 0
  %v1391 = vsel %vm86, %v1323, 0
  %v1394 = vsel %vm86, %v1324, 0
  %v1397 = vsel %vm86, %v1325, 0
  %v1400 = vsel %vm86, %v1326, 0
  %v1403 = vsel %vm86, %v1327, 0
  %v1406 = vsel %vm86, %v1328, 0
  %v1409 = vsel %vm86, %v1329, 0
  %v1412 = vsel %vm86, %v1330, 0
  %v1415 = vsel %vm86, %v1331, 0
  %v1418 = vsel %vm86, %v1332, 0
  %v1421 = vsel %vm86, %v1333, 0
  %v1424 = vsel %vm86, %v1334, 0
  %v1427 = vsel %vm86, %v1335, 0
  %v1430 = vsel %vm86, %v1336, 0
  %v1433 = vsel %vm86, %v1337, 0
  %v1436 = vsel %vm86, %v1338, 0
  %v1439 = vsel %vm86, %v1339, 0
  %v1442 = vsel %vm86, %v1340, 0
  %v1445 = vsel %vm86, %v1341, 0
  %v1448 = vsel %vm86, %v1342, 0
  %v1451 = vsel %vm86, %v1343, 0
  %v1454 = vsel %vm86, %v1344, 0
  %v1457 = vsel %vm86, %v1345, 0
  %v1460 = vsel %vm86, %v1346, 0
  %v1463 = vsel %vm86, %v1347, 0
  %v1466 = vsel %vm86, %v1348, 0
  %v1469 = vsel %vm86, %v1349, 0
  %v1472 = vsel %vm86, %v1350, 0
  %v1475 = vsel %vm86, %v1351, 0
  %v1478 = vsel %vm86, %v1352, 0
  %v1481 = vsel %vm86, %v1353, 0
  %v1484 = vsel %vm86, %v1354, 0
  %v1487 = vsel %vm86, %v1355, 0
  %v1490 = vsel %vm86, %v1356, 0
  %v1493 = vsel %vm86, %v1357, 0
  %v1496 = vsel %vm86, %v1358, 0
  %v1499 = vsel %vm86, %v1359, 0
  %v1502 = vsel %vm86, %v1360, 0
  %v1505 = vsel %vm86, %v1361, 0
  %v1508 = vsel %vm86, %v1362, 0
  %1510 = vmatpush.msra.mxu0 0.0
  %1511 = vmatpush.msra.mxu0 0.0
  %1512 = vmatpush.msra.mxu0 0.0
  %1513 = vmatpush.msra.mxu0 0.0
  %1514 = vmatpush.msra.mxu0 0.0
  %1515 = vmatpush.msra.mxu0 0.0
  %1516 = vmatpush.msra.mxu0 %v32
  %1517 = vmatpush.msra.mxu0 %v31
  %1518 = vmatpush.msra.mxu0 %v30
  %1519 = vmatpush.msra.mxu0 %v29
  %1520 = vmatpush.msra.mxu0 %v28
  %1521 = vmatpush.msra.mxu0 %v27
  %1522 = vmatpush.msra.mxu0 %v26
  %1523 = vmatpush.msra.mxu0 %v25
  %1524 = vmatpush.msra.mxu0 %v24
  %1525 = vmatpush.msra.mxu0 %v23
  %1526 = vmatmul.f32.gmra.mxu0 %v1364
  %v1527 = vpop.f32.mrf.mxu0
  %v1528 = vadd.f32 %v84, %v1527
  %1529 = vmatmul.f32.gmra.mxu0 %v1367
  %v1530 = vpop.f32.mrf.mxu0
  %v1531 = vadd.f32 %v84, %v1530
  %1532 = vmatmul.f32.gmra.mxu0 %v1370
  %v1533 = vpop.f32.mrf.mxu0
  %v1534 = vadd.f32 %v84, %v1533
  %1535 = vmatmul.f32.gmra.mxu0 %v1373
  %v1536 = vpop.f32.mrf.mxu0
  %v1537 = vadd.f32 %v84, %v1536
  %1538 = vmatmul.f32.gmra.mxu0 %v1376
  %v1539 = vpop.f32.mrf.mxu0
  %v1540 = vadd.f32 %v84, %v1539
  %1541 = vmatmul.f32.gmra.mxu0 %v1379
  %v1542 = vpop.f32.mrf.mxu0
  %v1543 = vadd.f32 %v84, %v1542
  %1544 = vmatmul.f32.gmra.mxu0 %v1382
  %v1545 = vpop.f32.mrf.mxu0
  %v1546 = vadd.f32 %v84, %v1545
  %1547 = vmatmul.f32.gmra.mxu0 %v1385
  %v1548 = vpop.f32.mrf.mxu0
  %v1549 = vadd.f32 %v84, %v1548
  %1550 = vmatmul.f32.gmra.mxu0 %v1388
  %v1551 = vpop.f32.mrf.mxu0
  %v1552 = vadd.f32 %v84, %v1551
  %1553 = vmatmul.f32.gmra.mxu0 %v1391
  %v1554 = vpop.f32.mrf.mxu0
  %v1555 = vadd.f32 %v84, %v1554
  %1556 = vmatmul.f32.gmra.mxu0 %v1394
  %v1557 = vpop.f32.mrf.mxu0
  %v1558 = vadd.f32 %v84, %v1557
  %1559 = vmatmul.f32.gmra.mxu0 %v1397
  %v1560 = vpop.f32.mrf.mxu0
  %v1561 = vadd.f32 %v84, %v1560
  %1562 = vmatmul.f32.gmra.mxu0 %v1400
  %v1563 = vpop.f32.mrf.mxu0
  %v1564 = vadd.f32 %v84, %v1563
  %1565 = vmatmul.f32.gmra.mxu0 %v1403
  %v1566 = vpop.f32.mrf.mxu0
  %v1567 = vadd.f32 %v84, %v1566
  %1568 = vmatmul.f32.gmra.mxu0 %v1406
  %v1569 = vpop.f32.mrf.mxu0
  %v1570 = vadd.f32 %v84, %v1569
  %1571 = vmatmul.f32.gmra.mxu0 %v1409
  %v1572 = vpop.f32.mrf.mxu0
  %v1573 = vadd.f32 %v84, %v1572
  %1574 = vmatmul.f32.gmra.mxu0 %v1412
  %v1575 = vpop.f32.mrf.mxu0
  %v1576 = vadd.f32 %v84, %v1575
  %1577 = vmatmul.f32.gmra.mxu0 %v1415
  %v1578 = vpop.f32.mrf.mxu0
  %v1579 = vadd.f32 %v84, %v1578
  %1580 = vmatmul.f32.gmra.mxu0 %v1418
  %v1581 = vpop.f32.mrf.mxu0
  %v1582 = vadd.f32 %v84, %v1581
  %1583 = vmatmul.f32.gmra.mxu0 %v1421
  %v1584 = vpop.f32.mrf.mxu0
  %v1585 = vadd.f32 %v84, %v1584
  %1586 = vmatmul.f32.gmra.mxu0 %v1424
  %v1587 = vpop.f32.mrf.mxu0
  %v1588 = vadd.f32 %v84, %v1587
  %1589 = vmatmul.f32.gmra.mxu0 %v1427
  %v1590 = vpop.f32.mrf.mxu0
  %v1591 = vadd.f32 %v84, %v1590
  %1592 = vmatmul.f32.gmra.mxu0 %v1430
  %v1593 = vpop.f32.mrf.mxu0
  %v1594 = vadd.f32 %v84, %v1593
  %1595 = vmatmul.f32.gmra.mxu0 %v1433
  %v1596 = vpop.f32.mrf.mxu0
  %v1597 = vadd.f32 %v84, %v1596
  %1598 = vmatmul.f32.gmra.mxu0 %v1436
  %v1599 = vpop.f32.mrf.mxu0
  %v1600 = vadd.f32 %v84, %v1599
  %1601 = vmatmul.f32.gmra.mxu0 %v1439
  %v1602 = vpop.f32.mrf.mxu0
  %v1603 = vadd.f32 %v84, %v1602
  %1604 = vmatmul.f32.gmra.mxu0 %v1442
  %v1605 = vpop.f32.mrf.mxu0
  %v1606 = vadd.f32 %v84, %v1605
  %1607 = vmatmul.f32.gmra.mxu0 %v1445
  %v1608 = vpop.f32.mrf.mxu0
  %v1609 = vadd.f32 %v84, %v1608
  %1610 = vmatmul.f32.gmra.mxu0 %v1448
  %v1611 = vpop.f32.mrf.mxu0
  %v1612 = vadd.f32 %v84, %v1611
  %1613 = vmatmul.f32.gmra.mxu0 %v1451
  %v1614 = vpop.f32.mrf.mxu0
  %v1615 = vadd.f32 %v84, %v1614
  %1616 = vmatmul.f32.gmra.mxu0 %v1454
  %v1617 = vpop.f32.mrf.mxu0
  %v1618 = vadd.f32 %v84, %v1617
  %1619 = vmatmul.f32.gmra.mxu0 %v1457
  %v1620 = vpop.f32.mrf.mxu0
  %v1621 = vadd.f32 %v84, %v1620
  %1622 = vmatmul.f32.gmra.mxu0 %v1460
  %v1623 = vpop.f32.mrf.mxu0
  %v1624 = vadd.f32 %v84, %v1623
  %1625 = vmatmul.f32.gmra.mxu0 %v1463
  %v1626 = vpop.f32.mrf.mxu0
  %v1627 = vadd.f32 %v84, %v1626
  %1628 = vmatmul.f32.gmra.mxu0 %v1466
  %v1629 = vpop.f32.mrf.mxu0
  %v1630 = vadd.f32 %v84, %v1629
  %1631 = vmatmul.f32.gmra.mxu0 %v1469
  %v1632 = vpop.f32.mrf.mxu0
  %v1633 = vadd.f32 %v84, %v1632
  %1634 = vmatmul.f32.gmra.mxu0 %v1472
  %v1635 = vpop.f32.mrf.mxu0
  %v1636 = vadd.f32 %v84, %v1635
  %1637 = vmatmul.f32.gmra.mxu0 %v1475
  %v1638 = vpop.f32.mrf.mxu0
  %v1639 = vadd.f32 %v84, %v1638
  %1640 = vmatmul.f32.gmra.mxu0 %v1478
  %v1641 = vpop.f32.mrf.mxu0
  %v1642 = vadd.f32 %v84, %v1641
  %1643 = vmatmul.f32.gmra.mxu0 %v1481
  %v1644 = vpop.f32.mrf.mxu0
  %v1645 = vadd.f32 %v84, %v1644
  %1646 = vmatmul.f32.gmra.mxu0 %v1484
  %v1647 = vpop.f32.mrf.mxu0
  %v1648 = vadd.f32 %v84, %v1647
  %1649 = vmatmul.f32.gmra.mxu0 %v1487
  %v1650 = vpop.f32.mrf.mxu0
  %v1651 = vadd.f32 %v84, %v1650
  %1652 = vmatmul.f32.gmra.mxu0 %v1490
  %v1653 = vpop.f32.mrf.mxu0
  %v1654 = vadd.f32 %v84, %v1653
  %1655 = vmatmul.f32.gmra.mxu0 %v1493
  %v1656 = vpop.f32.mrf.mxu0
  %v1657 = vadd.f32 %v84, %v1656
  %1658 = vmatmul.f32.gmra.mxu0 %v1496
  %v1659 = vpop.f32.mrf.mxu0
  %v1660 = vadd.f32 %v84, %v1659
  %1661 = vmatmul.f32.gmra.mxu0 %v1499
  %v1662 = vpop.f32.mrf.mxu0
  %v1663 = vadd.f32 %v84, %v1662
  %1664 = vmatmul.f32.gmra.mxu0 %v1502
  %v1665 = vpop.f32.mrf.mxu0
  %v1666 = vadd.f32 %v84, %v1665
  %1667 = vmatmul.f32.gmra.mxu0 %v1505
  %v1668 = vpop.f32.mrf.mxu0
  %v1669 = vadd.f32 %v84, %v1668
  %1670 = vmatmul.f32.gmra.mxu0 %v1508
  %v1671 = vpop.f32.mrf.mxu0
  %v1672 = vadd.f32 %v84, %v1671
  %1673 = vdwg.mxu0
  %v1674 = vmax.f32 %v1528, 0.0
  %v1675 = vmax.f32 %v1531, 0.0
  %v1676 = vmax.f32 %v1534, 0.0
  %v1677 = vmax.f32 %v1537, 0.0
  %v1678 = vmax.f32 %v1540, 0.0
  %v1679 = vmax.f32 %v1543, 0.0
  %v1680 = vmax.f32 %v1546, 0.0
  %v1681 = vmax.f32 %v1549, 0.0
  %v1682 = vmax.f32 %v1552, 0.0
  %v1683 = vmax.f32 %v1555, 0.0
  %v1684 = vmax.f32 %v1558, 0.0
  %v1685 = vmax.f32 %v1561, 0.0
  %v1686 = vmax.f32 %v1564, 0.0
  %v1687 = vmax.f32 %v1567, 0.0
  %v1688 = vmax.f32 %v1570, 0.0
  %v1689 = vmax.f32 %v1573, 0.0
  %v1690 = vmax.f32 %v1576, 0.0
  %v1691 = vmax.f32 %v1579, 0.0
  %v1692 = vmax.f32 %v1582, 0.0
  %v1693 = vmax.f32 %v1585, 0.0
  %v1694 = vmax.f32 %v1588, 0.0
  %v1695 = vmax.f32 %v1591, 0.0
  %v1696 = vmax.f32 %v1594, 0.0
  %v1697 = vmax.f32 %v1597, 0.0
  %v1698 = vmax.f32 %v1600, 0.0
  %v1699 = vmax.f32 %v1603, 0.0
  %v1700 = vmax.f32 %v1606, 0.0
  %v1701 = vmax.f32 %v1609, 0.0
  %v1702 = vmax.f32 %v1612, 0.0
  %v1703 = vmax.f32 %v1615, 0.0
  %v1704 = vmax.f32 %v1618, 0.0
  %v1705 = vmax.f32 %v1621, 0.0
  %v1706 = vmax.f32 %v1624, 0.0
  %v1707 = vmax.f32 %v1627, 0.0
  %v1708 = vmax.f32 %v1630, 0.0
  %v1709 = vmax.f32 %v1633, 0.0
  %v1710 = vmax.f32 %v1636, 0.0
  %v1711 = vmax.f32 %v1639, 0.0
  %v1712 = vmax.f32 %v1642, 0.0
  %v1713 = vmax.f32 %v1645, 0.0
  %v1714 = vmax.f32 %v1648, 0.0
  %v1715 = vmax.f32 %v1651, 0.0
  %v1716 = vmax.f32 %v1654, 0.0
  %v1717 = vmax.f32 %v1657, 0.0
  %v1718 = vmax.f32 %v1660, 0.0
  %v1719 = vmax.f32 %v1663, 0.0
  %v1720 = vmax.f32 %v1666, 0.0
  %v1721 = vmax.f32 %v1669, 0.0
  %v1722 = vmax.f32 %v1672, 0.0
  %v1723 = vmax.f32 %v1265, %v1674
  %v1724 = vmax.f32 %v1266, %v1675
  %v1725 = vmax.f32 %v1267, %v1676
  %v1726 = vmax.f32 %v1268, %v1677
  %v1727 = vmax.f32 %v1269, %v1678
  %v1728 = vmax.f32 %v1270, %v1679
  %v1729 = vmax.f32 %v1271, %v1680
  %v1730 = vmax.f32 %v1272, %v1681
  %v1731 = vmax.f32 %v1273, %v1682
  %v1732 = vmax.f32 %v1274, %v1683
  %v1733 = vmax.f32 %v1275, %v1684
  %v1734 = vmax.f32 %v1276, %v1685
  %v1735 = vmax.f32 %v1277, %v1686
  %v1736 = vmax.f32 %v1278, %v1687
  %v1737 = vmax.f32 %v1279, %v1688
  %v1738 = vmax.f32 %v1280, %v1689
  %v1739 = vmax.f32 %v1281, %v1690
  %v1740 = vmax.f32 %v1282, %v1691
  %v1741 = vmax.f32 %v1283, %v1692
  %v1742 = vmax.f32 %v1284, %v1693
  %v1743 = vmax.f32 %v1285, %v1694
  %v1744 = vmax.f32 %v1286, %v1695
  %v1745 = vmax.f32 %v1287, %v1696
  %v1746 = vmax.f32 %v1288, %v1697
  %v1747 = vmax.f32 %v1289, %v1698
  %v1748 = vmax.f32 %v1290, %v1699
  %v1749 = vmax.f32 %v1291, %v1700
  %v1750 = vmax.f32 %v1292, %v1701
  %v1751 = vmax.f32 %v1293, %v1702
  %v1752 = vmax.f32 %v1294, %v1703
  %v1753 = vmax.f32 %v1295, %v1704
  %v1754 = vmax.f32 %v1296, %v1705
  %v1755 = vmax.f32 %v1297, %v1706
  %v1756 = vmax.f32 %v1298, %v1707
  %v1757 = vmax.f32 %v1299, %v1708
  %v1758 = vmax.f32 %v1300, %v1709
  %v1759 = vmax.f32 %v1301, %v1710
  %v1760 = vmax.f32 %v1302, %v1711
  %v1761 = vmax.f32 %v1303, %v1712
  %v1762 = vmax.f32 %v1304, %v1713
  %v1763 = vmax.f32 %v1305, %v1714
  %v1764 = vmax.f32 %v1306, %v1715
  %v1765 = vmax.f32 %v1307, %v1716
  %v1766 = vmax.f32 %v1308, %v1717
  %v1767 = vmax.f32 %v1309, %v1718
  %v1768 = vmax.f32 %v1310, %v1719
  %v1769 = vmax.f32 %v1311, %v1720
  %v1770 = vmax.f32 %v1312, %v1721
  %v1771 = vmax.f32 %v1313, %v1722
  %v1772 = vmax.f32 %v856, %v1723
  %v1773 = vmax.f32 %v857, %v1724
  %v1774 = vmax.f32 %v858, %v1725
  %v1775 = vmax.f32 %v859, %v1726
  %v1776 = vmax.f32 %v860, %v1727
  %v1777 = vmax.f32 %v861, %v1728
  %v1778 = vmax.f32 %v862, %v1729
  %v1779 = vmax.f32 %v863, %v1730
  %v1780 = vmax.f32 %v864, %v1731
  %v1781 = vmax.f32 %v865, %v1732
  %v1782 = vmax.f32 %v866, %v1733
  %v1783 = vmax.f32 %v867, %v1734
  %v1784 = vmax.f32 %v868, %v1735
  %v1785 = vmax.f32 %v869, %v1736
  %v1786 = vmax.f32 %v870, %v1737
  %v1787 = vmax.f32 %v871, %v1738
  %v1788 = vmax.f32 %v872, %v1739
  %v1789 = vmax.f32 %v873, %v1740
  %v1790 = vmax.f32 %v874, %v1741
  %v1791 = vmax.f32 %v875, %v1742
  %v1792 = vmax.f32 %v876, %v1743
  %v1793 = vmax.f32 %v877, %v1744
  %v1794 = vmax.f32 %v878, %v1745
  %v1795 = vmax.f32 %v879, %v1746
  %v1796 = vmax.f32 %v880, %v1747
  %v1797 = vmax.f32 %v881, %v1748
  %v1798 = vmax.f32 %v882, %v1749
  %v1799 = vmax.f32 %v883, %v1750
  %v1800 = vmax.f32 %v884, %v1751
  %v1801 = vmax.f32 %v885, %v1752
  %v1802 = vmax.f32 %v886, %v1753
  %v1803 = vmax.f32 %v887, %v1754
  %v1804 = vmax.f32 %v888, %v1755
  %v1805 = vmax.f32 %v889, %v1756
  %v1806 = vmax.f32 %v890, %v1757
  %v1807 = vmax.f32 %v891, %v1758
  %v1808 = vmax.f32 %v892, %v1759
  %v1809 = vmax.f32 %v893, %v1760
  %v1810 = vmax.f32 %v894, %v1761
  %v1811 = vmax.f32 %v895, %v1762
  %v1812 = vmax.f32 %v896, %v1763
  %v1813 = vmax.f32 %v897, %v1764
  %v1814 = vmax.f32 %v898, %v1765
  %v1815 = vmax.f32 %v899, %v1766
  %v1816 = vmax.f32 %v900, %v1767
  %v1817 = vmax.f32 %v901, %v1768
  %v1818 = vmax.f32 %v902, %v1769
  %v1819 = vmax.f32 %v903, %v1770
  %v1820 = vmax.f32 %v904, %v1771
  %1821 = vst [vmem:[%s6] sm:$0xff] %v1772
  %1822 = vst [vmem:[%s6 + $0x8] sm:$0xff] %v1773
  %1823 = vst [vmem:[%s6 + $0x10] sm:$0xff] %v1774
  %1824 = vst [vmem:[%s6 + $0x18] sm:$0xff] %v1775
  %1825 = vst [vmem:[%s6 + $0x20] sm:$0xff] %v1776
  %1826 = vst [vmem:[%s6 + $0x28] sm:$0xff] %v1777
  %1827 = vst [vmem:[%s6 + $0x30] sm:$0xff] %v1778
  %1828 = vst [vmem:[%s6 + $0x38] sm:$0xff] %v1779
  %1829 = vst [vmem:[%s6 + $0x40] sm:$0xff] %v1780
  %1830 = vst [vmem:[%s6 + $0x48] sm:$0xff] %v1781
  %1831 = vst [vmem:[%s6 + $0x50] sm:$0xff] %v1782
  %1832 = vst [vmem:[%s6 + $0x58] sm:$0xff] %v1783
  %1833 = vst [vmem:[%s6 + $0x60] sm:$0xff] %v1784
  %1834 = vst [vmem:[%s6 + $0x68] sm:$0xff] %v1785
  %1835 = vst [vmem:[%s6 + $0x70] sm:$0xff] %v1786
  %1836 = vst [vmem:[%s6 + $0x78] sm:$0xff] %v1787
  %1837 = vst [vmem:[%s6 + $0x80] sm:$0xff] %v1788
  %1838 = vst [vmem:[%s6 + $0x88] sm:$0xff] %v1789
  %1839 = vst [vmem:[%s6 + $0x90] sm:$0xff] %v1790
  %1840 = vst [vmem:[%s6 + $0x98] sm:$0xff] %v1791
  %1841 = vst [vmem:[%s6 + $0xa0] sm:$0xff] %v1792
  %1842 = vst [vmem:[%s6 + $0xa8] sm:$0xff] %v1793
  %1843 = vst [vmem:[%s6 + $0xb0] sm:$0xff] %v1794
  %1844 = vst [vmem:[%s6 + $0xb8] sm:$0xff] %v1795
  %1845 = vst [vmem:[%s6 + $0xc0] sm:$0xff] %v1796
  %1846 = vst [vmem:[%s6 + $0xc8] sm:$0xff] %v1797
  %1847 = vst [vmem:[%s6 + $0xd0] sm:$0xff] %v1798
  %1848 = vst [vmem:[%s6 + $0xd8] sm:$0xff] %v1799
  %1849 = vst [vmem:[%s6 + $0xe0] sm:$0xff] %v1800
  %1850 = vst [vmem:[%s6 + $0xe8] sm:$0xff] %v1801
  %1851 = vst [vmem:[%s6 + $0xf0] sm:$0xff] %v1802
  %1852 = vst [vmem:[%s6 + $0xf8] sm:$0xff] %v1803
  %1853 = vst [vmem:[%s6 + $0x100] sm:$0xff] %v1804
  %1854 = vst [vmem:[%s6 + $0x108] sm:$0xff] %v1805
  %1855 = vst [vmem:[%s6 + $0x110] sm:$0xff] %v1806
  %1856 = vst [vmem:[%s6 + $0x118] sm:$0xff] %v1807
  %1857 = vst [vmem:[%s6 + $0x120] sm:$0xff] %v1808
  %1858 = vst [vmem:[%s6 + $0x128] sm:$0xff] %v1809
  %1859 = vst [vmem:[%s6 + $0x130] sm:$0xff] %v1810
  %1860 = vst [vmem:[%s6 + $0x138] sm:$0xff] %v1811
  %1861 = vst [vmem:[%s6 + $0x140] sm:$0xff] %v1812
  %1862 = vst [vmem:[%s6 + $0x148] sm:$0xff] %v1813
  %1863 = vst [vmem:[%s6 + $0x150] sm:$0xff] %v1814
  %1864 = vst [vmem:[%s6 + $0x158] sm:$0xff] %v1815
  %1865 = vst [vmem:[%s6 + $0x160] sm:$0xff] %v1816
  %1866 = vst [vmem:[%s6 + $0x168] sm:$0xff] %v1817
  %1867 = vst [vmem:[%s6 + $0x170] sm:$0xff] %v1818
  %1868 = vst [vmem:[%s6 + $0x178] sm:$0xff] %v1819
  %1869 = vst [vmem:[%s6 + $0x180] sm:$0xff] %v1820
  // Predicated region
  $region26: #{convnet_forward.3} parent=0 // pred_check
    _
  $region27: #{convnet_forward.3} parent=0 // pred_check_branch
    %1871 = sbr.rel (0) target = $region29
  $region28: #{convnet_forward.3} parent=0 // pred_region
    _
  $region29: #{convnet_forward.3} parent=0 // pred_fallthru
    _
  // Predicated region
  $region30: #{convnet_forward.3} parent=0 // pred_check
    _
  $region31: #{convnet_forward.3} parent=0 // pred_check_branch
    %1873 = sbr.rel (0) target = $region33
  $region32: #{convnet_forward.3} parent=0 // pred_region
    _
  $region33: #{convnet_forward.3} parent=0 // pred_fallthru
    _

// kernel: convnet_forward.4
$region0: #{convnet_forward.4}
  #allocation0 [shape = 'u32[]', space=smem, size = 0x4, offset = 0x4, fixed_abs, tag = 'smem constant byte address 0x4 - core index']
  #allocation1 [shape = 'u32[72,128]{1,0:T(1,128)}', space=vmem, size = 0x9000, scoped, tag = 'internal scratch']
  %s0 = inlined_call_operand.vmem [shape: f32[50,152], index: 0, kind: input, shape index: {}]
  %s1 = inlined_call_operand.vmem [shape: f32[50,152], index: 1, kind: input, shape index: {}]
  %s2 = inlined_call_operand.vmem [shape: f32[50,152], index: 2, kind: input, shape index: {}]
  %s3 = inlined_call_operand.vmem [shape: f32[50,152], index: 3, kind: input, shape index: {}]
  %s4 = inlined_call_operand.vmem [shape: f32[152,128], index: 4, kind: input, shape index: {}]
  %s5 = inlined_call_operand.vmem [shape: f32[1,128], index: 5, kind: input, shape index: {}]
  %s6 = inlined_call_operand.vmem [shape: f32[50,128], index: 6, kind: output, shape index: {}]
  %s7 = sld [smem:[#allocation0]]
  $region34: #{convnet_forward.4} parent=0
    _
  %s9 = ssub.s32 1, %s7
  %s10 = scalar_select 0, %s9, %s7
  // Predicated region
  $region2: #{convnet_forward.4} parent=0 // pred_check
    _
  $region3: #{convnet_forward.4} parent=0 // pred_check_branch
    %12 = sbr.rel (0) target = $region5
  $region4: #{convnet_forward.4} parent=0 // pred_region
    _
  $region5: #{convnet_forward.4} parent=0 // pred_fallthru
    _
  // Predicated region
  $region6: #{convnet_forward.4} parent=0 // pred_check
    _
  $region7: #{convnet_forward.4} parent=0 // pred_check_branch
    %14 = sbr.rel (0) target = $region9
  $region8: #{convnet_forward.4} parent=0 // pred_region
    _
  $region9: #{convnet_forward.4} parent=0 // pred_fallthru
    _
  // Predicated region
  $region10: #{convnet_forward.4} parent=0 // pred_check
    _
  $region11: #{convnet_forward.4} parent=0 // pred_check_branch
    %16 = sbr.rel (0) target = $region13
  $region12: #{convnet_forward.4} parent=0 // pred_region
    _
  $region13: #{convnet_forward.4} parent=0 // pred_fallthru
    _
  // Predicated region
  $region14: #{convnet_forward.4} parent=0 // pred_check
    _
  $region15: #{convnet_forward.4} parent=0 // pred_check_branch
    %18 = sbr.rel (0) target = $region17
  $region16: #{convnet_forward.4} parent=0 // pred_region
    _
  $region17: #{convnet_forward.4} parent=0 // pred_fallthru
    _
  // Predicated region
  $region18: #{convnet_forward.4} parent=0 // pred_check
    _
  $region19: #{convnet_forward.4} parent=0 // pred_check_branch
    %20 = sbr.rel (0) target = $region21
  $region20: #{convnet_forward.4} parent=0 // pred_region
    _
  $region21: #{convnet_forward.4} parent=0 // pred_fallthru
    _
  // Predicated region
  $region22: #{convnet_forward.4} parent=0 // pred_check
    _
  $region23: #{convnet_forward.4} parent=0 // pred_check_branch
    %22 = sbr.rel (0) target = $region25
  $region24: #{convnet_forward.4} parent=0 // pred_region
    _
  $region25: #{convnet_forward.4} parent=0 // pred_fallthru
    _
  %v23 = vld [vmem:[%s4] sm:$0xff]
  %v24 = vld [vmem:[%s4 + $0x8] sm:$0xff]
  %v25 = vld [vmem:[%s4 + $0x10] sm:$0xff]
  %v26 = vld [vmem:[%s4 + $0x18] sm:$0xff]
  %v27 = vld [vmem:[%s4 + $0x20] sm:$0xff]
  %v28 = vld [vmem:[%s4 + $0x28] sm:$0xff]
  %v29 = vld [vmem:[%s4 + $0x30] sm:$0xff]
  %v30 = vld [vmem:[%s4 + $0x38] sm:$0xff]
  %v31 = vld [vmem:[%s4 + $0x40] sm:$0xff]
  %v32 = vld [vmem:[%s4 + $0x48] sm:$0xff]
  %v33 = vld [vmem:[%s4 + $0x50] sm:$0xff]
  %v34 = vld [vmem:[%s4 + $0x58] sm:$0xff]
  %v35 = vld [vmem:[%s4 + $0x60] sm:$0xff]
  %v36 = vld [vmem:[%s4 + $0x68] sm:$0xff]
  %v37 = vld [vmem:[%s4 + $0x70] sm:$0xff]
  %v38 = vld [vmem:[%s4 + $0x78] sm:$0xff]
  %v39 = vld [vmem:[%s4 + $0x80] sm:$0xff]
  %v40 = vld [vmem:[%s4 + $0x88] sm:$0xff]
  %v41 = vld [vmem:[%s4 + $0x90] sm:$0xff]
  %v42 = vld [vmem:[%s5] sm:$0x1]
  %v43 = vld [vmem:[%s0] sm:$0xff]
  %v44 = vld [vmem:[%s0 + $0x8] sm:$0xff]
  %v45 = vld [vmem:[%s0 + $0x10] sm:$0xff]
  %v46 = vld [vmem:[%s0 + $0x18] sm:$0xff]
  %v47 = vld [vmem:[%s0 + $0x20] sm:$0xff]
  %v48 = vld [vmem:[%s0 + $0x28] sm:$0xff]
  %v49 = vld [vmem:[%s0 + $0x30] sm:$0xff]
  %v50 = vld [vmem:[%s0 + $0x38] sm:$0xff]
  %v51 = vld [vmem:[%s0 + $0x40] sm:$0xff]
  %v52 = vld [vmem:[%s0 + $0x48] sm:$0xff]
  %v53 = vld [vmem:[%s0 + $0x50] sm:$0xff]
  %v54 = vld [vmem:[%s0 + $0x58] sm:$0xff]
  %v55 = vld [vmem:[%s0 + $0x60] sm:$0x3]
  %v56 = vld [vmem:[%s0 + $0x68] sm:$0x3]
  %v58 = vperm.slane %v42, 0
  %vm60 = vcmask 195584
  %v62 = vsel %vm60, %v44, 0
  %v65 = vsel %vm60, %v46, 0
  %v68 = vsel %vm60, %v48, 0
  %v71 = vsel %vm60, %v50, 0
  %v74 = vsel %vm60, %v52, 0
  %v77 = vsel %vm60, %v54, 0
  %v80 = vsel %vm60, %v56, 0
  %82 = vmatpush.msra.mxu0 %v38
  %83 = vmatpush.msra.mxu0 %v37
  %84 = vmatpush.msra.mxu0 %v36
  %85 = vmatpush.msra.mxu0 %v35
  %86 = vmatpush.msra.mxu0 %v34
  %87 = vmatpush.msra.mxu0 %v33
  %88 = vmatpush.msra.mxu0 %v32
  %89 = vmatpush.msra.mxu0 %v31
  %90 = vmatpush.msra.mxu0 %v30
  %91 = vmatpush.msra.mxu0 %v29
  %92 = vmatpush.msra.mxu0 %v28
  %93 = vmatpush.msra.mxu0 %v27
  %94 = vmatpush.msra.mxu0 %v26
  %95 = vmatpush.msra.mxu0 %v25
  %96 = vmatpush.msra.mxu0 %v24
  %97 = vmatpush.msra.mxu0 %v23
  %98 = vmatmul.f32.gmra.mxu0 %v43
  %v99 = vpop.f32.mrf.mxu0
  %v100 = vadd.f32 %v58, %v99
  %101 = vmatmul.f32.gmra.mxu0 %v45
  %v102 = vpop.f32.mrf.mxu0
  %v103 = vadd.f32 %v58, %v102
  %104 = vmatmul.f32.gmra.mxu0 %v47
  %v105 = vpop.f32.mrf.mxu0
  %v106 = vadd.f32 %v58, %v105
  %107 = vmatmul.f32.gmra.mxu0 %v49
  %v108 = vpop.f32.mrf.mxu0
  %v109 = vadd.f32 %v58, %v108
  %110 = vmatmul.f32.gmra.mxu0 %v51
  %v111 = vpop.f32.mrf.mxu0
  %v112 = vadd.f32 %v58, %v111
  %113 = vmatmul.f32.gmra.mxu0 %v53
  %v114 = vpop.f32.mrf.mxu0
  %v115 = vadd.f32 %v58, %v114
  %116 = vmatmul.f32.gmra.mxu0 %v55
  %v117 = vpop.f32.mrf.mxu0
  %v118 = vadd.f32 %v58, %v117
  %119 = vdwg.mxu0
  %120 = vmatpush.msra.mxu0 0.0
  %121 = vmatpush.msra.mxu0 0.0
  %122 = vmatpush.msra.mxu0 0.0
  %123 = vmatpush.msra.mxu0 0.0
  %124 = vmatpush.msra.mxu0 0.0
  %125 = vmatpush.msra.mxu0 0.0
  %126 = vmatpush.msra.mxu0 0.0
  %127 = vmatpush.msra.mxu0 0.0
  %128 = vmatpush.msra.mxu0 0.0
  %129 = vmatpush.msra.mxu0 0.0
  %130 = vmatpush.msra.mxu0 0.0
  %131 = vmatpush.msra.mxu0 0.0
  %132 = vmatpush.msra.mxu0 0.0
  %133 = vmatpush.msra.mxu0 %v41
  %134 = vmatpush.msra.mxu0 %v40
  %135 = vmatpush.msra.mxu0 %v39
  %136 = vmatmul.f32.gmra.mxu0 %v62
  %v137 = vpop.f32.mrf.mxu0
  %v138 = vadd.f32 %v100, %v137
  %139 = vmatmul.f32.gmra.mxu0 %v65
  %v140 = vpop.f32.mrf.mxu0
  %v141 = vadd.f32 %v103, %v140
  %142 = vmatmul.f32.gmra.mxu0 %v68
  %v143 = vpop.f32.mrf.mxu0
  %v144 = vadd.f32 %v106, %v143
  %145 = vmatmul.f32.gmra.mxu0 %v71
  %v146 = vpop.f32.mrf.mxu0
  %v147 = vadd.f32 %v109, %v146
  %148 = vmatmul.f32.gmra.mxu0 %v74
  %v149 = vpop.f32.mrf.mxu0
  %v150 = vadd.f32 %v112, %v149
  %151 = vmatmul.f32.gmra.mxu0 %v77
  %v152 = vpop.f32.mrf.mxu0
  %v153 = vadd.f32 %v115, %v152
  %154 = vmatmul.f32.gmra.mxu0 %v80
  %v155 = vpop.f32.mrf.mxu0
  %v156 = vadd.f32 %v118, %v155
  %157 = vdwg.mxu0
  %v158 = vmax.f32 %v138, 0.0
  %v159 = vmax.f32 %v141, 0.0
  %v160 = vmax.f32 %v144, 0.0
  %v161 = vmax.f32 %v147, 0.0
  %v162 = vmax.f32 %v150, 0.0
  %v163 = vmax.f32 %v153, 0.0
  %v164 = vmax.f32 %v156, 0.0
  %v165 = vld [vmem:[%s1] sm:$0xff]
  %v166 = vld [vmem:[%s1 + $0x8] sm:$0xff]
  %v167 = vld [vmem:[%s1 + $0x10] sm:$0xff]
  %v168 = vld [vmem:[%s1 + $0x18] sm:$0xff]
  %v169 = vld [vmem:[%s1 + $0x20] sm:$0xff]
  %v170 = vld [vmem:[%s1 + $0x28] sm:$0xff]
  %v171 = vld [vmem:[%s1 + $0x30] sm:$0xff]
  %v172 = vld [vmem:[%s1 + $0x38] sm:$0xff]
  %v173 = vld [vmem:[%s1 + $0x40] sm:$0xff]
  %v174 = vld [vmem:[%s1 + $0x48] sm:$0xff]
  %v175 = vld [vmem:[%s1 + $0x50] sm:$0xff]
  %v176 = vld [vmem:[%s1 + $0x58] sm:$0xff]
  %v177 = vld [vmem:[%s1 + $0x60] sm:$0x3]
  %v178 = vld [vmem:[%s1 + $0x68] sm:$0x3]
  %v180 = vsel %vm60, %v166, 0
  %v183 = vsel %vm60, %v168, 0
  %v186 = vsel %vm60, %v170, 0
  %v189 = vsel %vm60, %v172, 0
  %v192 = vsel %vm60, %v174, 0
  %v195 = vsel %vm60, %v176, 0
  %v198 = vsel %vm60, %v178, 0
  %200 = vmatpush.msra.mxu0 %v38
  %201 = vmatpush.msra.mxu0 %v37
  %202 = vmatpush.msra.mxu0 %v36
  %203 = vmatpush.msra.mxu0 %v35
  %204 = vmatpush.msra.mxu0 %v34
  %205 = vmatpush.msra.mxu0 %v33
  %206 = vmatpush.msra.mxu0 %v32
  %207 = vmatpush.msra.mxu0 %v31
  %208 = vmatpush.msra.mxu0 %v30
  %209 = vmatpush.msra.mxu0 %v29
  %210 = vmatpush.msra.mxu0 %v28
  %211 = vmatpush.msra.mxu0 %v27
  %212 = vmatpush.msra.mxu0 %v26
  %213 = vmatpush.msra.mxu0 %v25
  %214 = vmatpush.msra.mxu0 %v24
  %215 = vmatpush.msra.mxu0 %v23
  %216 = vmatmul.f32.gmra.mxu0 %v165
  %v217 = vpop.f32.mrf.mxu0
  %v218 = vadd.f32 %v58, %v217
  %219 = vmatmul.f32.gmra.mxu0 %v167
  %v220 = vpop.f32.mrf.mxu0
  %v221 = vadd.f32 %v58, %v220
  %222 = vmatmul.f32.gmra.mxu0 %v169
  %v223 = vpop.f32.mrf.mxu0
  %v224 = vadd.f32 %v58, %v223
  %225 = vmatmul.f32.gmra.mxu0 %v171
  %v226 = vpop.f32.mrf.mxu0
  %v227 = vadd.f32 %v58, %v226
  %228 = vmatmul.f32.gmra.mxu0 %v173
  %v229 = vpop.f32.mrf.mxu0
  %v230 = vadd.f32 %v58, %v229
  %231 = vmatmul.f32.gmra.mxu0 %v175
  %v232 = vpop.f32.mrf.mxu0
  %v233 = vadd.f32 %v58, %v232
  %234 = vmatmul.f32.gmra.mxu0 %v177
  %v235 = vpop.f32.mrf.mxu0
  %v236 = vadd.f32 %v58, %v235
  %237 = vdwg.mxu0
  %238 = vmatpush.msra.mxu0 0.0
  %239 = vmatpush.msra.mxu0 0.0
  %240 = vmatpush.msra.mxu0 0.0
  %241 = vmatpush.msra.mxu0 0.0
  %242 = vmatpush.msra.mxu0 0.0
  %243 = vmatpush.msra.mxu0 0.0
  %244 = vmatpush.msra.mxu0 0.0
  %245 = vmatpush.msra.mxu0 0.0
  %246 = vmatpush.msra.mxu0 0.0
  %247 = vmatpush.msra.mxu0 0.0
  %248 = vmatpush.msra.mxu0 0.0
  %249 = vmatpush.msra.mxu0 0.0
  %250 = vmatpush.msra.mxu0 0.0
  %251 = vmatpush.msra.mxu0 %v41
  %252 = vmatpush.msra.mxu0 %v40
  %253 = vmatpush.msra.mxu0 %v39
  %254 = vmatmul.f32.gmra.mxu0 %v180
  %v255 = vpop.f32.mrf.mxu0
  %v256 = vadd.f32 %v218, %v255
  %257 = vmatmul.f32.gmra.mxu0 %v183
  %v258 = vpop.f32.mrf.mxu0
  %v259 = vadd.f32 %v221, %v258
  %260 = vmatmul.f32.gmra.mxu0 %v186
  %v261 = vpop.f32.mrf.mxu0
  %v262 = vadd.f32 %v224, %v261
  %263 = vmatmul.f32.gmra.mxu0 %v189
  %v264 = vpop.f32.mrf.mxu0
  %v265 = vadd.f32 %v227, %v264
  %266 = vmatmul.f32.gmra.mxu0 %v192
  %v267 = vpop.f32.mrf.mxu0
  %v268 = vadd.f32 %v230, %v267
  %269 = vmatmul.f32.gmra.mxu0 %v195
  %v270 = vpop.f32.mrf.mxu0
  %v271 = vadd.f32 %v233, %v270
  %272 = vmatmul.f32.gmra.mxu0 %v198
  %v273 = vpop.f32.mrf.mxu0
  %v274 = vadd.f32 %v236, %v273
  %275 = vdwg.mxu0
  %v276 = vmax.f32 %v256, 0.0
  %v277 = vmax.f32 %v259, 0.0
  %v278 = vmax.f32 %v262, 0.0
  %v279 = vmax.f32 %v265, 0.0
  %v280 = vmax.f32 %v268, 0.0
  %v281 = vmax.f32 %v271, 0.0
  %v282 = vmax.f32 %v274, 0.0
  %v283 = vmax.f32 %v158, %v276
  %v284 = vmax.f32 %v159, %v277
  %v285 = vmax.f32 %v160, %v278
  %v286 = vmax.f32 %v161, %v279
  %v287 = vmax.f32 %v162, %v280
  %v288 = vmax.f32 %v163, %v281
  %v289 = vmax.f32 %v164, %v282
  %v290 = vld [vmem:[%s2] sm:$0xff]
  %v291 = vld [vmem:[%s2 + $0x8] sm:$0xff]
  %v292 = vld [vmem:[%s2 + $0x10] sm:$0xff]
  %v293 = vld [vmem:[%s2 + $0x18] sm:$0xff]
  %v294 = vld [vmem:[%s2 + $0x20] sm:$0xff]
  %v295 = vld [vmem:[%s2 + $0x28] sm:$0xff]
  %v296 = vld [vmem:[%s2 + $0x30] sm:$0xff]
  %v297 = vld [vmem:[%s2 + $0x38] sm:$0xff]
  %v298 = vld [vmem:[%s2 + $0x40] sm:$0xff]
  %v299 = vld [vmem:[%s2 + $0x48] sm:$0xff]
  %v300 = vld [vmem:[%s2 + $0x50] sm:$0xff]
  %v301 = vld [vmem:[%s2 + $0x58] sm:$0xff]
  %v302 = vld [vmem:[%s2 + $0x60] sm:$0x3]
  %v303 = vld [vmem:[%s2 + $0x68] sm:$0x3]
  %v305 = vsel %vm60, %v291, 0
  %v308 = vsel %vm60, %v293, 0
  %v311 = vsel %vm60, %v295, 0
  %v314 = vsel %vm60, %v297, 0
  %v317 = vsel %vm60, %v299, 0
  %v320 = vsel %vm60, %v301, 0
  %v323 = vsel %vm60, %v303, 0
  %325 = vmatpush.msra.mxu0 %v38
  %326 = vmatpush.msra.mxu0 %v37
  %327 = vmatpush.msra.mxu0 %v36
  %328 = vmatpush.msra.mxu0 %v35
  %329 = vmatpush.msra.mxu0 %v34
  %330 = vmatpush.msra.mxu0 %v33
  %331 = vmatpush.msra.mxu0 %v32
  %332 = vmatpush.msra.mxu0 %v31
  %333 = vmatpush.msra.mxu0 %v30
  %334 = vmatpush.msra.mxu0 %v29
  %335 = vmatpush.msra.mxu0 %v28
  %336 = vmatpush.msra.mxu0 %v27
  %337 = vmatpush.msra.mxu0 %v26
  %338 = vmatpush.msra.mxu0 %v25
  %339 = vmatpush.msra.mxu0 %v24
  %340 = vmatpush.msra.mxu0 %v23
  %341 = vmatmul.f32.gmra.mxu0 %v290
  %v342 = vpop.f32.mrf.mxu0
  %v343 = vadd.f32 %v58, %v342
  %344 = vmatmul.f32.gmra.mxu0 %v292
  %v345 = vpop.f32.mrf.mxu0
  %v346 = vadd.f32 %v58, %v345
  %347 = vmatmul.f32.gmra.mxu0 %v294
  %v348 = vpop.f32.mrf.mxu0
  %v349 = vadd.f32 %v58, %v348
  %350 = vmatmul.f32.gmra.mxu0 %v296
  %v351 = vpop.f32.mrf.mxu0
  %v352 = vadd.f32 %v58, %v351
  %353 = vmatmul.f32.gmra.mxu0 %v298
  %v354 = vpop.f32.mrf.mxu0
  %v355 = vadd.f32 %v58, %v354
  %356 = vmatmul.f32.gmra.mxu0 %v300
  %v357 = vpop.f32.mrf.mxu0
  %v358 = vadd.f32 %v58, %v357
  %359 = vmatmul.f32.gmra.mxu0 %v302
  %v360 = vpop.f32.mrf.mxu0
  %v361 = vadd.f32 %v58, %v360
  %362 = vdwg.mxu0
  %363 = vmatpush.msra.mxu0 0.0
  %364 = vmatpush.msra.mxu0 0.0
  %365 = vmatpush.msra.mxu0 0.0
  %366 = vmatpush.msra.mxu0 0.0
  %367 = vmatpush.msra.mxu0 0.0
  %368 = vmatpush.msra.mxu0 0.0
  %369 = vmatpush.msra.mxu0 0.0
  %370 = vmatpush.msra.mxu0 0.0
  %371 = vmatpush.msra.mxu0 0.0
  %372 = vmatpush.msra.mxu0 0.0
  %373 = vmatpush.msra.mxu0 0.0
  %374 = vmatpush.msra.mxu0 0.0
  %375 = vmatpush.msra.mxu0 0.0
  %376 = vmatpush.msra.mxu0 %v41
  %377 = vmatpush.msra.mxu0 %v40
  %378 = vmatpush.msra.mxu0 %v39
  %379 = vmatmul.f32.gmra.mxu0 %v305
  %v380 = vpop.f32.mrf.mxu0
  %v381 = vadd.f32 %v343, %v380
  %382 = vmatmul.f32.gmra.mxu0 %v308
  %v383 = vpop.f32.mrf.mxu0
  %v384 = vadd.f32 %v346, %v383
  %385 = vmatmul.f32.gmra.mxu0 %v311
  %v386 = vpop.f32.mrf.mxu0
  %v387 = vadd.f32 %v349, %v386
  %388 = vmatmul.f32.gmra.mxu0 %v314
  %v389 = vpop.f32.mrf.mxu0
  %v390 = vadd.f32 %v352, %v389
  %391 = vmatmul.f32.gmra.mxu0 %v317
  %v392 = vpop.f32.mrf.mxu0
  %v393 = vadd.f32 %v355, %v392
  %394 = vmatmul.f32.gmra.mxu0 %v320
  %v395 = vpop.f32.mrf.mxu0
  %v396 = vadd.f32 %v358, %v395
  %397 = vmatmul.f32.gmra.mxu0 %v323
  %v398 = vpop.f32.mrf.mxu0
  %v399 = vadd.f32 %v361, %v398
  %400 = vdwg.mxu0
  %v401 = vmax.f32 %v381, 0.0
  %v402 = vmax.f32 %v384, 0.0
  %v403 = vmax.f32 %v387, 0.0
  %v404 = vmax.f32 %v390, 0.0
  %v405 = vmax.f32 %v393, 0.0
  %v406 = vmax.f32 %v396, 0.0
  %v407 = vmax.f32 %v399, 0.0
  %v408 = vld [vmem:[%s3] sm:$0xff]
  %v409 = vld [vmem:[%s3 + $0x8] sm:$0xff]
  %v410 = vld [vmem:[%s3 + $0x10] sm:$0xff]
  %v411 = vld [vmem:[%s3 + $0x18] sm:$0xff]
  %v412 = vld [vmem:[%s3 + $0x20] sm:$0xff]
  %v413 = vld [vmem:[%s3 + $0x28] sm:$0xff]
  %v414 = vld [vmem:[%s3 + $0x30] sm:$0xff]
  %v415 = vld [vmem:[%s3 + $0x38] sm:$0xff]
  %v416 = vld [vmem:[%s3 + $0x40] sm:$0xff]
  %v417 = vld [vmem:[%s3 + $0x48] sm:$0xff]
  %v418 = vld [vmem:[%s3 + $0x50] sm:$0xff]
  %v419 = vld [vmem:[%s3 + $0x58] sm:$0xff]
  %v420 = vld [vmem:[%s3 + $0x60] sm:$0x3]
  %v421 = vld [vmem:[%s3 + $0x68] sm:$0x3]
  %v423 = vsel %vm60, %v409, 0
  %v426 = vsel %vm60, %v411, 0
  %v429 = vsel %vm60, %v413, 0
  %v432 = vsel %vm60, %v415, 0
  %v435 = vsel %vm60, %v417, 0
  %v438 = vsel %vm60, %v419, 0
  %v441 = vsel %vm60, %v421, 0
  %443 = vmatpush.msra.mxu0 %v38
  %444 = vmatpush.msra.mxu0 %v37
  %445 = vmatpush.msra.mxu0 %v36
  %446 = vmatpush.msra.mxu0 %v35
  %447 = vmatpush.msra.mxu0 %v34
  %448 = vmatpush.msra.mxu0 %v33
  %449 = vmatpush.msra.mxu0 %v32
  %450 = vmatpush.msra.mxu0 %v31
  %451 = vmatpush.msra.mxu0 %v30
  %452 = vmatpush.msra.mxu0 %v29
  %453 = vmatpush.msra.mxu0 %v28
  %454 = vmatpush.msra.mxu0 %v27
  %455 = vmatpush.msra.mxu0 %v26
  %456 = vmatpush.msra.mxu0 %v25
  %457 = vmatpush.msra.mxu0 %v24
  %458 = vmatpush.msra.mxu0 %v23
  %459 = vmatmul.f32.gmra.mxu0 %v408
  %v460 = vpop.f32.mrf.mxu0
  %v461 = vadd.f32 %v58, %v460
  %462 = vmatmul.f32.gmra.mxu0 %v410
  %v463 = vpop.f32.mrf.mxu0
  %v464 = vadd.f32 %v58, %v463
  %465 = vmatmul.f32.gmra.mxu0 %v412
  %v466 = vpop.f32.mrf.mxu0
  %v467 = vadd.f32 %v58, %v466
  %468 = vmatmul.f32.gmra.mxu0 %v414
  %v469 = vpop.f32.mrf.mxu0
  %v470 = vadd.f32 %v58, %v469
  %471 = vmatmul.f32.gmra.mxu0 %v416
  %v472 = vpop.f32.mrf.mxu0
  %v473 = vadd.f32 %v58, %v472
  %474 = vmatmul.f32.gmra.mxu0 %v418
  %v475 = vpop.f32.mrf.mxu0
  %v476 = vadd.f32 %v58, %v475
  %477 = vmatmul.f32.gmra.mxu0 %v420
  %v478 = vpop.f32.mrf.mxu0
  %v479 = vadd.f32 %v58, %v478
  %480 = vdwg.mxu0
  %481 = vmatpush.msra.mxu0 0.0
  %482 = vmatpush.msra.mxu0 0.0
  %483 = vmatpush.msra.mxu0 0.0
  %484 = vmatpush.msra.mxu0 0.0
  %485 = vmatpush.msra.mxu0 0.0
  %486 = vmatpush.msra.mxu0 0.0
  %487 = vmatpush.msra.mxu0 0.0
  %488 = vmatpush.msra.mxu0 0.0
  %489 = vmatpush.msra.mxu0 0.0
  %490 = vmatpush.msra.mxu0 0.0
  %491 = vmatpush.msra.mxu0 0.0
  %492 = vmatpush.msra.mxu0 0.0
  %493 = vmatpush.msra.mxu0 0.0
  %494 = vmatpush.msra.mxu0 %v41
  %495 = vmatpush.msra.mxu0 %v40
  %496 = vmatpush.msra.mxu0 %v39
  %497 = vmatmul.f32.gmra.mxu0 %v423
  %v498 = vpop.f32.mrf.mxu0
  %v499 = vadd.f32 %v461, %v498
  %500 = vmatmul.f32.gmra.mxu0 %v426
  %v501 = vpop.f32.mrf.mxu0
  %v502 = vadd.f32 %v464, %v501
  %503 = vmatmul.f32.gmra.mxu0 %v429
  %v504 = vpop.f32.mrf.mxu0
  %v505 = vadd.f32 %v467, %v504
  %506 = vmatmul.f32.gmra.mxu0 %v432
  %v507 = vpop.f32.mrf.mxu0
  %v508 = vadd.f32 %v470, %v507
  %509 = vmatmul.f32.gmra.mxu0 %v435
  %v510 = vpop.f32.mrf.mxu0
  %v511 = vadd.f32 %v473, %v510
  %512 = vmatmul.f32.gmra.mxu0 %v438
  %v513 = vpop.f32.mrf.mxu0
  %v514 = vadd.f32 %v476, %v513
  %515 = vmatmul.f32.gmra.mxu0 %v441
  %v516 = vpop.f32.mrf.mxu0
  %v517 = vadd.f32 %v479, %v516
  %518 = vdwg.mxu0
  %v519 = vmax.f32 %v499, 0.0
  %v520 = vmax.f32 %v502, 0.0
  %v521 = vmax.f32 %v505, 0.0
  %v522 = vmax.f32 %v508, 0.0
  %v523 = vmax.f32 %v511, 0.0
  %v524 = vmax.f32 %v514, 0.0
  %v525 = vmax.f32 %v517, 0.0
  %v526 = vmax.f32 %v401, %v519
  %v527 = vmax.f32 %v402, %v520
  %v528 = vmax.f32 %v403, %v521
  %v529 = vmax.f32 %v404, %v522
  %v530 = vmax.f32 %v405, %v523
  %v531 = vmax.f32 %v406, %v524
  %v532 = vmax.f32 %v407, %v525
  %v533 = vmax.f32 %v283, %v526
  %v534 = vmax.f32 %v284, %v527
  %v535 = vmax.f32 %v285, %v528
  %v536 = vmax.f32 %v286, %v529
  %v537 = vmax.f32 %v287, %v530
  %v538 = vmax.f32 %v288, %v531
  %v539 = vmax.f32 %v289, %v532
  %540 = vst [vmem:[%s6] sm:$0xff] %v533
  %541 = vst [vmem:[%s6 + $0x8] sm:$0xff] %v534
  %542 = vst [vmem:[%s6 + $0x10] sm:$0xff] %v535
  %543 = vst [vmem:[%s6 + $0x18] sm:$0xff] %v536
  %544 = vst [vmem:[%s6 + $0x20] sm:$0xff] %v537
  %545 = vst [vmem:[%s6 + $0x28] sm:$0xff] %v538
  %546 = vst [vmem:[%s6 + $0x30] sm:$0x3] %v539
  // Predicated region
  $region26: #{convnet_forward.4} parent=0 // pred_check
    _
  $region27: #{convnet_forward.4} parent=0 // pred_check_branch
    %548 = sbr.rel (0) target = $region29
  $region28: #{convnet_forward.4} parent=0 // pred_region
    _
  $region29: #{convnet_forward.4} parent=0 // pred_fallthru
    _
  // Predicated region
  $region30: #{convnet_forward.4} parent=0 // pred_check
    _
  $region31: #{convnet_forward.4} parent=0 // pred_check_branch
    %550 = sbr.rel (0) target = $region33
  $region32: #{convnet_forward.4} parent=0 // pred_region
    _
  $region33: #{convnet_forward.4} parent=0 // pred_fallthru
    _

// kernel: convnet_forward.5
$region0: #{convnet_forward.5}
  #allocation0 [shape = 'u32[]', space=smem, size = 0x4, offset = 0x4, fixed_abs, tag = 'smem constant byte address 0x4 - core index']
  #allocation1 [shape = 'u32[72,128]{1,0:T(1,128)}', space=vmem, size = 0x9000, scoped, tag = 'internal scratch']
  %s0 = inlined_call_operand.vmem [shape: f32[2,400], index: 0, kind: input, shape index: {}]
  %s1 = inlined_call_operand.vmem [shape: f32[400,256], index: 1, kind: input, shape index: {}]
  %s2 = inlined_call_operand.vmem [shape: f32[1,256], index: 2, kind: input, shape index: {}]
  %s3 = inlined_call_operand.vmem [shape: f32[256,512], index: 3, kind: input, shape index: {}]
  %s4 = inlined_call_operand.vmem [shape: f32[1,512], index: 4, kind: input, shape index: {}]
  %s5 = inlined_call_operand.vmem [shape: f32[512,1024], index: 5, kind: input, shape index: {}]
  %s6 = inlined_call_operand.vmem [shape: f32[1,1024], index: 6, kind: input, shape index: {}]
  %s7 = inlined_call_operand.hbm [shape: f32[2,1024], index: 7, kind: output, shape index: {}]
  %s8 = sld [smem:[#allocation0]]
  $region38: #{convnet_forward.5} parent=0
    _
  %s10 = ssub.s32 1, %s8
  %s11 = scalar_select 0, %s10, %s8
  $region1: #{convnet_forward.5} parent=0
    #allocation2 [shape = 'u8[8192]{0}', space=vmem, size = 0x2000, scoped, tag = 'output window, operand 0, single buffered']
    #allocation3 [shape = 's32[1]{0}', space=sflag, size = 0x4, scoped, tag = 'scoped memory for convnet_forward.5']
    %12 = vsyncpa [#allocation3], 0
    // Predicated region
    $region2: #{convnet_forward.5} parent=1 // pred_check
      _
    $region3: #{convnet_forward.5} parent=1 // pred_check_branch
      %14 = sbr.rel (0) target = $region5
    $region4: #{convnet_forward.5} parent=1 // pred_region
      _
    $region5: #{convnet_forward.5} parent=1 // pred_fallthru
      _
    // Predicated region
    $region6: #{convnet_forward.5} parent=1 // pred_check
      _
    $region7: #{convnet_forward.5} parent=1 // pred_check_branch
      %16 = sbr.rel (0) target = $region9
    $region8: #{convnet_forward.5} parent=1 // pred_region
      _
    $region9: #{convnet_forward.5} parent=1 // pred_fallthru
      _
    // Predicated region
    $region10: #{convnet_forward.5} parent=1 // pred_check
      _
    $region11: #{convnet_forward.5} parent=1 // pred_check_branch
      %18 = sbr.rel (0) target = $region13
    $region12: #{convnet_forward.5} parent=1 // pred_region
      _
    $region13: #{convnet_forward.5} parent=1 // pred_fallthru
      _
    // Predicated region
    $region14: #{convnet_forward.5} parent=1 // pred_check
      _
    $region15: #{convnet_forward.5} parent=1 // pred_check_branch
      %20 = sbr.rel (0) target = $region17
    $region16: #{convnet_forward.5} parent=1 // pred_region
      _
    $region17: #{convnet_forward.5} parent=1 // pred_fallthru
      _
    // Predicated region
    $region18: #{convnet_forward.5} parent=1 // pred_check
      _
    $region19: #{convnet_forward.5} parent=1 // pred_check_branch
      %22 = sbr.rel (0) target = $region21
    $region20: #{convnet_forward.5} parent=1 // pred_region
      _
    $region21: #{convnet_forward.5} parent=1 // pred_fallthru
      _
    // Predicated region
    $region22: #{convnet_forward.5} parent=1 // pred_check
      _
    $region23: #{convnet_forward.5} parent=1 // pred_check_branch
      %24 = sbr.rel (0) target = $region25
    $region24: #{convnet_forward.5} parent=1 // pred_region
      _
    $region25: #{convnet_forward.5} parent=1 // pred_fallthru
      _
    // Predicated region
    $region26: #{convnet_forward.5} parent=1 // pred_check
      _
    $region27: #{convnet_forward.5} parent=1 // pred_check_branch
      %26 = sbr.rel (0) target = $region29
    $region28: #{convnet_forward.5} parent=1 // pred_region
      _
    $region29: #{convnet_forward.5} parent=1 // pred_fallthru
      _
    %v27 = vld [vmem:[%s0] sm:$0xff]
    %v28 = vld [vmem:[%s1] sm:$0xff]
    %v29 = vld [vmem:[%s1 + $0x8] sm:$0xff]
    %v30 = vld [vmem:[%s1 + $0x10] sm:$0xff]
    %v31 = vld [vmem:[%s1 + $0x18] sm:$0xff]
    %v32 = vld [vmem:[%s1 + $0x20] sm:$0xff]
    %v33 = vld [vmem:[%s1 + $0x28] sm:$0xff]
    %v34 = vld [vmem:[%s1 + $0x30] sm:$0xff]
    %v35 = vld [vmem:[%s1 + $0x38] sm:$0xff]
    %v36 = vld [vmem:[%s1 + $0x40] sm:$0xff]
    %v37 = vld [vmem:[%s1 + $0x48] sm:$0xff]
    %v38 = vld [vmem:[%s1 + $0x50] sm:$0xff]
    %v39 = vld [vmem:[%s1 + $0x58] sm:$0xff]
    %v40 = vld [vmem:[%s1 + $0x60] sm:$0xff]
    %v41 = vld [vmem:[%s1 + $0x68] sm:$0xff]
    %v42 = vld [vmem:[%s1 + $0x70] sm:$0xff]
    %v43 = vld [vmem:[%s1 + $0x78] sm:$0xff]
    %v44 = vld [vmem:[%s1 + $0x80] sm:$0xff]
    %v45 = vld [vmem:[%s1 + $0x88] sm:$0xff]
    %v46 = vld [vmem:[%s1 + $0x90] sm:$0xff]
    %v47 = vld [vmem:[%s1 + $0x98] sm:$0xff]
    %v48 = vld [vmem:[%s1 + $0xa0] sm:$0xff]
    %v49 = vld [vmem:[%s1 + $0xa8] sm:$0xff]
    %v50 = vld [vmem:[%s1 + $0xb0] sm:$0xff]
    %v51 = vld [vmem:[%s1 + $0xb8] sm:$0xff]
    %v52 = vld [vmem:[%s1 + $0xc0] sm:$0xff]
    %v53 = vld [vmem:[%s1 + $0xc8] sm:$0xff]
    %v54 = vld [vmem:[%s1 + $0xd0] sm:$0xff]
    %v55 = vld [vmem:[%s1 + $0xd8] sm:$0xff]
    %v56 = vld [vmem:[%s1 + $0xe0] sm:$0xff]
    %v57 = vld [vmem:[%s1 + $0xe8] sm:$0xff]
    %v58 = vld [vmem:[%s1 + $0xf0] sm:$0xff]
    %v59 = vld [vmem:[%s1 + $0xf8] sm:$0xff]
    %v60 = vld [vmem:[%s1 + $0x100] sm:$0xff]
    %v61 = vld [vmem:[%s1 + $0x108] sm:$0xff]
    %v62 = vld [vmem:[%s1 + $0x110] sm:$0xff]
    %v63 = vld [vmem:[%s1 + $0x118] sm:$0xff]
    %v64 = vld [vmem:[%s1 + $0x120] sm:$0xff]
    %v65 = vld [vmem:[%s1 + $0x128] sm:$0xff]
    %v66 = vld [vmem:[%s1 + $0x130] sm:$0xff]
    %v67 = vld [vmem:[%s1 + $0x138] sm:$0xff]
    %v68 = vld [vmem:[%s1 + $0x140] sm:$0xff]
    %v69 = vld [vmem:[%s1 + $0x148] sm:$0xff]
    %v70 = vld [vmem:[%s1 + $0x150] sm:$0xff]
    %v71 = vld [vmem:[%s1 + $0x158] sm:$0xff]
    %v72 = vld [vmem:[%s1 + $0x160] sm:$0xff]
    %v73 = vld [vmem:[%s1 + $0x168] sm:$0xff]
    %v74 = vld [vmem:[%s1 + $0x170] sm:$0xff]
    %v75 = vld [vmem:[%s1 + $0x178] sm:$0xff]
    %v76 = vld [vmem:[%s1 + $0x180] sm:$0xff]
    %v77 = vld [vmem:[%s1 + $0x188] sm:$0xff]
    %v78 = vld [vmem:[%s1 + $0x190] sm:$0xff]
    %v79 = vld [vmem:[%s1 + $0x198] sm:$0xff]
    %v80 = vld [vmem:[%s1 + $0x1a0] sm:$0xff]
    %v81 = vld [vmem:[%s1 + $0x1a8] sm:$0xff]
    %v82 = vld [vmem:[%s1 + $0x1b0] sm:$0xff]
    %v83 = vld [vmem:[%s1 + $0x1b8] sm:$0xff]
    %v84 = vld [vmem:[%s1 + $0x1c0] sm:$0xff]
    %v85 = vld [vmem:[%s1 + $0x1c8] sm:$0xff]
    %v86 = vld [vmem:[%s1 + $0x1d0] sm:$0xff]
    %v87 = vld [vmem:[%s1 + $0x1d8] sm:$0xff]
    %v88 = vld [vmem:[%s1 + $0x1e0] sm:$0xff]
    %v89 = vld [vmem:[%s1 + $0x1e8] sm:$0xff]
    %v90 = vld [vmem:[%s1 + $0x1f0] sm:$0xff]
    %v91 = vld [vmem:[%s1 + $0x1f8] sm:$0xff]
    %v92 = vld [vmem:[%s1 + $0x200] sm:$0xff]
    %v93 = vld [vmem:[%s1 + $0x208] sm:$0xff]
    %v94 = vld [vmem:[%s1 + $0x210] sm:$0xff]
    %v95 = vld [vmem:[%s1 + $0x218] sm:$0xff]
    %v96 = vld [vmem:[%s1 + $0x220] sm:$0xff]
    %v97 = vld [vmem:[%s1 + $0x228] sm:$0xff]
    %v98 = vld [vmem:[%s1 + $0x230] sm:$0xff]
    %v99 = vld [vmem:[%s1 + $0x238] sm:$0xff]
    %v100 = vld [vmem:[%s1 + $0x240] sm:$0xff]
    %v101 = vld [vmem:[%s1 + $0x248] sm:$0xff]
    %v102 = vld [vmem:[%s1 + $0x250] sm:$0xff]
    %v103 = vld [vmem:[%s1 + $0x258] sm:$0xff]
    %v104 = vld [vmem:[%s1 + $0x260] sm:$0xff]
    %v105 = vld [vmem:[%s1 + $0x268] sm:$0xff]
    %v106 = vld [vmem:[%s1 + $0x270] sm:$0xff]
    %v107 = vld [vmem:[%s1 + $0x278] sm:$0xff]
    %v108 = vld [vmem:[%s1 + $0x280] sm:$0xff]
    %v109 = vld [vmem:[%s1 + $0x288] sm:$0xff]
    %v110 = vld [vmem:[%s1 + $0x290] sm:$0xff]
    %v111 = vld [vmem:[%s1 + $0x298] sm:$0xff]
    %v112 = vld [vmem:[%s1 + $0x2a0] sm:$0xff]
    %v113 = vld [vmem:[%s1 + $0x2a8] sm:$0xff]
    %v114 = vld [vmem:[%s1 + $0x2b0] sm:$0xff]
    %v115 = vld [vmem:[%s1 + $0x2b8] sm:$0xff]
    %v116 = vld [vmem:[%s1 + $0x2c0] sm:$0xff]
    %v117 = vld [vmem:[%s1 + $0x2c8] sm:$0xff]
    %v118 = vld [vmem:[%s1 + $0x2d0] sm:$0xff]
    %v119 = vld [vmem:[%s1 + $0x2d8] sm:$0xff]
    %v120 = vld [vmem:[%s1 + $0x2e0] sm:$0xff]
    %v121 = vld [vmem:[%s1 + $0x2e8] sm:$0xff]
    %v122 = vld [vmem:[%s1 + $0x2f0] sm:$0xff]
    %v123 = vld [vmem:[%s1 + $0x2f8] sm:$0xff]
    %v124 = vld [vmem:[%s1 + $0x300] sm:$0xff]
    %v125 = vld [vmem:[%s1 + $0x308] sm:$0xff]
    %v126 = vld [vmem:[%s1 + $0x310] sm:$0xff]
    %v127 = vld [vmem:[%s1 + $0x318] sm:$0xff]
    %v128 = vld [vmem:[%s2] sm:$0x3]
    %v130 = vperm.slane %v128, 0
    %v131 = vperm.slane %v128, 1
    %135 = vst [vmem:[#allocation1] ss:$4 sm:$0xff] %v27
    %v136 = vld.sshfl [vmem:[#allocation1] sm:$0xff pattern:$0x73625140]
    %v137 = vld.sshfl [vmem:[#allocation1 + $0x8] sm:$0xff pattern:$0x73625140]
    %v138 = vld.sshfl [vmem:[#allocation1 + $0x10] sm:$0xff pattern:$0x73625140]
    %v139 = vld.sshfl [vmem:[#allocation1 + $0x18] sm:$0xff pattern:$0x73625140]
    %vm143 = vcmask 130048
    %v144 = vsel %vm143, %v139, 0
    %146 = vmatpush.msra.mxu0 %v58
    %147 = vmatpush.msra.mxu0 %v56
    %148 = vmatpush.msra.mxu0 %v54
    %149 = vmatpush.msra.mxu0 %v52
    %150 = vmatpush.msra.mxu0 %v50
    %151 = vmatpush.msra.mxu0 %v48
    %152 = vmatpush.msra.mxu0 %v46
    %153 = vmatpush.msra.mxu0 %v44
    %154 = vmatpush.msra.mxu0 %v42
    %155 = vmatpush.msra.mxu0 %v40
    %156 = vmatpush.msra.mxu0 %v38
    %157 = vmatpush.msra.mxu0 %v36
    %158 = vmatpush.msra.mxu0 %v34
    %159 = vmatpush.msra.mxu0 %v32
    %160 = vmatpush.msra.mxu0 %v30
    %161 = vmatpush.msra.mxu0 %v28
    %162 = vmatmul.f32.gmra.mxu0 %v136
    %v163 = vpop.f32.mrf.mxu0
    %v164 = vadd.f32 %v130, %v163
    %165 = vdwg.mxu0
    %166 = vmatpush.msra.mxu0 %v90
    %167 = vmatpush.msra.mxu0 %v88
    %168 = vmatpush.msra.mxu0 %v86
    %169 = vmatpush.msra.mxu0 %v84
    %170 = vmatpush.msra.mxu0 %v82
    %171 = vmatpush.msra.mxu0 %v80
    %172 = vmatpush.msra.mxu0 %v78
    %173 = vmatpush.msra.mxu0 %v76
    %174 = vmatpush.msra.mxu0 %v74
    %175 = vmatpush.msra.mxu0 %v72
    %176 = vmatpush.msra.mxu0 %v70
    %177 = vmatpush.msra.mxu0 %v68
    %178 = vmatpush.msra.mxu0 %v66
    %179 = vmatpush.msra.mxu0 %v64
    %180 = vmatpush.msra.mxu0 %v62
    %181 = vmatpush.msra.mxu0 %v60
    %182 = vmatmul.f32.gmra.mxu0 %v137
    %v183 = vpop.f32.mrf.mxu0
    %v184 = vadd.f32 %v164, %v183
    %185 = vdwg.mxu0
    %186 = vmatpush.msra.mxu0 %v122
    %187 = vmatpush.msra.mxu0 %v120
    %188 = vmatpush.msra.mxu0 %v118
    %189 = vmatpush.msra.mxu0 %v116
    %190 = vmatpush.msra.mxu0 %v114
    %191 = vmatpush.msra.mxu0 %v112
    %192 = vmatpush.msra.mxu0 %v110
    %193 = vmatpush.msra.mxu0 %v108
    %194 = vmatpush.msra.mxu0 %v106
    %195 = vmatpush.msra.mxu0 %v104
    %196 = vmatpush.msra.mxu0 %v102
    %197 = vmatpush.msra.mxu0 %v100
    %198 = vmatpush.msra.mxu0 %v98
    %199 = vmatpush.msra.mxu0 %v96
    %200 = vmatpush.msra.mxu0 %v94
    %201 = vmatpush.msra.mxu0 %v92
    %202 = vmatmul.f32.gmra.mxu0 %v138
    %v203 = vpop.f32.mrf.mxu0
    %v204 = vadd.f32 %v184, %v203
    %205 = vdwg.mxu0
    %206 = vmatpush.msra.mxu0 0.0
    %207 = vmatpush.msra.mxu0 0.0
    %208 = vmatpush.msra.mxu0 0.0
    %209 = vmatpush.msra.mxu0 0.0
    %210 = vmatpush.msra.mxu0 0.0
    %211 = vmatpush.msra.mxu0 0.0
    %212 = vmatpush.msra.mxu0 0.0
    %213 = vmatpush.msra.mxu0 0.0
    %214 = vmatpush.msra.mxu0 0.0
    %215 = vmatpush.msra.mxu0 0.0
    %216 = vmatpush.msra.mxu0 0.0
    %217 = vmatpush.msra.mxu0 0.0
    %218 = vmatpush.msra.mxu0 0.0
    %219 = vmatpush.msra.mxu0 0.0
    %220 = vmatpush.msra.mxu0 %v126
    %221 = vmatpush.msra.mxu0 %v124
    %222 = vmatmul.f32.gmra.mxu0 %v144
    %v223 = vpop.f32.mrf.mxu0
    %v224 = vadd.f32 %v204, %v223
    %225 = vdwg.mxu0
    %226 = vmatpush.msra.mxu0 %v59
    %227 = vmatpush.msra.mxu0 %v57
    %228 = vmatpush.msra.mxu0 %v55
    %229 = vmatpush.msra.mxu0 %v53
    %230 = vmatpush.msra.mxu0 %v51
    %231 = vmatpush.msra.mxu0 %v49
    %232 = vmatpush.msra.mxu0 %v47
    %233 = vmatpush.msra.mxu0 %v45
    %234 = vmatpush.msra.mxu0 %v43
    %235 = vmatpush.msra.mxu0 %v41
    %236 = vmatpush.msra.mxu0 %v39
    %237 = vmatpush.msra.mxu0 %v37
    %238 = vmatpush.msra.mxu0 %v35
    %239 = vmatpush.msra.mxu0 %v33
    %240 = vmatpush.msra.mxu0 %v31
    %241 = vmatpush.msra.mxu0 %v29
    %242 = vmatmul.f32.gmra.mxu0 %v136
    %v243 = vpop.f32.mrf.mxu0
    %v244 = vadd.f32 %v131, %v243
    %245 = vdwg.mxu0
    %246 = vmatpush.msra.mxu0 %v91
    %247 = vmatpush.msra.mxu0 %v89
    %248 = vmatpush.msra.mxu0 %v87
    %249 = vmatpush.msra.mxu0 %v85
    %250 = vmatpush.msra.mxu0 %v83
    %251 = vmatpush.msra.mxu0 %v81
    %252 = vmatpush.msra.mxu0 %v79
    %253 = vmatpush.msra.mxu0 %v77
    %254 = vmatpush.msra.mxu0 %v75
    %255 = vmatpush.msra.mxu0 %v73
    %256 = vmatpush.msra.mxu0 %v71
    %257 = vmatpush.msra.mxu0 %v69
    %258 = vmatpush.msra.mxu0 %v67
    %259 = vmatpush.msra.mxu0 %v65
    %260 = vmatpush.msra.mxu0 %v63
    %261 = vmatpush.msra.mxu0 %v61
    %262 = vmatmul.f32.gmra.mxu0 %v137
    %v263 = vpop.f32.mrf.mxu0
    %v264 = vadd.f32 %v244, %v263
    %265 = vdwg.mxu0
    %266 = vmatpush.msra.mxu0 %v123
    %267 = vmatpush.msra.mxu0 %v121
    %268 = vmatpush.msra.mxu0 %v119
    %269 = vmatpush.msra.mxu0 %v117
    %270 = vmatpush.msra.mxu0 %v115
    %271 = vmatpush.msra.mxu0 %v113
    %272 = vmatpush.msra.mxu0 %v111
    %273 = vmatpush.msra.mxu0 %v109
    %274 = vmatpush.msra.mxu0 %v107
    %275 = vmatpush.msra.mxu0 %v105
    %276 = vmatpush.msra.mxu0 %v103
    %277 = vmatpush.msra.mxu0 %v101
    %278 = vmatpush.msra.mxu0 %v99
    %279 = vmatpush.msra.mxu0 %v97
    %280 = vmatpush.msra.mxu0 %v95
    %281 = vmatpush.msra.mxu0 %v93
    %282 = vmatmul.f32.gmra.mxu0 %v138
    %v283 = vpop.f32.mrf.mxu0
    %v284 = vadd.f32 %v264, %v283
    %285 = vdwg.mxu0
    %286 = vmatpush.msra.mxu0 0.0
    %287 = vmatpush.msra.mxu0 0.0
    %288 = vmatpush.msra.mxu0 0.0
    %289 = vmatpush.msra.mxu0 0.0
    %290 = vmatpush.msra.mxu0 0.0
    %291 = vmatpush.msra.mxu0 0.0
    %292 = vmatpush.msra.mxu0 0.0
    %293 = vmatpush.msra.mxu0 0.0
    %294 = vmatpush.msra.mxu0 0.0
    %295 = vmatpush.msra.mxu0 0.0
    %296 = vmatpush.msra.mxu0 0.0
    %297 = vmatpush.msra.mxu0 0.0
    %298 = vmatpush.msra.mxu0 0.0
    %299 = vmatpush.msra.mxu0 0.0
    %300 = vmatpush.msra.mxu0 %v127
    %301 = vmatpush.msra.mxu0 %v125
    %302 = vmatmul.f32.gmra.mxu0 %v144
    %v303 = vpop.f32.mrf.mxu0
    %v304 = vadd.f32 %v284, %v303
    %305 = vdwg.mxu0
    %v306 = vmax.f32 %v224, 0.0
    %v307 = vmax.f32 %v304, 0.0
    %v308 = vld [vmem:[%s3] sm:$0xff]
    %v309 = vld [vmem:[%s3 + $0x8] sm:$0xff]
    %v310 = vld [vmem:[%s3 + $0x10] sm:$0xff]
    %v311 = vld [vmem:[%s3 + $0x18] sm:$0xff]
    %v312 = vld [vmem:[%s3 + $0x20] sm:$0xff]
    %v313 = vld [vmem:[%s3 + $0x28] sm:$0xff]
    %v314 = vld [vmem:[%s3 + $0x30] sm:$0xff]
    %v315 = vld [vmem:[%s3 + $0x38] sm:$0xff]
    %v316 = vld [vmem:[%s3 + $0x40] sm:$0xff]
    %v317 = vld [vmem:[%s3 + $0x48] sm:$0xff]
    %v318 = vld [vmem:[%s3 + $0x50] sm:$0xff]
    %v319 = vld [vmem:[%s3 + $0x58] sm:$0xff]
    %v320 = vld [vmem:[%s3 + $0x60] sm:$0xff]
    %v321 = vld [vmem:[%s3 + $0x68] sm:$0xff]
    %v322 = vld [vmem:[%s3 + $0x70] sm:$0xff]
    %v323 = vld [vmem:[%s3 + $0x78] sm:$0xff]
    %v324 = vld [vmem:[%s3 + $0x80] sm:$0xff]
    %v325 = vld [vmem:[%s3 + $0x88] sm:$0xff]
    %v326 = vld [vmem:[%s3 + $0x90] sm:$0xff]
    %v327 = vld [vmem:[%s3 + $0x98] sm:$0xff]
    %v328 = vld [vmem:[%s3 + $0xa0] sm:$0xff]
    %v329 = vld [vmem:[%s3 + $0xa8] sm:$0xff]
    %v330 = vld [vmem:[%s3 + $0xb0] sm:$0xff]
    %v331 = vld [vmem:[%s3 + $0xb8] sm:$0xff]
    %v332 = vld [vmem:[%s3 + $0xc0] sm:$0xff]
    %v333 = vld [vmem:[%s3 + $0xc8] sm:$0xff]
    %v334 = vld [vmem:[%s3 + $0xd0] sm:$0xff]
    %v335 = vld [vmem:[%s3 + $0xd8] sm:$0xff]
    %v336 = vld [vmem:[%s3 + $0xe0] sm:$0xff]
    %v337 = vld [vmem:[%s3 + $0xe8] sm:$0xff]
    %v338 = vld [vmem:[%s3 + $0xf0] sm:$0xff]
    %v339 = vld [vmem:[%s3 + $0xf8] sm:$0xff]
    %v340 = vld [vmem:[%s3 + $0x100] sm:$0xff]
    %v341 = vld [vmem:[%s3 + $0x108] sm:$0xff]
    %v342 = vld [vmem:[%s3 + $0x110] sm:$0xff]
    %v343 = vld [vmem:[%s3 + $0x118] sm:$0xff]
    %v344 = vld [vmem:[%s3 + $0x120] sm:$0xff]
    %v345 = vld [vmem:[%s3 + $0x128] sm:$0xff]
    %v346 = vld [vmem:[%s3 + $0x130] sm:$0xff]
    %v347 = vld [vmem:[%s3 + $0x138] sm:$0xff]
    %v348 = vld [vmem:[%s3 + $0x140] sm:$0xff]
    %v349 = vld [vmem:[%s3 + $0x148] sm:$0xff]
    %v350 = vld [vmem:[%s3 + $0x150] sm:$0xff]
    %v351 = vld [vmem:[%s3 + $0x158] sm:$0xff]
    %v352 = vld [vmem:[%s3 + $0x160] sm:$0xff]
    %v353 = vld [vmem:[%s3 + $0x168] sm:$0xff]
    %v354 = vld [vmem:[%s3 + $0x170] sm:$0xff]
    %v355 = vld [vmem:[%s3 + $0x178] sm:$0xff]
    %v356 = vld [vmem:[%s3 + $0x180] sm:$0xff]
    %v357 = vld [vmem:[%s3 + $0x188] sm:$0xff]
    %v358 = vld [vmem:[%s3 + $0x190] sm:$0xff]
    %v359 = vld [vmem:[%s3 + $0x198] sm:$0xff]
    %v360 = vld [vmem:[%s3 + $0x1a0] sm:$0xff]
    %v361 = vld [vmem:[%s3 + $0x1a8] sm:$0xff]
    %v362 = vld [vmem:[%s3 + $0x1b0] sm:$0xff]
    %v363 = vld [vmem:[%s3 + $0x1b8] sm:$0xff]
    %v364 = vld [vmem:[%s3 + $0x1c0] sm:$0xff]
    %v365 = vld [vmem:[%s3 + $0x1c8] sm:$0xff]
    %v366 = vld [vmem:[%s3 + $0x1d0] sm:$0xff]
    %v367 = vld [vmem:[%s3 + $0x1d8] sm:$0xff]
    %v368 = vld [vmem:[%s3 + $0x1e0] sm:$0xff]
    %v369 = vld [vmem:[%s3 + $0x1e8] sm:$0xff]
    %v370 = vld [vmem:[%s3 + $0x1f0] sm:$0xff]
    %v371 = vld [vmem:[%s3 + $0x1f8] sm:$0xff]
    %v372 = vld [vmem:[%s3 + $0x200] sm:$0xff]
    %v373 = vld [vmem:[%s3 + $0x208] sm:$0xff]
    %v374 = vld [vmem:[%s3 + $0x210] sm:$0xff]
    %v375 = vld [vmem:[%s3 + $0x218] sm:$0xff]
    %v376 = vld [vmem:[%s3 + $0x220] sm:$0xff]
    %v377 = vld [vmem:[%s3 + $0x228] sm:$0xff]
    %v378 = vld [vmem:[%s3 + $0x230] sm:$0xff]
    %v379 = vld [vmem:[%s3 + $0x238] sm:$0xff]
    %v380 = vld [vmem:[%s3 + $0x240] sm:$0xff]
    %v381 = vld [vmem:[%s3 + $0x248] sm:$0xff]
    %v382 = vld [vmem:[%s3 + $0x250] sm:$0xff]
    %v383 = vld [vmem:[%s3 + $0x258] sm:$0xff]
    %v384 = vld [vmem:[%s3 + $0x260] sm:$0xff]
    %v385 = vld [vmem:[%s3 + $0x268] sm:$0xff]
    %v386 = vld [vmem:[%s3 + $0x270] sm:$0xff]
    %v387 = vld [vmem:[%s3 + $0x278] sm:$0xff]
    %v388 = vld [vmem:[%s3 + $0x280] sm:$0xff]
    %v389 = vld [vmem:[%s3 + $0x288] sm:$0xff]
    %v390 = vld [vmem:[%s3 + $0x290] sm:$0xff]
    %v391 = vld [vmem:[%s3 + $0x298] sm:$0xff]
    %v392 = vld [vmem:[%s3 + $0x2a0] sm:$0xff]
    %v393 = vld [vmem:[%s3 + $0x2a8] sm:$0xff]
    %v394 = vld [vmem:[%s3 + $0x2b0] sm:$0xff]
    %v395 = vld [vmem:[%s3 + $0x2b8] sm:$0xff]
    %v396 = vld [vmem:[%s3 + $0x2c0] sm:$0xff]
    %v397 = vld [vmem:[%s3 + $0x2c8] sm:$0xff]
    %v398 = vld [vmem:[%s3 + $0x2d0] sm:$0xff]
    %v399 = vld [vmem:[%s3 + $0x2d8] sm:$0xff]
    %v400 = vld [vmem:[%s3 + $0x2e0] sm:$0xff]
    %v401 = vld [vmem:[%s3 + $0x2e8] sm:$0xff]
    %v402 = vld [vmem:[%s3 + $0x2f0] sm:$0xff]
    %v403 = vld [vmem:[%s3 + $0x2f8] sm:$0xff]
    %v404 = vld [vmem:[%s3 + $0x300] sm:$0xff]
    %v405 = vld [vmem:[%s3 + $0x308] sm:$0xff]
    %v406 = vld [vmem:[%s3 + $0x310] sm:$0xff]
    %v407 = vld [vmem:[%s3 + $0x318] sm:$0xff]
    %v408 = vld [vmem:[%s3 + $0x320] sm:$0xff]
    %v409 = vld [vmem:[%s3 + $0x328] sm:$0xff]
    %v410 = vld [vmem:[%s3 + $0x330] sm:$0xff]
    %v411 = vld [vmem:[%s3 + $0x338] sm:$0xff]
    %v412 = vld [vmem:[%s3 + $0x340] sm:$0xff]
    %v413 = vld [vmem:[%s3 + $0x348] sm:$0xff]
    %v414 = vld [vmem:[%s3 + $0x350] sm:$0xff]
    %v415 = vld [vmem:[%s3 + $0x358] sm:$0xff]
    %v416 = vld [vmem:[%s3 + $0x360] sm:$0xff]
    %v417 = vld [vmem:[%s3 + $0x368] sm:$0xff]
    %v418 = vld [vmem:[%s3 + $0x370] sm:$0xff]
    %v419 = vld [vmem:[%s3 + $0x378] sm:$0xff]
    %v420 = vld [vmem:[%s3 + $0x380] sm:$0xff]
    %v421 = vld [vmem:[%s3 + $0x388] sm:$0xff]
    %v422 = vld [vmem:[%s3 + $0x390] sm:$0xff]
    %v423 = vld [vmem:[%s3 + $0x398] sm:$0xff]
    %v424 = vld [vmem:[%s3 + $0x3a0] sm:$0xff]
    %v425 = vld [vmem:[%s3 + $0x3a8] sm:$0xff]
    %v426 = vld [vmem:[%s3 + $0x3b0] sm:$0xff]
    %v427 = vld [vmem:[%s3 + $0x3b8] sm:$0xff]
    %v428 = vld [vmem:[%s3 + $0x3c0] sm:$0xff]
    %v429 = vld [vmem:[%s3 + $0x3c8] sm:$0xff]
    %v430 = vld [vmem:[%s3 + $0x3d0] sm:$0xff]
    %v431 = vld [vmem:[%s3 + $0x3d8] sm:$0xff]
    %v432 = vld [vmem:[%s3 + $0x3e0] sm:$0xff]
    %v433 = vld [vmem:[%s3 + $0x3e8] sm:$0xff]
    %v434 = vld [vmem:[%s3 + $0x3f0] sm:$0xff]
    %v435 = vld [vmem:[%s3 + $0x3f8] sm:$0xff]
    %v436 = vld [vmem:[%s4] sm:$0xf]
    %v438 = vperm.slane %v436, 0
    %v439 = vperm.slane %v436, 1
    %v440 = vperm.slane %v436, 2
    %v441 = vperm.slane %v436, 3
    %446 = vmatpush.msra.mxu0 %v368
    %447 = vmatpush.msra.mxu0 %v364
    %448 = vmatpush.msra.mxu0 %v360
    %449 = vmatpush.msra.mxu0 %v356
    %450 = vmatpush.msra.mxu0 %v352
    %451 = vmatpush.msra.mxu0 %v348
    %452 = vmatpush.msra.mxu0 %v344
    %453 = vmatpush.msra.mxu0 %v340
    %454 = vmatpush.msra.mxu0 %v336
    %455 = vmatpush.msra.mxu0 %v332
    %456 = vmatpush.msra.mxu0 %v328
    %457 = vmatpush.msra.mxu0 %v324
    %458 = vmatpush.msra.mxu0 %v320
    %459 = vmatpush.msra.mxu0 %v316
    %460 = vmatpush.msra.mxu0 %v312
    %461 = vmatpush.msra.mxu0 %v308
    %462 = vmatmul.f32.gmra.mxu0 %v306
    %v463 = vpop.f32.mrf.mxu0
    %v464 = vadd.f32 %v438, %v463
    %465 = vdwg.mxu0
    %466 = vmatpush.msra.mxu0 %v432
    %467 = vmatpush.msra.mxu0 %v428
    %468 = vmatpush.msra.mxu0 %v424
    %469 = vmatpush.msra.mxu0 %v420
    %470 = vmatpush.msra.mxu0 %v416
    %471 = vmatpush.msra.mxu0 %v412
    %472 = vmatpush.msra.mxu0 %v408
    %473 = vmatpush.msra.mxu0 %v404
    %474 = vmatpush.msra.mxu0 %v400
    %475 = vmatpush.msra.mxu0 %v396
    %476 = vmatpush.msra.mxu0 %v392
    %477 = vmatpush.msra.mxu0 %v388
    %478 = vmatpush.msra.mxu0 %v384
    %479 = vmatpush.msra.mxu0 %v380
    %480 = vmatpush.msra.mxu0 %v376
    %481 = vmatpush.msra.mxu0 %v372
    %482 = vmatmul.f32.gmra.mxu0 %v307
    %v483 = vpop.f32.mrf.mxu0
    %v484 = vadd.f32 %v464, %v483
    %485 = vdwg.mxu0
    %486 = vmatpush.msra.mxu0 %v369
    %487 = vmatpush.msra.mxu0 %v365
    %488 = vmatpush.msra.mxu0 %v361
    %489 = vmatpush.msra.mxu0 %v357
    %490 = vmatpush.msra.mxu0 %v353
    %491 = vmatpush.msra.mxu0 %v349
    %492 = vmatpush.msra.mxu0 %v345
    %493 = vmatpush.msra.mxu0 %v341
    %494 = vmatpush.msra.mxu0 %v337
    %495 = vmatpush.msra.mxu0 %v333
    %496 = vmatpush.msra.mxu0 %v329
    %497 = vmatpush.msra.mxu0 %v325
    %498 = vmatpush.msra.mxu0 %v321
    %499 = vmatpush.msra.mxu0 %v317
    %500 = vmatpush.msra.mxu0 %v313
    %501 = vmatpush.msra.mxu0 %v309
    %502 = vmatmul.f32.gmra.mxu0 %v306
    %v503 = vpop.f32.mrf.mxu0
    %v504 = vadd.f32 %v439, %v503
    %505 = vdwg.mxu0
    %506 = vmatpush.msra.mxu0 %v433
    %507 = vmatpush.msra.mxu0 %v429
    %508 = vmatpush.msra.mxu0 %v425
    %509 = vmatpush.msra.mxu0 %v421
    %510 = vmatpush.msra.mxu0 %v417
    %511 = vmatpush.msra.mxu0 %v413
    %512 = vmatpush.msra.mxu0 %v409
    %513 = vmatpush.msra.mxu0 %v405
    %514 = vmatpush.msra.mxu0 %v401
    %515 = vmatpush.msra.mxu0 %v397
    %516 = vmatpush.msra.mxu0 %v393
    %517 = vmatpush.msra.mxu0 %v389
    %518 = vmatpush.msra.mxu0 %v385
    %519 = vmatpush.msra.mxu0 %v381
    %520 = vmatpush.msra.mxu0 %v377
    %521 = vmatpush.msra.mxu0 %v373
    %522 = vmatmul.f32.gmra.mxu0 %v307
    %v523 = vpop.f32.mrf.mxu0
    %v524 = vadd.f32 %v504, %v523
    %525 = vdwg.mxu0
    %526 = vmatpush.msra.mxu0 %v370
    %527 = vmatpush.msra.mxu0 %v366
    %528 = vmatpush.msra.mxu0 %v362
    %529 = vmatpush.msra.mxu0 %v358
    %530 = vmatpush.msra.mxu0 %v354
    %531 = vmatpush.msra.mxu0 %v350
    %532 = vmatpush.msra.mxu0 %v346
    %533 = vmatpush.msra.mxu0 %v342
    %534 = vmatpush.msra.mxu0 %v338
    %535 = vmatpush.msra.mxu0 %v334
    %536 = vmatpush.msra.mxu0 %v330
    %537 = vmatpush.msra.mxu0 %v326
    %538 = vmatpush.msra.mxu0 %v322
    %539 = vmatpush.msra.mxu0 %v318
    %540 = vmatpush.msra.mxu0 %v314
    %541 = vmatpush.msra.mxu0 %v310
    %542 = vmatmul.f32.gmra.mxu0 %v306
    %v543 = vpop.f32.mrf.mxu0
    %v544 = vadd.f32 %v440, %v543
    %545 = vdwg.mxu0
    %546 = vmatpush.msra.mxu0 %v434
    %547 = vmatpush.msra.mxu0 %v430
    %548 = vmatpush.msra.mxu0 %v426
    %549 = vmatpush.msra.mxu0 %v422
    %550 = vmatpush.msra.mxu0 %v418
    %551 = vmatpush.msra.mxu0 %v414
    %552 = vmatpush.msra.mxu0 %v410
    %553 = vmatpush.msra.mxu0 %v406
    %554 = vmatpush.msra.mxu0 %v402
    %555 = vmatpush.msra.mxu0 %v398
    %556 = vmatpush.msra.mxu0 %v394
    %557 = vmatpush.msra.mxu0 %v390
    %558 = vmatpush.msra.mxu0 %v386
    %559 = vmatpush.msra.mxu0 %v382
    %560 = vmatpush.msra.mxu0 %v378
    %561 = vmatpush.msra.mxu0 %v374
    %562 = vmatmul.f32.gmra.mxu0 %v307
    %v563 = vpop.f32.mrf.mxu0
    %v564 = vadd.f32 %v544, %v563
    %565 = vdwg.mxu0
    %566 = vmatpush.msra.mxu0 %v371
    %567 = vmatpush.msra.mxu0 %v367
    %568 = vmatpush.msra.mxu0 %v363
    %569 = vmatpush.msra.mxu0 %v359
    %570 = vmatpush.msra.mxu0 %v355
    %571 = vmatpush.msra.mxu0 %v351
    %572 = vmatpush.msra.mxu0 %v347
    %573 = vmatpush.msra.mxu0 %v343
    %574 = vmatpush.msra.mxu0 %v339
    %575 = vmatpush.msra.mxu0 %v335
    %576 = vmatpush.msra.mxu0 %v331
    %577 = vmatpush.msra.mxu0 %v327
    %578 = vmatpush.msra.mxu0 %v323
    %579 = vmatpush.msra.mxu0 %v319
    %580 = vmatpush.msra.mxu0 %v315
    %581 = vmatpush.msra.mxu0 %v311
    %582 = vmatmul.f32.gmra.mxu0 %v306
    %v583 = vpop.f32.mrf.mxu0
    %v584 = vadd.f32 %v441, %v583
    %585 = vdwg.mxu0
    %586 = vmatpush.msra.mxu0 %v435
    %587 = vmatpush.msra.mxu0 %v431
    %588 = vmatpush.msra.mxu0 %v427
    %589 = vmatpush.msra.mxu0 %v423
    %590 = vmatpush.msra.mxu0 %v419
    %591 = vmatpush.msra.mxu0 %v415
    %592 = vmatpush.msra.mxu0 %v411
    %593 = vmatpush.msra.mxu0 %v407
    %594 = vmatpush.msra.mxu0 %v403
    %595 = vmatpush.msra.mxu0 %v399
    %596 = vmatpush.msra.mxu0 %v395
    %597 = vmatpush.msra.mxu0 %v391
    %598 = vmatpush.msra.mxu0 %v387
    %599 = vmatpush.msra.mxu0 %v383
    %600 = vmatpush.msra.mxu0 %v379
    %601 = vmatpush.msra.mxu0 %v375
    %602 = vmatmul.f32.gmra.mxu0 %v307
    %v603 = vpop.f32.mrf.mxu0
    %v604 = vadd.f32 %v584, %v603
    %605 = vdwg.mxu0
    %v606 = vmax.f32 %v484, 0.0
    %v607 = vmax.f32 %v524, 0.0
    %v608 = vmax.f32 %v564, 0.0
    %v609 = vmax.f32 %v604, 0.0
    %v610 = vld [vmem:[%s5] sm:$0xff]
    %v611 = vld [vmem:[%s5 + $0x8] sm:$0xff]
    %v612 = vld [vmem:[%s5 + $0x10] sm:$0xff]
    %v613 = vld [vmem:[%s5 + $0x18] sm:$0xff]
    %v614 = vld [vmem:[%s5 + $0x20] sm:$0xff]
    %v615 = vld [vmem:[%s5 + $0x28] sm:$0xff]
    %v616 = vld [vmem:[%s5 + $0x30] sm:$0xff]
    %v617 = vld [vmem:[%s5 + $0x38] sm:$0xff]
    %v618 = vld [vmem:[%s5 + $0x40] sm:$0xff]
    %v619 = vld [vmem:[%s5 + $0x48] sm:$0xff]
    %v620 = vld [vmem:[%s5 + $0x50] sm:$0xff]
    %v621 = vld [vmem:[%s5 + $0x58] sm:$0xff]
    %v622 = vld [vmem:[%s5 + $0x60] sm:$0xff]
    %v623 = vld [vmem:[%s5 + $0x68] sm:$0xff]
    %v624 = vld [vmem:[%s5 + $0x70] sm:$0xff]
    %v625 = vld [vmem:[%s5 + $0x78] sm:$0xff]
    %v626 = vld [vmem:[%s5 + $0x80] sm:$0xff]
    %v627 = vld [vmem:[%s5 + $0x88] sm:$0xff]
    %v628 = vld [vmem:[%s5 + $0x90] sm:$0xff]
    %v629 = vld [vmem:[%s5 + $0x98] sm:$0xff]
    %v630 = vld [vmem:[%s5 + $0xa0] sm:$0xff]
    %v631 = vld [vmem:[%s5 + $0xa8] sm:$0xff]
    %v632 = vld [vmem:[%s5 + $0xb0] sm:$0xff]
    %v633 = vld [vmem:[%s5 + $0xb8] sm:$0xff]
    %v634 = vld [vmem:[%s5 + $0xc0] sm:$0xff]
    %v635 = vld [vmem:[%s5 + $0xc8] sm:$0xff]
    %v636 = vld [vmem:[%s5 + $0xd0] sm:$0xff]
    %v637 = vld [vmem:[%s5 + $0xd8] sm:$0xff]
    %v638 = vld [vmem:[%s5 + $0xe0] sm:$0xff]
    %v639 = vld [vmem:[%s5 + $0xe8] sm:$0xff]
    %v640 = vld [vmem:[%s5 + $0xf0] sm:$0xff]
    %v641 = vld [vmem:[%s5 + $0xf8] sm:$0xff]
    %v642 = vld [vmem:[%s5 + $0x100] sm:$0xff]
    %v643 = vld [vmem:[%s5 + $0x108] sm:$0xff]
    %v644 = vld [vmem:[%s5 + $0x110] sm:$0xff]
    %v645 = vld [vmem:[%s5 + $0x118] sm:$0xff]
    %v646 = vld [vmem:[%s5 + $0x120] sm:$0xff]
    %v647 = vld [vmem:[%s5 + $0x128] sm:$0xff]
    %v648 = vld [vmem:[%s5 + $0x130] sm:$0xff]
    %v649 = vld [vmem:[%s5 + $0x138] sm:$0xff]
    %v650 = vld [vmem:[%s5 + $0x140] sm:$0xff]
    %v651 = vld [vmem:[%s5 + $0x148] sm:$0xff]
    %v652 = vld [vmem:[%s5 + $0x150] sm:$0xff]
    %v653 = vld [vmem:[%s5 + $0x158] sm:$0xff]
    %v654 = vld [vmem:[%s5 + $0x160] sm:$0xff]
    %v655 = vld [vmem:[%s5 + $0x168] sm:$0xff]
    %v656 = vld [vmem:[%s5 + $0x170] sm:$0xff]
    %v657 = vld [vmem:[%s5 + $0x178] sm:$0xff]
    %v658 = vld [vmem:[%s5 + $0x180] sm:$0xff]
    %v659 = vld [vmem:[%s5 + $0x188] sm:$0xff]
    %v660 = vld [vmem:[%s5 + $0x190] sm:$0xff]
    %v661 = vld [vmem:[%s5 + $0x198] sm:$0xff]
    %v662 = vld [vmem:[%s5 + $0x1a0] sm:$0xff]
    %v663 = vld [vmem:[%s5 + $0x1a8] sm:$0xff]
    %v664 = vld [vmem:[%s5 + $0x1b0] sm:$0xff]
    %v665 = vld [vmem:[%s5 + $0x1b8] sm:$0xff]
    %v666 = vld [vmem:[%s5 + $0x1c0] sm:$0xff]
    %v667 = vld [vmem:[%s5 + $0x1c8] sm:$0xff]
    %v668 = vld [vmem:[%s5 + $0x1d0] sm:$0xff]
    %v669 = vld [vmem:[%s5 + $0x1d8] sm:$0xff]
    %v670 = vld [vmem:[%s5 + $0x1e0] sm:$0xff]
    %v671 = vld [vmem:[%s5 + $0x1e8] sm:$0xff]
    %v672 = vld [vmem:[%s5 + $0x1f0] sm:$0xff]
    %v673 = vld [vmem:[%s5 + $0x1f8] sm:$0xff]
    %v674 = vld [vmem:[%s5 + $0x200] sm:$0xff]
    %v675 = vld [vmem:[%s5 + $0x208] sm:$0xff]
    %v676 = vld [vmem:[%s5 + $0x210] sm:$0xff]
    %v677 = vld [vmem:[%s5 + $0x218] sm:$0xff]
    %v678 = vld [vmem:[%s5 + $0x220] sm:$0xff]
    %v679 = vld [vmem:[%s5 + $0x228] sm:$0xff]
    %v680 = vld [vmem:[%s5 + $0x230] sm:$0xff]
    %v681 = vld [vmem:[%s5 + $0x238] sm:$0xff]
    %v682 = vld [vmem:[%s5 + $0x240] sm:$0xff]
    %v683 = vld [vmem:[%s5 + $0x248] sm:$0xff]
    %v684 = vld [vmem:[%s5 + $0x250] sm:$0xff]
    %v685 = vld [vmem:[%s5 + $0x258] sm:$0xff]
    %v686 = vld [vmem:[%s5 + $0x260] sm:$0xff]
    %v687 = vld [vmem:[%s5 + $0x268] sm:$0xff]
    %v688 = vld [vmem:[%s5 + $0x270] sm:$0xff]
    %v689 = vld [vmem:[%s5 + $0x278] sm:$0xff]
    %v690 = vld [vmem:[%s5 + $0x280] sm:$0xff]
    %v691 = vld [vmem:[%s5 + $0x288] sm:$0xff]
    %v692 = vld [vmem:[%s5 + $0x290] sm:$0xff]
    %v693 = vld [vmem:[%s5 + $0x298] sm:$0xff]
    %v694 = vld [vmem:[%s5 + $0x2a0] sm:$0xff]
    %v695 = vld [vmem:[%s5 + $0x2a8] sm:$0xff]
    %v696 = vld [vmem:[%s5 + $0x2b0] sm:$0xff]
    %v697 = vld [vmem:[%s5 + $0x2b8] sm:$0xff]
    %v698 = vld [vmem:[%s5 + $0x2c0] sm:$0xff]
    %v699 = vld [vmem:[%s5 + $0x2c8] sm:$0xff]
    %v700 = vld [vmem:[%s5 + $0x2d0] sm:$0xff]
    %v701 = vld [vmem:[%s5 + $0x2d8] sm:$0xff]
    %v702 = vld [vmem:[%s5 + $0x2e0] sm:$0xff]
    %v703 = vld [vmem:[%s5 + $0x2e8] sm:$0xff]
    %v704 = vld [vmem:[%s5 + $0x2f0] sm:$0xff]
    %v705 = vld [vmem:[%s5 + $0x2f8] sm:$0xff]
    %v706 = vld [vmem:[%s5 + $0x300] sm:$0xff]
    %v707 = vld [vmem:[%s5 + $0x308] sm:$0xff]
    %v708 = vld [vmem:[%s5 + $0x310] sm:$0xff]
    %v709 = vld [vmem:[%s5 + $0x318] sm:$0xff]
    %v710 = vld [vmem:[%s5 + $0x320] sm:$0xff]
    %v711 = vld [vmem:[%s5 + $0x328] sm:$0xff]
    %v712 = vld [vmem:[%s5 + $0x330] sm:$0xff]
    %v713 = vld [vmem:[%s5 + $0x338] sm:$0xff]
    %v714 = vld [vmem:[%s5 + $0x340] sm:$0xff]
    %v715 = vld [vmem:[%s5 + $0x348] sm:$0xff]
    %v716 = vld [vmem:[%s5 + $0x350] sm:$0xff]
    %v717 = vld [vmem:[%s5 + $0x358] sm:$0xff]
    %v718 = vld [vmem:[%s5 + $0x360] sm:$0xff]
    %v719 = vld [vmem:[%s5 + $0x368] sm:$0xff]
    %v720 = vld [vmem:[%s5 + $0x370] sm:$0xff]
    %v721 = vld [vmem:[%s5 + $0x378] sm:$0xff]
    %v722 = vld [vmem:[%s5 + $0x380] sm:$0xff]
    %v723 = vld [vmem:[%s5 + $0x388] sm:$0xff]
    %v724 = vld [vmem:[%s5 + $0x390] sm:$0xff]
    %v725 = vld [vmem:[%s5 + $0x398] sm:$0xff]
    %v726 = vld [vmem:[%s5 + $0x3a0] sm:$0xff]
    %v727 = vld [vmem:[%s5 + $0x3a8] sm:$0xff]
    %v728 = vld [vmem:[%s5 + $0x3b0] sm:$0xff]
    %v729 = vld [vmem:[%s5 + $0x3b8] sm:$0xff]
    %v730 = vld [vmem:[%s5 + $0x3c0] sm:$0xff]
    %v731 = vld [vmem:[%s5 + $0x3c8] sm:$0xff]
    %v732 = vld [vmem:[%s5 + $0x3d0] sm:$0xff]
    %v733 = vld [vmem:[%s5 + $0x3d8] sm:$0xff]
    %v734 = vld [vmem:[%s5 + $0x3e0] sm:$0xff]
    %v735 = vld [vmem:[%s5 + $0x3e8] sm:$0xff]
    %v736 = vld [vmem:[%s5 + $0x3f0] sm:$0xff]
    %v737 = vld [vmem:[%s5 + $0x3f8] sm:$0xff]
    %v738 = vld [vmem:[%s5 + $0x400] sm:$0xff]
    %v739 = vld [vmem:[%s5 + $0x408] sm:$0xff]
    %v740 = vld [vmem:[%s5 + $0x410] sm:$0xff]
    %v741 = vld [vmem:[%s5 + $0x418] sm:$0xff]
    %v742 = vld [vmem:[%s5 + $0x420] sm:$0xff]
    %v743 = vld [vmem:[%s5 + $0x428] sm:$0xff]
    %v744 = vld [vmem:[%s5 + $0x430] sm:$0xff]
    %v745 = vld [vmem:[%s5 + $0x438] sm:$0xff]
    %v746 = vld [vmem:[%s5 + $0x440] sm:$0xff]
    %v747 = vld [vmem:[%s5 + $0x448] sm:$0xff]
    %v748 = vld [vmem:[%s5 + $0x450] sm:$0xff]
    %v749 = vld [vmem:[%s5 + $0x458] sm:$0xff]
    %v750 = vld [vmem:[%s5 + $0x460] sm:$0xff]
    %v751 = vld [vmem:[%s5 + $0x468] sm:$0xff]
    %v752 = vld [vmem:[%s5 + $0x470] sm:$0xff]
    %v753 = vld [vmem:[%s5 + $0x478] sm:$0xff]
    %v754 = vld [vmem:[%s5 + $0x480] sm:$0xff]
    %v755 = vld [vmem:[%s5 + $0x488] sm:$0xff]
    %v756 = vld [vmem:[%s5 + $0x490] sm:$0xff]
    %v757 = vld [vmem:[%s5 + $0x498] sm:$0xff]
    %v758 = vld [vmem:[%s5 + $0x4a0] sm:$0xff]
    %v759 = vld [vmem:[%s5 + $0x4a8] sm:$0xff]
    %v760 = vld [vmem:[%s5 + $0x4b0] sm:$0xff]
    %v761 = vld [vmem:[%s5 + $0x4b8] sm:$0xff]
    %v762 = vld [vmem:[%s5 + $0x4c0] sm:$0xff]
    %v763 = vld [vmem:[%s5 + $0x4c8] sm:$0xff]
    %v764 = vld [vmem:[%s5 + $0x4d0] sm:$0xff]
    %v765 = vld [vmem:[%s5 + $0x4d8] sm:$0xff]
    %v766 = vld [vmem:[%s5 + $0x4e0] sm:$0xff]
    %v767 = vld [vmem:[%s5 + $0x4e8] sm:$0xff]
    %v768 = vld [vmem:[%s5 + $0x4f0] sm:$0xff]
    %v769 = vld [vmem:[%s5 + $0x4f8] sm:$0xff]
    %v770 = vld [vmem:[%s5 + $0x500] sm:$0xff]
    %v771 = vld [vmem:[%s5 + $0x508] sm:$0xff]
    %v772 = vld [vmem:[%s5 + $0x510] sm:$0xff]
    %v773 = vld [vmem:[%s5 + $0x518] sm:$0xff]
    %v774 = vld [vmem:[%s5 + $0x520] sm:$0xff]
    %v775 = vld [vmem:[%s5 + $0x528] sm:$0xff]
    %v776 = vld [vmem:[%s5 + $0x530] sm:$0xff]
    %v777 = vld [vmem:[%s5 + $0x538] sm:$0xff]
    %v778 = vld [vmem:[%s5 + $0x540] sm:$0xff]
    %v779 = vld [vmem:[%s5 + $0x548] sm:$0xff]
    %v780 = vld [vmem:[%s5 + $0x550] sm:$0xff]
    %v781 = vld [vmem:[%s5 + $0x558] sm:$0xff]
    %v782 = vld [vmem:[%s5 + $0x560] sm:$0xff]
    %v783 = vld [vmem:[%s5 + $0x568] sm:$0xff]
    %v784 = vld [vmem:[%s5 + $0x570] sm:$0xff]
    %v785 = vld [vmem:[%s5 + $0x578] sm:$0xff]
    %v786 = vld [vmem:[%s5 + $0x580] sm:$0xff]
    %v787 = vld [vmem:[%s5 + $0x588] sm:$0xff]
    %v788 = vld [vmem:[%s5 + $0x590] sm:$0xff]
    %v789 = vld [vmem:[%s5 + $0x598] sm:$0xff]
    %v790 = vld [vmem:[%s5 + $0x5a0] sm:$0xff]
    %v791 = vld [vmem:[%s5 + $0x5a8] sm:$0xff]
    %v792 = vld [vmem:[%s5 + $0x5b0] sm:$0xff]
    %v793 = vld [vmem:[%s5 + $0x5b8] sm:$0xff]
    %v794 = vld [vmem:[%s5 + $0x5c0] sm:$0xff]
    %v795 = vld [vmem:[%s5 + $0x5c8] sm:$0xff]
    %v796 = vld [vmem:[%s5 + $0x5d0] sm:$0xff]
    %v797 = vld [vmem:[%s5 + $0x5d8] sm:$0xff]
    %v798 = vld [vmem:[%s5 + $0x5e0] sm:$0xff]
    %v799 = vld [vmem:[%s5 + $0x5e8] sm:$0xff]
    %v800 = vld [vmem:[%s5 + $0x5f0] sm:$0xff]
    %v801 = vld [vmem:[%s5 + $0x5f8] sm:$0xff]
    %v802 = vld [vmem:[%s5 + $0x600] sm:$0xff]
    %v803 = vld [vmem:[%s5 + $0x608] sm:$0xff]
    %v804 = vld [vmem:[%s5 + $0x610] sm:$0xff]
    %v805 = vld [vmem:[%s5 + $0x618] sm:$0xff]
    %v806 = vld [vmem:[%s5 + $0x620] sm:$0xff]
    %v807 = vld [vmem:[%s5 + $0x628] sm:$0xff]
    %v808 = vld [vmem:[%s5 + $0x630] sm:$0xff]
    %v809 = vld [vmem:[%s5 + $0x638] sm:$0xff]
    %v810 = vld [vmem:[%s5 + $0x640] sm:$0xff]
    %v811 = vld [vmem:[%s5 + $0x648] sm:$0xff]
    %v812 = vld [vmem:[%s5 + $0x650] sm:$0xff]
    %v813 = vld [vmem:[%s5 + $0x658] sm:$0xff]
    %v814 = vld [vmem:[%s5 + $0x660] sm:$0xff]
    %v815 = vld [vmem:[%s5 + $0x668] sm:$0xff]
    %v816 = vld [vmem:[%s5 + $0x670] sm:$0xff]
    %v817 = vld [vmem:[%s5 + $0x678] sm:$0xff]
    %v818 = vld [vmem:[%s5 + $0x680] sm:$0xff]
    %v819 = vld [vmem:[%s5 + $0x688] sm:$0xff]
    %v820 = vld [vmem:[%s5 + $0x690] sm:$0xff]
    %v821 = vld [vmem:[%s5 + $0x698] sm:$0xff]
    %v822 = vld [vmem:[%s5 + $0x6a0] sm:$0xff]
    %v823 = vld [vmem:[%s5 + $0x6a8] sm:$0xff]
    %v824 = vld [vmem:[%s5 + $0x6b0] sm:$0xff]
    %v825 = vld [vmem:[%s5 + $0x6b8] sm:$0xff]
    %v826 = vld [vmem:[%s5 + $0x6c0] sm:$0xff]
    %v827 = vld [vmem:[%s5 + $0x6c8] sm:$0xff]
    %v828 = vld [vmem:[%s5 + $0x6d0] sm:$0xff]
    %v829 = vld [vmem:[%s5 + $0x6d8] sm:$0xff]
    %v830 = vld [vmem:[%s5 + $0x6e0] sm:$0xff]
    %v831 = vld [vmem:[%s5 + $0x6e8] sm:$0xff]
    %v832 = vld [vmem:[%s5 + $0x6f0] sm:$0xff]
    %v833 = vld [vmem:[%s5 + $0x6f8] sm:$0xff]
    %v834 = vld [vmem:[%s5 + $0x700] sm:$0xff]
    %v835 = vld [vmem:[%s5 + $0x708] sm:$0xff]
    %v836 = vld [vmem:[%s5 + $0x710] sm:$0xff]
    %v837 = vld [vmem:[%s5 + $0x718] sm:$0xff]
    %v838 = vld [vmem:[%s5 + $0x720] sm:$0xff]
    %v839 = vld [vmem:[%s5 + $0x728] sm:$0xff]
    %v840 = vld [vmem:[%s5 + $0x730] sm:$0xff]
    %v841 = vld [vmem:[%s5 + $0x738] sm:$0xff]
    %v842 = vld [vmem:[%s5 + $0x740] sm:$0xff]
    %v843 = vld [vmem:[%s5 + $0x748] sm:$0xff]
    %v844 = vld [vmem:[%s5 + $0x750] sm:$0xff]
    %v845 = vld [vmem:[%s5 + $0x758] sm:$0xff]
    %v846 = vld [vmem:[%s5 + $0x760] sm:$0xff]
    %v847 = vld [vmem:[%s5 + $0x768] sm:$0xff]
    %v848 = vld [vmem:[%s5 + $0x770] sm:$0xff]
    %v849 = vld [vmem:[%s5 + $0x778] sm:$0xff]
    %v850 = vld [vmem:[%s5 + $0x780] sm:$0xff]
    %v851 = vld [vmem:[%s5 + $0x788] sm:$0xff]
    %v852 = vld [vmem:[%s5 + $0x790] sm:$0xff]
    %v853 = vld [vmem:[%s5 + $0x798] sm:$0xff]
    %v854 = vld [vmem:[%s5 + $0x7a0] sm:$0xff]
    %v855 = vld [vmem:[%s5 + $0x7a8] sm:$0xff]
    %v856 = vld [vmem:[%s5 + $0x7b0] sm:$0xff]
    %v857 = vld [vmem:[%s5 + $0x7b8] sm:$0xff]
    %v858 = vld [vmem:[%s5 + $0x7c0] sm:$0xff]
    %v859 = vld [vmem:[%s5 + $0x7c8] sm:$0xff]
    %v860 = vld [vmem:[%s5 + $0x7d0] sm:$0xff]
    %v861 = vld [vmem:[%s5 + $0x7d8] sm:$0xff]
    %v862 = vld [vmem:[%s5 + $0x7e0] sm:$0xff]
    %v863 = vld [vmem:[%s5 + $0x7e8] sm:$0xff]
    %v864 = vld [vmem:[%s5 + $0x7f0] sm:$0xff]
    %v865 = vld [vmem:[%s5 + $0x7f8] sm:$0xff]
    %v866 = vld [vmem:[%s5 + $0x800] sm:$0xff]
    %v867 = vld [vmem:[%s5 + $0x808] sm:$0xff]
    %v868 = vld [vmem:[%s5 + $0x810] sm:$0xff]
    %v869 = vld [vmem:[%s5 + $0x818] sm:$0xff]
    %v870 = vld [vmem:[%s5 + $0x820] sm:$0xff]
    %v871 = vld [vmem:[%s5 + $0x828] sm:$0xff]
    %v872 = vld [vmem:[%s5 + $0x830] sm:$0xff]
    %v873 = vld [vmem:[%s5 + $0x838] sm:$0xff]
    %v874 = vld [vmem:[%s5 + $0x840] sm:$0xff]
    %v875 = vld [vmem:[%s5 + $0x848] sm:$0xff]
    %v876 = vld [vmem:[%s5 + $0x850] sm:$0xff]
    %v877 = vld [vmem:[%s5 + $0x858] sm:$0xff]
    %v878 = vld [vmem:[%s5 + $0x860] sm:$0xff]
    %v879 = vld [vmem:[%s5 + $0x868] sm:$0xff]
    %v880 = vld [vmem:[%s5 + $0x870] sm:$0xff]
    %v881 = vld [vmem:[%s5 + $0x878] sm:$0xff]
    %v882 = vld [vmem:[%s5 + $0x880] sm:$0xff]
    %v883 = vld [vmem:[%s5 + $0x888] sm:$0xff]
    %v884 = vld [vmem:[%s5 + $0x890] sm:$0xff]
    %v885 = vld [vmem:[%s5 + $0x898] sm:$0xff]
    %v886 = vld [vmem:[%s5 + $0x8a0] sm:$0xff]
    %v887 = vld [vmem:[%s5 + $0x8a8] sm:$0xff]
    %v888 = vld [vmem:[%s5 + $0x8b0] sm:$0xff]
    %v889 = vld [vmem:[%s5 + $0x8b8] sm:$0xff]
    %v890 = vld [vmem:[%s5 + $0x8c0] sm:$0xff]
    %v891 = vld [vmem:[%s5 + $0x8c8] sm:$0xff]
    %v892 = vld [vmem:[%s5 + $0x8d0] sm:$0xff]
    %v893 = vld [vmem:[%s5 + $0x8d8] sm:$0xff]
    %v894 = vld [vmem:[%s5 + $0x8e0] sm:$0xff]
    %v895 = vld [vmem:[%s5 + $0x8e8] sm:$0xff]
    %v896 = vld [vmem:[%s5 + $0x8f0] sm:$0xff]
    %v897 = vld [vmem:[%s5 + $0x8f8] sm:$0xff]
    %v898 = vld [vmem:[%s5 + $0x900] sm:$0xff]
    %v899 = vld [vmem:[%s5 + $0x908] sm:$0xff]
    %v900 = vld [vmem:[%s5 + $0x910] sm:$0xff]
    %v901 = vld [vmem:[%s5 + $0x918] sm:$0xff]
    %v902 = vld [vmem:[%s5 + $0x920] sm:$0xff]
    %v903 = vld [vmem:[%s5 + $0x928] sm:$0xff]
    %v904 = vld [vmem:[%s5 + $0x930] sm:$0xff]
    %v905 = vld [vmem:[%s5 + $0x938] sm:$0xff]
    %v906 = vld [vmem:[%s5 + $0x940] sm:$0xff]
    %v907 = vld [vmem:[%s5 + $0x948] sm:$0xff]
    %v908 = vld [vmem:[%s5 + $0x950] sm:$0xff]
    %v909 = vld [vmem:[%s5 + $0x958] sm:$0xff]
    %v910 = vld [vmem:[%s5 + $0x960] sm:$0xff]
    %v911 = vld [vmem:[%s5 + $0x968] sm:$0xff]
    %v912 = vld [vmem:[%s5 + $0x970] sm:$0xff]
    %v913 = vld [vmem:[%s5 + $0x978] sm:$0xff]
    %v914 = vld [vmem:[%s5 + $0x980] sm:$0xff]
    %v915 = vld [vmem:[%s5 + $0x988] sm:$0xff]
    %v916 = vld [vmem:[%s5 + $0x990] sm:$0xff]
    %v917 = vld [vmem:[%s5 + $0x998] sm:$0xff]
    %v918 = vld [vmem:[%s5 + $0x9a0] sm:$0xff]
    %v919 = vld [vmem:[%s5 + $0x9a8] sm:$0xff]
    %v920 = vld [vmem:[%s5 + $0x9b0] sm:$0xff]
    %v921 = vld [vmem:[%s5 + $0x9b8] sm:$0xff]
    %v922 = vld [vmem:[%s5 + $0x9c0] sm:$0xff]
    %v923 = vld [vmem:[%s5 + $0x9c8] sm:$0xff]
    %v924 = vld [vmem:[%s5 + $0x9d0] sm:$0xff]
    %v925 = vld [vmem:[%s5 + $0x9d8] sm:$0xff]
    %v926 = vld [vmem:[%s5 + $0x9e0] sm:$0xff]
    %v927 = vld [vmem:[%s5 + $0x9e8] sm:$0xff]
    %v928 = vld [vmem:[%s5 + $0x9f0] sm:$0xff]
    %v929 = vld [vmem:[%s5 + $0x9f8] sm:$0xff]
    %v930 = vld [vmem:[%s5 + $0xa00] sm:$0xff]
    %v931 = vld [vmem:[%s5 + $0xa08] sm:$0xff]
    %v932 = vld [vmem:[%s5 + $0xa10] sm:$0xff]
    %v933 = vld [vmem:[%s5 + $0xa18] sm:$0xff]
    %v934 = vld [vmem:[%s5 + $0xa20] sm:$0xff]
    %v935 = vld [vmem:[%s5 + $0xa28] sm:$0xff]
    %v936 = vld [vmem:[%s5 + $0xa30] sm:$0xff]
    %v937 = vld [vmem:[%s5 + $0xa38] sm:$0xff]
    %v938 = vld [vmem:[%s5 + $0xa40] sm:$0xff]
    %v939 = vld [vmem:[%s5 + $0xa48] sm:$0xff]
    %v940 = vld [vmem:[%s5 + $0xa50] sm:$0xff]
    %v941 = vld [vmem:[%s5 + $0xa58] sm:$0xff]
    %v942 = vld [vmem:[%s5 + $0xa60] sm:$0xff]
    %v943 = vld [vmem:[%s5 + $0xa68] sm:$0xff]
    %v944 = vld [vmem:[%s5 + $0xa70] sm:$0xff]
    %v945 = vld [vmem:[%s5 + $0xa78] sm:$0xff]
    %v946 = vld [vmem:[%s5 + $0xa80] sm:$0xff]
    %v947 = vld [vmem:[%s5 + $0xa88] sm:$0xff]
    %v948 = vld [vmem:[%s5 + $0xa90] sm:$0xff]
    %v949 = vld [vmem:[%s5 + $0xa98] sm:$0xff]
    %v950 = vld [vmem:[%s5 + $0xaa0] sm:$0xff]
    %v951 = vld [vmem:[%s5 + $0xaa8] sm:$0xff]
    %v952 = vld [vmem:[%s5 + $0xab0] sm:$0xff]
    %v953 = vld [vmem:[%s5 + $0xab8] sm:$0xff]
    %v954 = vld [vmem:[%s5 + $0xac0] sm:$0xff]
    %v955 = vld [vmem:[%s5 + $0xac8] sm:$0xff]
    %v956 = vld [vmem:[%s5 + $0xad0] sm:$0xff]
    %v957 = vld [vmem:[%s5 + $0xad8] sm:$0xff]
    %v958 = vld [vmem:[%s5 + $0xae0] sm:$0xff]
    %v959 = vld [vmem:[%s5 + $0xae8] sm:$0xff]
    %v960 = vld [vmem:[%s5 + $0xaf0] sm:$0xff]
    %v961 = vld [vmem:[%s5 + $0xaf8] sm:$0xff]
    %v962 = vld [vmem:[%s5 + $0xb00] sm:$0xff]
    %v963 = vld [vmem:[%s5 + $0xb08] sm:$0xff]
    %v964 = vld [vmem:[%s5 + $0xb10] sm:$0xff]
    %v965 = vld [vmem:[%s5 + $0xb18] sm:$0xff]
    %v966 = vld [vmem:[%s5 + $0xb20] sm:$0xff]
    %v967 = vld [vmem:[%s5 + $0xb28] sm:$0xff]
    %v968 = vld [vmem:[%s5 + $0xb30] sm:$0xff]
    %v969 = vld [vmem:[%s5 + $0xb38] sm:$0xff]
    %v970 = vld [vmem:[%s5 + $0xb40] sm:$0xff]
    %v971 = vld [vmem:[%s5 + $0xb48] sm:$0xff]
    %v972 = vld [vmem:[%s5 + $0xb50] sm:$0xff]
    %v973 = vld [vmem:[%s5 + $0xb58] sm:$0xff]
    %v974 = vld [vmem:[%s5 + $0xb60] sm:$0xff]
    %v975 = vld [vmem:[%s5 + $0xb68] sm:$0xff]
    %v976 = vld [vmem:[%s5 + $0xb70] sm:$0xff]
    %v977 = vld [vmem:[%s5 + $0xb78] sm:$0xff]
    %v978 = vld [vmem:[%s5 + $0xb80] sm:$0xff]
    %v979 = vld [vmem:[%s5 + $0xb88] sm:$0xff]
    %v980 = vld [vmem:[%s5 + $0xb90] sm:$0xff]
    %v981 = vld [vmem:[%s5 + $0xb98] sm:$0xff]
    %v982 = vld [vmem:[%s5 + $0xba0] sm:$0xff]
    %v983 = vld [vmem:[%s5 + $0xba8] sm:$0xff]
    %v984 = vld [vmem:[%s5 + $0xbb0] sm:$0xff]
    %v985 = vld [vmem:[%s5 + $0xbb8] sm:$0xff]
    %v986 = vld [vmem:[%s5 + $0xbc0] sm:$0xff]
    %v987 = vld [vmem:[%s5 + $0xbc8] sm:$0xff]
    %v988 = vld [vmem:[%s5 + $0xbd0] sm:$0xff]
    %v989 = vld [vmem:[%s5 + $0xbd8] sm:$0xff]
    %v990 = vld [vmem:[%s5 + $0xbe0] sm:$0xff]
    %v991 = vld [vmem:[%s5 + $0xbe8] sm:$0xff]
    %v992 = vld [vmem:[%s5 + $0xbf0] sm:$0xff]
    %v993 = vld [vmem:[%s5 + $0xbf8] sm:$0xff]
    %v994 = vld [vmem:[%s5 + $0xc00] sm:$0xff]
    %v995 = vld [vmem:[%s5 + $0xc08] sm:$0xff]
    %v996 = vld [vmem:[%s5 + $0xc10] sm:$0xff]
    %v997 = vld [vmem:[%s5 + $0xc18] sm:$0xff]
    %v998 = vld [vmem:[%s5 + $0xc20] sm:$0xff]
    %v999 = vld [vmem:[%s5 + $0xc28] sm:$0xff]
    %v1000 = vld [vmem:[%s5 + $0xc30] sm:$0xff]
    %v1001 = vld [vmem:[%s5 + $0xc38] sm:$0xff]
    %v1002 = vld [vmem:[%s5 + $0xc40] sm:$0xff]
    %v1003 = vld [vmem:[%s5 + $0xc48] sm:$0xff]
    %v1004 = vld [vmem:[%s5 + $0xc50] sm:$0xff]
    %v1005 = vld [vmem:[%s5 + $0xc58] sm:$0xff]
    %v1006 = vld [vmem:[%s5 + $0xc60] sm:$0xff]
    %v1007 = vld [vmem:[%s5 + $0xc68] sm:$0xff]
    %v1008 = vld [vmem:[%s5 + $0xc70] sm:$0xff]
    %v1009 = vld [vmem:[%s5 + $0xc78] sm:$0xff]
    %v1010 = vld [vmem:[%s5 + $0xc80] sm:$0xff]
    %v1011 = vld [vmem:[%s5 + $0xc88] sm:$0xff]
    %v1012 = vld [vmem:[%s5 + $0xc90] sm:$0xff]
    %v1013 = vld [vmem:[%s5 + $0xc98] sm:$0xff]
    %v1014 = vld [vmem:[%s5 + $0xca0] sm:$0xff]
    %v1015 = vld [vmem:[%s5 + $0xca8] sm:$0xff]
    %v1016 = vld [vmem:[%s5 + $0xcb0] sm:$0xff]
    %v1017 = vld [vmem:[%s5 + $0xcb8] sm:$0xff]
    %v1018 = vld [vmem:[%s5 + $0xcc0] sm:$0xff]
    %v1019 = vld [vmem:[%s5 + $0xcc8] sm:$0xff]
    %v1020 = vld [vmem:[%s5 + $0xcd0] sm:$0xff]
    %v1021 = vld [vmem:[%s5 + $0xcd8] sm:$0xff]
    %v1022 = vld [vmem:[%s5 + $0xce0] sm:$0xff]
    %v1023 = vld [vmem:[%s5 + $0xce8] sm:$0xff]
    %v1024 = vld [vmem:[%s5 + $0xcf0] sm:$0xff]
    %v1025 = vld [vmem:[%s5 + $0xcf8] sm:$0xff]
    %v1026 = vld [vmem:[%s5 + $0xd00] sm:$0xff]
    %v1027 = vld [vmem:[%s5 + $0xd08] sm:$0xff]
    %v1028 = vld [vmem:[%s5 + $0xd10] sm:$0xff]
    %v1029 = vld [vmem:[%s5 + $0xd18] sm:$0xff]
    %v1030 = vld [vmem:[%s5 + $0xd20] sm:$0xff]
    %v1031 = vld [vmem:[%s5 + $0xd28] sm:$0xff]
    %v1032 = vld [vmem:[%s5 + $0xd30] sm:$0xff]
    %v1033 = vld [vmem:[%s5 + $0xd38] sm:$0xff]
    %v1034 = vld [vmem:[%s5 + $0xd40] sm:$0xff]
    %v1035 = vld [vmem:[%s5 + $0xd48] sm:$0xff]
    %v1036 = vld [vmem:[%s5 + $0xd50] sm:$0xff]
    %v1037 = vld [vmem:[%s5 + $0xd58] sm:$0xff]
    %v1038 = vld [vmem:[%s5 + $0xd60] sm:$0xff]
    %v1039 = vld [vmem:[%s5 + $0xd68] sm:$0xff]
    %v1040 = vld [vmem:[%s5 + $0xd70] sm:$0xff]
    %v1041 = vld [vmem:[%s5 + $0xd78] sm:$0xff]
    %v1042 = vld [vmem:[%s5 + $0xd80] sm:$0xff]
    %v1043 = vld [vmem:[%s5 + $0xd88] sm:$0xff]
    %v1044 = vld [vmem:[%s5 + $0xd90] sm:$0xff]
    %v1045 = vld [vmem:[%s5 + $0xd98] sm:$0xff]
    %v1046 = vld [vmem:[%s5 + $0xda0] sm:$0xff]
    %v1047 = vld [vmem:[%s5 + $0xda8] sm:$0xff]
    %v1048 = vld [vmem:[%s5 + $0xdb0] sm:$0xff]
    %v1049 = vld [vmem:[%s5 + $0xdb8] sm:$0xff]
    %v1050 = vld [vmem:[%s5 + $0xdc0] sm:$0xff]
    %v1051 = vld [vmem:[%s5 + $0xdc8] sm:$0xff]
    %v1052 = vld [vmem:[%s5 + $0xdd0] sm:$0xff]
    %v1053 = vld [vmem:[%s5 + $0xdd8] sm:$0xff]
    %v1054 = vld [vmem:[%s5 + $0xde0] sm:$0xff]
    %v1055 = vld [vmem:[%s5 + $0xde8] sm:$0xff]
    %v1056 = vld [vmem:[%s5 + $0xdf0] sm:$0xff]
    %v1057 = vld [vmem:[%s5 + $0xdf8] sm:$0xff]
    %v1058 = vld [vmem:[%s5 + $0xe00] sm:$0xff]
    %v1059 = vld [vmem:[%s5 + $0xe08] sm:$0xff]
    %v1060 = vld [vmem:[%s5 + $0xe10] sm:$0xff]
    %v1061 = vld [vmem:[%s5 + $0xe18] sm:$0xff]
    %v1062 = vld [vmem:[%s5 + $0xe20] sm:$0xff]
    %v1063 = vld [vmem:[%s5 + $0xe28] sm:$0xff]
    %v1064 = vld [vmem:[%s5 + $0xe30] sm:$0xff]
    %v1065 = vld [vmem:[%s5 + $0xe38] sm:$0xff]
    %v1066 = vld [vmem:[%s5 + $0xe40] sm:$0xff]
    %v1067 = vld [vmem:[%s5 + $0xe48] sm:$0xff]
    %v1068 = vld [vmem:[%s5 + $0xe50] sm:$0xff]
    %v1069 = vld [vmem:[%s5 + $0xe58] sm:$0xff]
    %v1070 = vld [vmem:[%s5 + $0xe60] sm:$0xff]
    %v1071 = vld [vmem:[%s5 + $0xe68] sm:$0xff]
    %v1072 = vld [vmem:[%s5 + $0xe70] sm:$0xff]
    %v1073 = vld [vmem:[%s5 + $0xe78] sm:$0xff]
    %v1074 = vld [vmem:[%s5 + $0xe80] sm:$0xff]
    %v1075 = vld [vmem:[%s5 + $0xe88] sm:$0xff]
    %v1076 = vld [vmem:[%s5 + $0xe90] sm:$0xff]
    %v1077 = vld [vmem:[%s5 + $0xe98] sm:$0xff]
    %v1078 = vld [vmem:[%s5 + $0xea0] sm:$0xff]
    %v1079 = vld [vmem:[%s5 + $0xea8] sm:$0xff]
    %v1080 = vld [vmem:[%s5 + $0xeb0] sm:$0xff]
    %v1081 = vld [vmem:[%s5 + $0xeb8] sm:$0xff]
    %v1082 = vld [vmem:[%s5 + $0xec0] sm:$0xff]
    %v1083 = vld [vmem:[%s5 + $0xec8] sm:$0xff]
    %v1084 = vld [vmem:[%s5 + $0xed0] sm:$0xff]
    %v1085 = vld [vmem:[%s5 + $0xed8] sm:$0xff]
    %v1086 = vld [vmem:[%s5 + $0xee0] sm:$0xff]
    %v1087 = vld [vmem:[%s5 + $0xee8] sm:$0xff]
    %v1088 = vld [vmem:[%s5 + $0xef0] sm:$0xff]
    %v1089 = vld [vmem:[%s5 + $0xef8] sm:$0xff]
    %v1090 = vld [vmem:[%s5 + $0xf00] sm:$0xff]
    %v1091 = vld [vmem:[%s5 + $0xf08] sm:$0xff]
    %v1092 = vld [vmem:[%s5 + $0xf10] sm:$0xff]
    %v1093 = vld [vmem:[%s5 + $0xf18] sm:$0xff]
    %v1094 = vld [vmem:[%s5 + $0xf20] sm:$0xff]
    %v1095 = vld [vmem:[%s5 + $0xf28] sm:$0xff]
    %v1096 = vld [vmem:[%s5 + $0xf30] sm:$0xff]
    %v1097 = vld [vmem:[%s5 + $0xf38] sm:$0xff]
    %v1098 = vld [vmem:[%s5 + $0xf40] sm:$0xff]
    %v1099 = vld [vmem:[%s5 + $0xf48] sm:$0xff]
    %v1100 = vld [vmem:[%s5 + $0xf50] sm:$0xff]
    %v1101 = vld [vmem:[%s5 + $0xf58] sm:$0xff]
    %v1102 = vld [vmem:[%s5 + $0xf60] sm:$0xff]
    %v1103 = vld [vmem:[%s5 + $0xf68] sm:$0xff]
    %v1104 = vld [vmem:[%s5 + $0xf70] sm:$0xff]
    %v1105 = vld [vmem:[%s5 + $0xf78] sm:$0xff]
    %v1106 = vld [vmem:[%s5 + $0xf80] sm:$0xff]
    %v1107 = vld [vmem:[%s5 + $0xf88] sm:$0xff]
    %v1108 = vld [vmem:[%s5 + $0xf90] sm:$0xff]
    %v1109 = vld [vmem:[%s5 + $0xf98] sm:$0xff]
    %v1110 = vld [vmem:[%s5 + $0xfa0] sm:$0xff]
    %v1111 = vld [vmem:[%s5 + $0xfa8] sm:$0xff]
    %v1112 = vld [vmem:[%s5 + $0xfb0] sm:$0xff]
    %v1113 = vld [vmem:[%s5 + $0xfb8] sm:$0xff]
    %v1114 = vld [vmem:[%s5 + $0xfc0] sm:$0xff]
    %v1115 = vld [vmem:[%s5 + $0xfc8] sm:$0xff]
    %v1116 = vld [vmem:[%s5 + $0xfd0] sm:$0xff]
    %v1117 = vld [vmem:[%s5 + $0xfd8] sm:$0xff]
    %v1118 = vld [vmem:[%s5 + $0xfe0] sm:$0xff]
    %v1119 = vld [vmem:[%s5 + $0xfe8] sm:$0xff]
    %v1120 = vld [vmem:[%s5 + $0xff0] sm:$0xff]
    %v1121 = vld [vmem:[%s5 + $0xff8] sm:$0xff]
    %v1122 = vld [vmem:[%s6] sm:$0xff]
    %v1124 = vperm.slane %v1122, 0
    %v1125 = vperm.slane %v1122, 1
    %v1126 = vperm.slane %v1122, 2
    %v1127 = vperm.slane %v1122, 3
    %v1128 = vperm.slane %v1122, 4
    %v1129 = vperm.slane %v1122, 5
    %v1130 = vperm.slane %v1122, 6
    %v1131 = vperm.slane %v1122, 7
    %1140 = vmatpush.msra.mxu0 %v730
    %1141 = vmatpush.msra.mxu0 %v722
    %1142 = vmatpush.msra.mxu0 %v714
    %1143 = vmatpush.msra.mxu0 %v706
    %1144 = vmatpush.msra.mxu0 %v698
    %1145 = vmatpush.msra.mxu0 %v690
    %1146 = vmatpush.msra.mxu0 %v682
    %1147 = vmatpush.msra.mxu0 %v674
    %1148 = vmatpush.msra.mxu0 %v666
    %1149 = vmatpush.msra.mxu0 %v658
    %1150 = vmatpush.msra.mxu0 %v650
    %1151 = vmatpush.msra.mxu0 %v642
    %1152 = vmatpush.msra.mxu0 %v634
    %1153 = vmatpush.msra.mxu0 %v626
    %1154 = vmatpush.msra.mxu0 %v618
    %1155 = vmatpush.msra.mxu0 %v610
    %1156 = vmatmul.f32.gmra.mxu0 %v606
    %v1157 = vpop.f32.mrf.mxu0
    %v1158 = vadd.f32 %v1124, %v1157
    %1159 = vdwg.mxu0
    %1160 = vmatpush.msra.mxu0 %v858
    %1161 = vmatpush.msra.mxu0 %v850
    %1162 = vmatpush.msra.mxu0 %v842
    %1163 = vmatpush.msra.mxu0 %v834
    %1164 = vmatpush.msra.mxu0 %v826
    %1165 = vmatpush.msra.mxu0 %v818
    %1166 = vmatpush.msra.mxu0 %v810
    %1167 = vmatpush.msra.mxu0 %v802
    %1168 = vmatpush.msra.mxu0 %v794
    %1169 = vmatpush.msra.mxu0 %v786
    %1170 = vmatpush.msra.mxu0 %v778
    %1171 = vmatpush.msra.mxu0 %v770
    %1172 = vmatpush.msra.mxu0 %v762
    %1173 = vmatpush.msra.mxu0 %v754
    %1174 = vmatpush.msra.mxu0 %v746
    %1175 = vmatpush.msra.mxu0 %v738
    %1176 = vmatmul.f32.gmra.mxu0 %v607
    %v1177 = vpop.f32.mrf.mxu0
    %v1178 = vadd.f32 %v1158, %v1177
    %1179 = vdwg.mxu0
    %1180 = vmatpush.msra.mxu0 %v986
    %1181 = vmatpush.msra.mxu0 %v978
    %1182 = vmatpush.msra.mxu0 %v970
    %1183 = vmatpush.msra.mxu0 %v962
    %1184 = vmatpush.msra.mxu0 %v954
    %1185 = vmatpush.msra.mxu0 %v946
    %1186 = vmatpush.msra.mxu0 %v938
    %1187 = vmatpush.msra.mxu0 %v930
    %1188 = vmatpush.msra.mxu0 %v922
    %1189 = vmatpush.msra.mxu0 %v914
    %1190 = vmatpush.msra.mxu0 %v906
    %1191 = vmatpush.msra.mxu0 %v898
    %1192 = vmatpush.msra.mxu0 %v890
    %1193 = vmatpush.msra.mxu0 %v882
    %1194 = vmatpush.msra.mxu0 %v874
    %1195 = vmatpush.msra.mxu0 %v866
    %1196 = vmatmul.f32.gmra.mxu0 %v608
    %v1197 = vpop.f32.mrf.mxu0
    %v1198 = vadd.f32 %v1178, %v1197
    %1199 = vdwg.mxu0
    %1200 = vmatpush.msra.mxu0 %v1114
    %1201 = vmatpush.msra.mxu0 %v1106
    %1202 = vmatpush.msra.mxu0 %v1098
    %1203 = vmatpush.msra.mxu0 %v1090
    %1204 = vmatpush.msra.mxu0 %v1082
    %1205 = vmatpush.msra.mxu0 %v1074
    %1206 = vmatpush.msra.mxu0 %v1066
    %1207 = vmatpush.msra.mxu0 %v1058
    %1208 = vmatpush.msra.mxu0 %v1050
    %1209 = vmatpush.msra.mxu0 %v1042
    %1210 = vmatpush.msra.mxu0 %v1034
    %1211 = vmatpush.msra.mxu0 %v1026
    %1212 = vmatpush.msra.mxu0 %v1018
    %1213 = vmatpush.msra.mxu0 %v1010
    %1214 = vmatpush.msra.mxu0 %v1002
    %1215 = vmatpush.msra.mxu0 %v994
    %1216 = vmatmul.f32.gmra.mxu0 %v609
    %v1217 = vpop.f32.mrf.mxu0
    %v1218 = vadd.f32 %v1198, %v1217
    %1219 = vdwg.mxu0
    %1220 = vmatpush.msra.mxu0 %v731
    %1221 = vmatpush.msra.mxu0 %v723
    %1222 = vmatpush.msra.mxu0 %v715
    %1223 = vmatpush.msra.mxu0 %v707
    %1224 = vmatpush.msra.mxu0 %v699
    %1225 = vmatpush.msra.mxu0 %v691
    %1226 = vmatpush.msra.mxu0 %v683
    %1227 = vmatpush.msra.mxu0 %v675
    %1228 = vmatpush.msra.mxu0 %v667
    %1229 = vmatpush.msra.mxu0 %v659
    %1230 = vmatpush.msra.mxu0 %v651
    %1231 = vmatpush.msra.mxu0 %v643
    %1232 = vmatpush.msra.mxu0 %v635
    %1233 = vmatpush.msra.mxu0 %v627
    %1234 = vmatpush.msra.mxu0 %v619
    %1235 = vmatpush.msra.mxu0 %v611
    %1236 = vmatmul.f32.gmra.mxu0 %v606
    %v1237 = vpop.f32.mrf.mxu0
    %v1238 = vadd.f32 %v1125, %v1237
    %1239 = vdwg.mxu0
    %1240 = vmatpush.msra.mxu0 %v859
    %1241 = vmatpush.msra.mxu0 %v851
    %1242 = vmatpush.msra.mxu0 %v843
    %1243 = vmatpush.msra.mxu0 %v835
    %1244 = vmatpush.msra.mxu0 %v827
    %1245 = vmatpush.msra.mxu0 %v819
    %1246 = vmatpush.msra.mxu0 %v811
    %1247 = vmatpush.msra.mxu0 %v803
    %1248 = vmatpush.msra.mxu0 %v795
    %1249 = vmatpush.msra.mxu0 %v787
    %1250 = vmatpush.msra.mxu0 %v779
    %1251 = vmatpush.msra.mxu0 %v771
    %1252 = vmatpush.msra.mxu0 %v763
    %1253 = vmatpush.msra.mxu0 %v755
    %1254 = vmatpush.msra.mxu0 %v747
    %1255 = vmatpush.msra.mxu0 %v739
    %1256 = vmatmul.f32.gmra.mxu0 %v607
    %v1257 = vpop.f32.mrf.mxu0
    %v1258 = vadd.f32 %v1238, %v1257
    %1259 = vdwg.mxu0
    %1260 = vmatpush.msra.mxu0 %v987
    %1261 = vmatpush.msra.mxu0 %v979
    %1262 = vmatpush.msra.mxu0 %v971
    %1263 = vmatpush.msra.mxu0 %v963
    %1264 = vmatpush.msra.mxu0 %v955
    %1265 = vmatpush.msra.mxu0 %v947
    %1266 = vmatpush.msra.mxu0 %v939
    %1267 = vmatpush.msra.mxu0 %v931
    %1268 = vmatpush.msra.mxu0 %v923
    %1269 = vmatpush.msra.mxu0 %v915
    %1270 = vmatpush.msra.mxu0 %v907
    %1271 = vmatpush.msra.mxu0 %v899
    %1272 = vmatpush.msra.mxu0 %v891
    %1273 = vmatpush.msra.mxu0 %v883
    %1274 = vmatpush.msra.mxu0 %v875
    %1275 = vmatpush.msra.mxu0 %v867
    %1276 = vmatmul.f32.gmra.mxu0 %v608
    %v1277 = vpop.f32.mrf.mxu0
    %v1278 = vadd.f32 %v1258, %v1277
    %1279 = vdwg.mxu0
    %1280 = vmatpush.msra.mxu0 %v1115
    %1281 = vmatpush.msra.mxu0 %v1107
    %1282 = vmatpush.msra.mxu0 %v1099
    %1283 = vmatpush.msra.mxu0 %v1091
    %1284 = vmatpush.msra.mxu0 %v1083
    %1285 = vmatpush.msra.mxu0 %v1075
    %1286 = vmatpush.msra.mxu0 %v1067
    %1287 = vmatpush.msra.mxu0 %v1059
    %1288 = vmatpush.msra.mxu0 %v1051
    %1289 = vmatpush.msra.mxu0 %v1043
    %1290 = vmatpush.msra.mxu0 %v1035
    %1291 = vmatpush.msra.mxu0 %v1027
    %1292 = vmatpush.msra.mxu0 %v1019
    %1293 = vmatpush.msra.mxu0 %v1011
    %1294 = vmatpush.msra.mxu0 %v1003
    %1295 = vmatpush.msra.mxu0 %v995
    %1296 = vmatmul.f32.gmra.mxu0 %v609
    %v1297 = vpop.f32.mrf.mxu0
    %v1298 = vadd.f32 %v1278, %v1297
    %1299 = vdwg.mxu0
    %1300 = vmatpush.msra.mxu0 %v732
    %1301 = vmatpush.msra.mxu0 %v724
    %1302 = vmatpush.msra.mxu0 %v716
    %1303 = vmatpush.msra.mxu0 %v708
    %1304 = vmatpush.msra.mxu0 %v700
    %1305 = vmatpush.msra.mxu0 %v692
    %1306 = vmatpush.msra.mxu0 %v684
    %1307 = vmatpush.msra.mxu0 %v676
    %1308 = vmatpush.msra.mxu0 %v668
    %1309 = vmatpush.msra.mxu0 %v660
    %1310 = vmatpush.msra.mxu0 %v652
    %1311 = vmatpush.msra.mxu0 %v644
    %1312 = vmatpush.msra.mxu0 %v636
    %1313 = vmatpush.msra.mxu0 %v628
    %1314 = vmatpush.msra.mxu0 %v620
    %1315 = vmatpush.msra.mxu0 %v612
    %1316 = vmatmul.f32.gmra.mxu0 %v606
    %v1317 = vpop.f32.mrf.mxu0
    %v1318 = vadd.f32 %v1126, %v1317
    %1319 = vdwg.mxu0
    %1320 = vmatpush.msra.mxu0 %v860
    %1321 = vmatpush.msra.mxu0 %v852
    %1322 = vmatpush.msra.mxu0 %v844
    %1323 = vmatpush.msra.mxu0 %v836
    %1324 = vmatpush.msra.mxu0 %v828
    %1325 = vmatpush.msra.mxu0 %v820
    %1326 = vmatpush.msra.mxu0 %v812
    %1327 = vmatpush.msra.mxu0 %v804
    %1328 = vmatpush.msra.mxu0 %v796
    %1329 = vmatpush.msra.mxu0 %v788
    %1330 = vmatpush.msra.mxu0 %v780
    %1331 = vmatpush.msra.mxu0 %v772
    %1332 = vmatpush.msra.mxu0 %v764
    %1333 = vmatpush.msra.mxu0 %v756
    %1334 = vmatpush.msra.mxu0 %v748
    %1335 = vmatpush.msra.mxu0 %v740
    %1336 = vmatmul.f32.gmra.mxu0 %v607
    %v1337 = vpop.f32.mrf.mxu0
    %v1338 = vadd.f32 %v1318, %v1337
    %1339 = vdwg.mxu0
    %1340 = vmatpush.msra.mxu0 %v988
    %1341 = vmatpush.msra.mxu0 %v980
    %1342 = vmatpush.msra.mxu0 %v972
    %1343 = vmatpush.msra.mxu0 %v964
    %1344 = vmatpush.msra.mxu0 %v956
    %1345 = vmatpush.msra.mxu0 %v948
    %1346 = vmatpush.msra.mxu0 %v940
    %1347 = vmatpush.msra.mxu0 %v932
    %1348 = vmatpush.msra.mxu0 %v924
    %1349 = vmatpush.msra.mxu0 %v916
    %1350 = vmatpush.msra.mxu0 %v908
    %1351 = vmatpush.msra.mxu0 %v900
    %1352 = vmatpush.msra.mxu0 %v892
    %1353 = vmatpush.msra.mxu0 %v884
    %1354 = vmatpush.msra.mxu0 %v876
    %1355 = vmatpush.msra.mxu0 %v868
    %1356 = vmatmul.f32.gmra.mxu0 %v608
    %v1357 = vpop.f32.mrf.mxu0
    %v1358 = vadd.f32 %v1338, %v1357
    %1359 = vdwg.mxu0
    %1360 = vmatpush.msra.mxu0 %v1116
    %1361 = vmatpush.msra.mxu0 %v1108
    %1362 = vmatpush.msra.mxu0 %v1100
    %1363 = vmatpush.msra.mxu0 %v1092
    %1364 = vmatpush.msra.mxu0 %v1084
    %1365 = vmatpush.msra.mxu0 %v1076
    %1366 = vmatpush.msra.mxu0 %v1068
    %1367 = vmatpush.msra.mxu0 %v1060
    %1368 = vmatpush.msra.mxu0 %v1052
    %1369 = vmatpush.msra.mxu0 %v1044
    %1370 = vmatpush.msra.mxu0 %v1036
    %1371 = vmatpush.msra.mxu0 %v1028
    %1372 = vmatpush.msra.mxu0 %v1020
    %1373 = vmatpush.msra.mxu0 %v1012
    %1374 = vmatpush.msra.mxu0 %v1004
    %1375 = vmatpush.msra.mxu0 %v996
    %1376 = vmatmul.f32.gmra.mxu0 %v609
    %v1377 = vpop.f32.mrf.mxu0
    %v1378 = vadd.f32 %v1358, %v1377
    %1379 = vdwg.mxu0
    %1380 = vmatpush.msra.mxu0 %v733
    %1381 = vmatpush.msra.mxu0 %v725
    %1382 = vmatpush.msra.mxu0 %v717
    %1383 = vmatpush.msra.mxu0 %v709
    %1384 = vmatpush.msra.mxu0 %v701
    %1385 = vmatpush.msra.mxu0 %v693
    %1386 = vmatpush.msra.mxu0 %v685
    %1387 = vmatpush.msra.mxu0 %v677
    %1388 = vmatpush.msra.mxu0 %v669
    %1389 = vmatpush.msra.mxu0 %v661
    %1390 = vmatpush.msra.mxu0 %v653
    %1391 = vmatpush.msra.mxu0 %v645
    %1392 = vmatpush.msra.mxu0 %v637
    %1393 = vmatpush.msra.mxu0 %v629
    %1394 = vmatpush.msra.mxu0 %v621
    %1395 = vmatpush.msra.mxu0 %v613
    %1396 = vmatmul.f32.gmra.mxu0 %v606
    %v1397 = vpop.f32.mrf.mxu0
    %v1398 = vadd.f32 %v1127, %v1397
    %1399 = vdwg.mxu0
    %1400 = vmatpush.msra.mxu0 %v861
    %1401 = vmatpush.msra.mxu0 %v853
    %1402 = vmatpush.msra.mxu0 %v845
    %1403 = vmatpush.msra.mxu0 %v837
    %1404 = vmatpush.msra.mxu0 %v829
    %1405 = vmatpush.msra.mxu0 %v821
    %1406 = vmatpush.msra.mxu0 %v813
    %1407 = vmatpush.msra.mxu0 %v805
    %1408 = vmatpush.msra.mxu0 %v797
    %1409 = vmatpush.msra.mxu0 %v789
    %1410 = vmatpush.msra.mxu0 %v781
    %1411 = vmatpush.msra.mxu0 %v773
    %1412 = vmatpush.msra.mxu0 %v765
    %1413 = vmatpush.msra.mxu0 %v757
    %1414 = vmatpush.msra.mxu0 %v749
    %1415 = vmatpush.msra.mxu0 %v741
    %1416 = vmatmul.f32.gmra.mxu0 %v607
    %v1417 = vpop.f32.mrf.mxu0
    %v1418 = vadd.f32 %v1398, %v1417
    %1419 = vdwg.mxu0
    %1420 = vmatpush.msra.mxu0 %v989
    %1421 = vmatpush.msra.mxu0 %v981
    %1422 = vmatpush.msra.mxu0 %v973
    %1423 = vmatpush.msra.mxu0 %v965
    %1424 = vmatpush.msra.mxu0 %v957
    %1425 = vmatpush.msra.mxu0 %v949
    %1426 = vmatpush.msra.mxu0 %v941
    %1427 = vmatpush.msra.mxu0 %v933
    %1428 = vmatpush.msra.mxu0 %v925
    %1429 = vmatpush.msra.mxu0 %v917
    %1430 = vmatpush.msra.mxu0 %v909
    %1431 = vmatpush.msra.mxu0 %v901
    %1432 = vmatpush.msra.mxu0 %v893
    %1433 = vmatpush.msra.mxu0 %v885
    %1434 = vmatpush.msra.mxu0 %v877
    %1435 = vmatpush.msra.mxu0 %v869
    %1436 = vmatmul.f32.gmra.mxu0 %v608
    %v1437 = vpop.f32.mrf.mxu0
    %v1438 = vadd.f32 %v1418, %v1437
    %1439 = vdwg.mxu0
    %1440 = vmatpush.msra.mxu0 %v1117
    %1441 = vmatpush.msra.mxu0 %v1109
    %1442 = vmatpush.msra.mxu0 %v1101
    %1443 = vmatpush.msra.mxu0 %v1093
    %1444 = vmatpush.msra.mxu0 %v1085
    %1445 = vmatpush.msra.mxu0 %v1077
    %1446 = vmatpush.msra.mxu0 %v1069
    %1447 = vmatpush.msra.mxu0 %v1061
    %1448 = vmatpush.msra.mxu0 %v1053
    %1449 = vmatpush.msra.mxu0 %v1045
    %1450 = vmatpush.msra.mxu0 %v1037
    %1451 = vmatpush.msra.mxu0 %v1029
    %1452 = vmatpush.msra.mxu0 %v1021
    %1453 = vmatpush.msra.mxu0 %v1013
    %1454 = vmatpush.msra.mxu0 %v1005
    %1455 = vmatpush.msra.mxu0 %v997
    %1456 = vmatmul.f32.gmra.mxu0 %v609
    %v1457 = vpop.f32.mrf.mxu0
    %v1458 = vadd.f32 %v1438, %v1457
    %1459 = vdwg.mxu0
    %1460 = vmatpush.msra.mxu0 %v734
    %1461 = vmatpush.msra.mxu0 %v726
    %1462 = vmatpush.msra.mxu0 %v718
    %1463 = vmatpush.msra.mxu0 %v710
    %1464 = vmatpush.msra.mxu0 %v702
    %1465 = vmatpush.msra.mxu0 %v694
    %1466 = vmatpush.msra.mxu0 %v686
    %1467 = vmatpush.msra.mxu0 %v678
    %1468 = vmatpush.msra.mxu0 %v670
    %1469 = vmatpush.msra.mxu0 %v662
    %1470 = vmatpush.msra.mxu0 %v654
    %1471 = vmatpush.msra.mxu0 %v646
    %1472 = vmatpush.msra.mxu0 %v638
    %1473 = vmatpush.msra.mxu0 %v630
    %1474 = vmatpush.msra.mxu0 %v622
    %1475 = vmatpush.msra.mxu0 %v614
    %1476 = vmatmul.f32.gmra.mxu0 %v606
    %v1477 = vpop.f32.mrf.mxu0
    %v1478 = vadd.f32 %v1128, %v1477
    %1479 = vdwg.mxu0
    %1480 = vmatpush.msra.mxu0 %v862
    %1481 = vmatpush.msra.mxu0 %v854
    %1482 = vmatpush.msra.mxu0 %v846
    %1483 = vmatpush.msra.mxu0 %v838
    %1484 = vmatpush.msra.mxu0 %v830
    %1485 = vmatpush.msra.mxu0 %v822
    %1486 = vmatpush.msra.mxu0 %v814
    %1487 = vmatpush.msra.mxu0 %v806
    %1488 = vmatpush.msra.mxu0 %v798
    %1489 = vmatpush.msra.mxu0 %v790
    %1490 = vmatpush.msra.mxu0 %v782
    %1491 = vmatpush.msra.mxu0 %v774
    %1492 = vmatpush.msra.mxu0 %v766
    %1493 = vmatpush.msra.mxu0 %v758
    %1494 = vmatpush.msra.mxu0 %v750
    %1495 = vmatpush.msra.mxu0 %v742
    %1496 = vmatmul.f32.gmra.mxu0 %v607
    %v1497 = vpop.f32.mrf.mxu0
    %v1498 = vadd.f32 %v1478, %v1497
    %1499 = vdwg.mxu0
    %1500 = vmatpush.msra.mxu0 %v990
    %1501 = vmatpush.msra.mxu0 %v982
    %1502 = vmatpush.msra.mxu0 %v974
    %1503 = vmatpush.msra.mxu0 %v966
    %1504 = vmatpush.msra.mxu0 %v958
    %1505 = vmatpush.msra.mxu0 %v950
    %1506 = vmatpush.msra.mxu0 %v942
    %1507 = vmatpush.msra.mxu0 %v934
    %1508 = vmatpush.msra.mxu0 %v926
    %1509 = vmatpush.msra.mxu0 %v918
    %1510 = vmatpush.msra.mxu0 %v910
    %1511 = vmatpush.msra.mxu0 %v902
    %1512 = vmatpush.msra.mxu0 %v894
    %1513 = vmatpush.msra.mxu0 %v886
    %1514 = vmatpush.msra.mxu0 %v878
    %1515 = vmatpush.msra.mxu0 %v870
    %1516 = vmatmul.f32.gmra.mxu0 %v608
    %v1517 = vpop.f32.mrf.mxu0
    %v1518 = vadd.f32 %v1498, %v1517
    %1519 = vdwg.mxu0
    %1520 = vmatpush.msra.mxu0 %v1118
    %1521 = vmatpush.msra.mxu0 %v1110
    %1522 = vmatpush.msra.mxu0 %v1102
    %1523 = vmatpush.msra.mxu0 %v1094
    %1524 = vmatpush.msra.mxu0 %v1086
    %1525 = vmatpush.msra.mxu0 %v1078
    %1526 = vmatpush.msra.mxu0 %v1070
    %1527 = vmatpush.msra.mxu0 %v1062
    %1528 = vmatpush.msra.mxu0 %v1054
    %1529 = vmatpush.msra.mxu0 %v1046
    %1530 = vmatpush.msra.mxu0 %v1038
    %1531 = vmatpush.msra.mxu0 %v1030
    %1532 = vmatpush.msra.mxu0 %v1022
    %1533 = vmatpush.msra.mxu0 %v1014
    %1534 = vmatpush.msra.mxu0 %v1006
    %1535 = vmatpush.msra.mxu0 %v998
    %1536 = vmatmul.f32.gmra.mxu0 %v609
    %v1537 = vpop.f32.mrf.mxu0
    %v1538 = vadd.f32 %v1518, %v1537
    %1539 = vdwg.mxu0
    %1540 = vmatpush.msra.mxu0 %v735
    %1541 = vmatpush.msra.mxu0 %v727
    %1542 = vmatpush.msra.mxu0 %v719
    %1543 = vmatpush.msra.mxu0 %v711
    %1544 = vmatpush.msra.mxu0 %v703
    %1545 = vmatpush.msra.mxu0 %v695
    %1546 = vmatpush.msra.mxu0 %v687
    %1547 = vmatpush.msra.mxu0 %v679
    %1548 = vmatpush.msra.mxu0 %v671
    %1549 = vmatpush.msra.mxu0 %v663
    %1550 = vmatpush.msra.mxu0 %v655
    %1551 = vmatpush.msra.mxu0 %v647
    %1552 = vmatpush.msra.mxu0 %v639
    %1553 = vmatpush.msra.mxu0 %v631
    %1554 = vmatpush.msra.mxu0 %v623
    %1555 = vmatpush.msra.mxu0 %v615
    %1556 = vmatmul.f32.gmra.mxu0 %v606
    %v1557 = vpop.f32.mrf.mxu0
    %v1558 = vadd.f32 %v1129, %v1557
    %1559 = vdwg.mxu0
    %1560 = vmatpush.msra.mxu0 %v863
    %1561 = vmatpush.msra.mxu0 %v855
    %1562 = vmatpush.msra.mxu0 %v847
    %1563 = vmatpush.msra.mxu0 %v839
    %1564 = vmatpush.msra.mxu0 %v831
    %1565 = vmatpush.msra.mxu0 %v823
    %1566 = vmatpush.msra.mxu0 %v815
    %1567 = vmatpush.msra.mxu0 %v807
    %1568 = vmatpush.msra.mxu0 %v799
    %1569 = vmatpush.msra.mxu0 %v791
    %1570 = vmatpush.msra.mxu0 %v783
    %1571 = vmatpush.msra.mxu0 %v775
    %1572 = vmatpush.msra.mxu0 %v767
    %1573 = vmatpush.msra.mxu0 %v759
    %1574 = vmatpush.msra.mxu0 %v751
    %1575 = vmatpush.msra.mxu0 %v743
    %1576 = vmatmul.f32.gmra.mxu0 %v607
    %v1577 = vpop.f32.mrf.mxu0
    %v1578 = vadd.f32 %v1558, %v1577
    %1579 = vdwg.mxu0
    %1580 = vmatpush.msra.mxu0 %v991
    %1581 = vmatpush.msra.mxu0 %v983
    %1582 = vmatpush.msra.mxu0 %v975
    %1583 = vmatpush.msra.mxu0 %v967
    %1584 = vmatpush.msra.mxu0 %v959
    %1585 = vmatpush.msra.mxu0 %v951
    %1586 = vmatpush.msra.mxu0 %v943
    %1587 = vmatpush.msra.mxu0 %v935
    %1588 = vmatpush.msra.mxu0 %v927
    %1589 = vmatpush.msra.mxu0 %v919
    %1590 = vmatpush.msra.mxu0 %v911
    %1591 = vmatpush.msra.mxu0 %v903
    %1592 = vmatpush.msra.mxu0 %v895
    %1593 = vmatpush.msra.mxu0 %v887
    %1594 = vmatpush.msra.mxu0 %v879
    %1595 = vmatpush.msra.mxu0 %v871
    %1596 = vmatmul.f32.gmra.mxu0 %v608
    %v1597 = vpop.f32.mrf.mxu0
    %v1598 = vadd.f32 %v1578, %v1597
    %1599 = vdwg.mxu0
    %1600 = vmatpush.msra.mxu0 %v1119
    %1601 = vmatpush.msra.mxu0 %v1111
    %1602 = vmatpush.msra.mxu0 %v1103
    %1603 = vmatpush.msra.mxu0 %v1095
    %1604 = vmatpush.msra.mxu0 %v1087
    %1605 = vmatpush.msra.mxu0 %v1079
    %1606 = vmatpush.msra.mxu0 %v1071
    %1607 = vmatpush.msra.mxu0 %v1063
    %1608 = vmatpush.msra.mxu0 %v1055
    %1609 = vmatpush.msra.mxu0 %v1047
    %1610 = vmatpush.msra.mxu0 %v1039
    %1611 = vmatpush.msra.mxu0 %v1031
    %1612 = vmatpush.msra.mxu0 %v1023
    %1613 = vmatpush.msra.mxu0 %v1015
    %1614 = vmatpush.msra.mxu0 %v1007
    %1615 = vmatpush.msra.mxu0 %v999
    %1616 = vmatmul.f32.gmra.mxu0 %v609
    %v1617 = vpop.f32.mrf.mxu0
    %v1618 = vadd.f32 %v1598, %v1617
    %1619 = vdwg.mxu0
    %1620 = vmatpush.msra.mxu0 %v736
    %1621 = vmatpush.msra.mxu0 %v728
    %1622 = vmatpush.msra.mxu0 %v720
    %1623 = vmatpush.msra.mxu0 %v712
    %1624 = vmatpush.msra.mxu0 %v704
    %1625 = vmatpush.msra.mxu0 %v696
    %1626 = vmatpush.msra.mxu0 %v688
    %1627 = vmatpush.msra.mxu0 %v680
    %1628 = vmatpush.msra.mxu0 %v672
    %1629 = vmatpush.msra.mxu0 %v664
    %1630 = vmatpush.msra.mxu0 %v656
    %1631 = vmatpush.msra.mxu0 %v648
    %1632 = vmatpush.msra.mxu0 %v640
    %1633 = vmatpush.msra.mxu0 %v632
    %1634 = vmatpush.msra.mxu0 %v624
    %1635 = vmatpush.msra.mxu0 %v616
    %1636 = vmatmul.f32.gmra.mxu0 %v606
    %v1637 = vpop.f32.mrf.mxu0
    %v1638 = vadd.f32 %v1130, %v1637
    %1639 = vdwg.mxu0
    %1640 = vmatpush.msra.mxu0 %v864
    %1641 = vmatpush.msra.mxu0 %v856
    %1642 = vmatpush.msra.mxu0 %v848
    %1643 = vmatpush.msra.mxu0 %v840
    %1644 = vmatpush.msra.mxu0 %v832
    %1645 = vmatpush.msra.mxu0 %v824
    %1646 = vmatpush.msra.mxu0 %v816
    %1647 = vmatpush.msra.mxu0 %v808
    %1648 = vmatpush.msra.mxu0 %v800
    %1649 = vmatpush.msra.mxu0 %v792
    %1650 = vmatpush.msra.mxu0 %v784
    %1651 = vmatpush.msra.mxu0 %v776
    %1652 = vmatpush.msra.mxu0 %v768
    %1653 = vmatpush.msra.mxu0 %v760
    %1654 = vmatpush.msra.mxu0 %v752
    %1655 = vmatpush.msra.mxu0 %v744
    %1656 = vmatmul.f32.gmra.mxu0 %v607
    %v1657 = vpop.f32.mrf.mxu0
    %v1658 = vadd.f32 %v1638, %v1657
    %1659 = vdwg.mxu0
    %1660 = vmatpush.msra.mxu0 %v992
    %1661 = vmatpush.msra.mxu0 %v984
    %1662 = vmatpush.msra.mxu0 %v976
    %1663 = vmatpush.msra.mxu0 %v968
    %1664 = vmatpush.msra.mxu0 %v960
    %1665 = vmatpush.msra.mxu0 %v952
    %1666 = vmatpush.msra.mxu0 %v944
    %1667 = vmatpush.msra.mxu0 %v936
    %1668 = vmatpush.msra.mxu0 %v928
    %1669 = vmatpush.msra.mxu0 %v920
    %1670 = vmatpush.msra.mxu0 %v912
    %1671 = vmatpush.msra.mxu0 %v904
    %1672 = vmatpush.msra.mxu0 %v896
    %1673 = vmatpush.msra.mxu0 %v888
    %1674 = vmatpush.msra.mxu0 %v880
    %1675 = vmatpush.msra.mxu0 %v872
    %1676 = vmatmul.f32.gmra.mxu0 %v608
    %v1677 = vpop.f32.mrf.mxu0
    %v1678 = vadd.f32 %v1658, %v1677
    %1679 = vdwg.mxu0
    %1680 = vmatpush.msra.mxu0 %v1120
    %1681 = vmatpush.msra.mxu0 %v1112
    %1682 = vmatpush.msra.mxu0 %v1104
    %1683 = vmatpush.msra.mxu0 %v1096
    %1684 = vmatpush.msra.mxu0 %v1088
    %1685 = vmatpush.msra.mxu0 %v1080
    %1686 = vmatpush.msra.mxu0 %v1072
    %1687 = vmatpush.msra.mxu0 %v1064
    %1688 = vmatpush.msra.mxu0 %v1056
    %1689 = vmatpush.msra.mxu0 %v1048
    %1690 = vmatpush.msra.mxu0 %v1040
    %1691 = vmatpush.msra.mxu0 %v1032
    %1692 = vmatpush.msra.mxu0 %v1024
    %1693 = vmatpush.msra.mxu0 %v1016
    %1694 = vmatpush.msra.mxu0 %v1008
    %1695 = vmatpush.msra.mxu0 %v1000
    %1696 = vmatmul.f32.gmra.mxu0 %v609
    %v1697 = vpop.f32.mrf.mxu0
    %v1698 = vadd.f32 %v1678, %v1697
    %1699 = vdwg.mxu0
    %1700 = vmatpush.msra.mxu0 %v737
    %1701 = vmatpush.msra.mxu0 %v729
    %1702 = vmatpush.msra.mxu0 %v721
    %1703 = vmatpush.msra.mxu0 %v713
    %1704 = vmatpush.msra.mxu0 %v705
    %1705 = vmatpush.msra.mxu0 %v697
    %1706 = vmatpush.msra.mxu0 %v689
    %1707 = vmatpush.msra.mxu0 %v681
    %1708 = vmatpush.msra.mxu0 %v673
    %1709 = vmatpush.msra.mxu0 %v665
    %1710 = vmatpush.msra.mxu0 %v657
    %1711 = vmatpush.msra.mxu0 %v649
    %1712 = vmatpush.msra.mxu0 %v641
    %1713 = vmatpush.msra.mxu0 %v633
    %1714 = vmatpush.msra.mxu0 %v625
    %1715 = vmatpush.msra.mxu0 %v617
    %1716 = vmatmul.f32.gmra.mxu0 %v606
    %v1717 = vpop.f32.mrf.mxu0
    %v1718 = vadd.f32 %v1131, %v1717
    %1719 = vdwg.mxu0
    %1720 = vmatpush.msra.mxu0 %v865
    %1721 = vmatpush.msra.mxu0 %v857
    %1722 = vmatpush.msra.mxu0 %v849
    %1723 = vmatpush.msra.mxu0 %v841
    %1724 = vmatpush.msra.mxu0 %v833
    %1725 = vmatpush.msra.mxu0 %v825
    %1726 = vmatpush.msra.mxu0 %v817
    %1727 = vmatpush.msra.mxu0 %v809
    %1728 = vmatpush.msra.mxu0 %v801
    %1729 = vmatpush.msra.mxu0 %v793
    %1730 = vmatpush.msra.mxu0 %v785
    %1731 = vmatpush.msra.mxu0 %v777
    %1732 = vmatpush.msra.mxu0 %v769
    %1733 = vmatpush.msra.mxu0 %v761
    %1734 = vmatpush.msra.mxu0 %v753
    %1735 = vmatpush.msra.mxu0 %v745
    %1736 = vmatmul.f32.gmra.mxu0 %v607
    %v1737 = vpop.f32.mrf.mxu0
    %v1738 = vadd.f32 %v1718, %v1737
    %1739 = vdwg.mxu0
    %1740 = vmatpush.msra.mxu0 %v993
    %1741 = vmatpush.msra.mxu0 %v985
    %1742 = vmatpush.msra.mxu0 %v977
    %1743 = vmatpush.msra.mxu0 %v969
    %1744 = vmatpush.msra.mxu0 %v961
    %1745 = vmatpush.msra.mxu0 %v953
    %1746 = vmatpush.msra.mxu0 %v945
    %1747 = vmatpush.msra.mxu0 %v937
    %1748 = vmatpush.msra.mxu0 %v929
    %1749 = vmatpush.msra.mxu0 %v921
    %1750 = vmatpush.msra.mxu0 %v913
    %1751 = vmatpush.msra.mxu0 %v905
    %1752 = vmatpush.msra.mxu0 %v897
    %1753 = vmatpush.msra.mxu0 %v889
    %1754 = vmatpush.msra.mxu0 %v881
    %1755 = vmatpush.msra.mxu0 %v873
    %1756 = vmatmul.f32.gmra.mxu0 %v608
    %v1757 = vpop.f32.mrf.mxu0
    %v1758 = vadd.f32 %v1738, %v1757
    %1759 = vdwg.mxu0
    %1760 = vmatpush.msra.mxu0 %v1121
    %1761 = vmatpush.msra.mxu0 %v1113
    %1762 = vmatpush.msra.mxu0 %v1105
    %1763 = vmatpush.msra.mxu0 %v1097
    %1764 = vmatpush.msra.mxu0 %v1089
    %1765 = vmatpush.msra.mxu0 %v1081
    %1766 = vmatpush.msra.mxu0 %v1073
    %1767 = vmatpush.msra.mxu0 %v1065
    %1768 = vmatpush.msra.mxu0 %v1057
    %1769 = vmatpush.msra.mxu0 %v1049
    %1770 = vmatpush.msra.mxu0 %v1041
    %1771 = vmatpush.msra.mxu0 %v1033
    %1772 = vmatpush.msra.mxu0 %v1025
    %1773 = vmatpush.msra.mxu0 %v1017
    %1774 = vmatpush.msra.mxu0 %v1009
    %1775 = vmatpush.msra.mxu0 %v1001
    %1776 = vmatmul.f32.gmra.mxu0 %v609
    %v1777 = vpop.f32.mrf.mxu0
    %v1778 = vadd.f32 %v1758, %v1777
    %1779 = vdwg.mxu0
    %v1788 = vrot.slane %v1298, 6
    %v1789 = vrot.slane %v1378, 4
    %v1790 = vrot.slane %v1458, 2
    %v1791 = vrot.slane %v1618, 6
    %v1792 = vrot.slane %v1698, 4
    %v1793 = vrot.slane %v1778, 2
    %vm1794 = vcmask 1041408
    %v1795 = vsel %vm1794, %v1218, %v1788
    %vm1796 = vcmask 1045508
    %v1797 = vsel %vm1796, %v1789, %v1790
    %vm1798 = vcmask 1043456
    %v1799 = vsel %vm1798, %v1795, %v1797
    %v1800 = vsel %vm1794, %v1538, %v1791
    %v1801 = vsel %vm1796, %v1792, %v1793
    %v1802 = vsel %vm1798, %v1800, %v1801
    %1805 = vst [vmem:[#allocation2] sm:$0xff] %v1799
    %1806 = vst [vmem:[#allocation2 + $0x8] sm:$0xff] %v1802
    // Predicated region
    $region30: #{convnet_forward.5} parent=1 // pred_check
      _
    $region31: #{convnet_forward.5} parent=1 // pred_check_branch
      %1808 = sbr.rel (0) target = $region33
    $region32: #{convnet_forward.5} parent=1 // pred_region
      %1810 = vsyncadd [#allocation3], 0
      %s1812 = sshll.u32 [#allocation2], 4
      %s1813 = int_to_ptr.vmem [resolvable:$true] %s1812
      %s1814 = sshll.u32 %s7, 4
      %s1815 = int_to_ptr.hbm [resolvable:$true] %s1814
      %1817 = dma.vmem_to_hbm [thread:$0]  %s1813, 256, %s1815, [#allocation3]
    $region33: #{convnet_forward.5} parent=1 // pred_fallthru
      _
    // Predicated region
    $region34: #{convnet_forward.5} parent=1 // pred_check
      _
    $region35: #{convnet_forward.5} parent=1 // pred_check_branch
      %1819 = sbr.rel (0) target = $region37
    $region36: #{convnet_forward.5} parent=1 // pred_region
      %1821 = dma.done [#allocation3], 256
    $region37: #{convnet_forward.5} parent=1 // pred_fallthru
      _
    %1822 = vsyncpa [#allocation3], 1

</llo_original>
